<compile_context>
chip_gen: v6e
topology: v6e:2x2x1
jax: 0.10.0
libtpu: 0.0.40
codegen_flags: <defaults>
</compile_context>

<pallas_src>
import math
import functools

import jax
import jax.numpy as jnp
import numpy as np
from jax import lax
from jax.experimental import pallas as pl


# ---------------------------------------------------------------------------
# In-kernel helpers (traced inside the Pallas kernel body)
# ---------------------------------------------------------------------------
def _layernorm(x, gamma, beta, eps=1e-5):
    mean = jnp.mean(x, axis=-1, keepdims=True)
    var = jnp.mean((x - mean) ** 2, axis=-1, keepdims=True)
    return (x - mean) * lax.rsqrt(var + eps) * gamma + beta


_SQRT_2_OVER_PI = 0.7978845608028654


def _gelu_tanh(x):
    # tanh-approx GELU: tanh lowers to the EUP (separate VLIW slot) instead of the
    # long erf VALU polynomial; deviation from the exact erf GELU is ~1e-4 at the
    # activation magnitudes seen here (covered by the test tolerance).
    return 0.5 * x * (1.0 + jnp.tanh(_SQRT_2_OVER_PI * (x + 0.044715 * x * x * x)))


# ---------------------------------------------------------------------------
# One fused kernel for the full StageBlock (all `depth` transformer blocks)
# ---------------------------------------------------------------------------
def stage_kernel(x_ref,
                 g1_ref, b1_ref, wqkv_ref, wproj_ref, bproj_ref,
                 g2_ref, b2_ref, w1_ref, bb1_ref, w2_ref, bb2_ref,
                 o_ref, *, depth, batch, seq, num_heads):
    BN, C = x_ref.shape
    B, N, H = batch, seq, num_heads
    hd = C // H
    bf16 = jnp.bfloat16
    f32 = jnp.float32

    x = x_ref[...]                                   # (B*N, C) f32, VMEM-resident

    # depth=2: static unroll is fine.
    # TODO(synk): for depth >~8, switch to lax.fori_loop with dynamic ref[d]
    # indexing of the stacked weights to bound vreg live ranges / compile time.
    for d in range(depth):
        # -------- Attention branch: x + proj(MHSA(LN1(x))) --------
        xn = _layernorm(x, g1_ref[d], b1_ref[d])     # (B*N, C) f32
        # fused QKV: one (B*N, C) @ (C, 3C) matmul; scale pre-folded into wq
        qkv = jnp.dot(xn.astype(bf16), wqkv_ref[d],
                      preferred_element_type=f32)    # (B*N, 3C)
        qkv = qkv.astype(bf16)

        def split_heads(off):
            # lane-slice per head, regroup rows (b*N+n) -> (B, N), stack heads on
            # the leading (batch) axis -> (H*B, N, hd); head-major, batch-minor.
            return jnp.concatenate(
                [qkv[:, off + h * hd: off + (h + 1) * hd].reshape(B, N, hd)
                 for h in range(H)], axis=0)

        q = split_heads(0)                           # (H*B, N, hd) bf16
        k = split_heads(C)
        v = split_heads(2 * C)

        # batched attention over the fused (H*B) batch dim: 2 MXU ops per block
        s = jnp.einsum('gqd,gkd->gqk', q, k,
                       preferred_element_type=f32)   # (H*B, N, N) f32
        s = s - jnp.max(s, axis=-1, keepdims=True)
        p = jnp.exp(s)
        p = p * pl.reciprocal(jnp.sum(p, axis=-1, keepdims=True), approx=True)

        ctx = jnp.einsum('gqk,gkd->gqd', p.astype(bf16), v,
                         preferred_element_type=f32)  # (H*B, N, hd)

        # concat heads back along lanes -> (B*N, C); single (C, C) projection
        ctx2d = jnp.concatenate(
            [ctx[h * B:(h + 1) * B].reshape(BN, hd) for h in range(H)], axis=1)
        attn_out = jnp.dot(ctx2d.astype(bf16), wproj_ref[d],
                           preferred_element_type=f32)
        x = x + attn_out + bproj_ref[d]

        # -------- MLP branch: x + fc2(gelu(fc1(LN2(x)))) --------
        xn2 = _layernorm(x, g2_ref[d], b2_ref[d])
        h1 = jnp.dot(xn2.astype(bf16), w1_ref[d],
                     preferred_element_type=f32) + bb1_ref[d]
        h1 = _gelu_tanh(h1)
        h2 = jnp.dot(h1.astype(bf16), w2_ref[d],
                     preferred_element_type=f32) + bb2_ref[d]
        x = x + h2

    o_ref[...] = x


# ---------------------------------------------------------------------------
# Wrapper: pre-arrange weights (plain JAX) and call the fused kernel once
# ---------------------------------------------------------------------------
def _stack_block_weights(params_list, num_heads):
    """Stack per-block weights along a leading depth axis; matmul weights in bf16."""
    C = params_list[0]["wq"].shape[0]
    hd = C // num_heads
    scale = hd ** (-0.5)

    def stack(key, dtype=jnp.float32):
        return jnp.stack([p[key] for p in params_list], axis=0).astype(dtype)

    g1, b1 = stack("g1"), stack("b1")
    # fused QKV weight (depth, C, 3C): [wq*scale | wk | wv]; scale fold is exact.
    wqkv = jnp.stack(
        [jnp.concatenate([p["wq"] * scale, p["wk"], p["wv"]], axis=1)
         for p in params_list], axis=0).astype(jnp.bfloat16)
    wproj = stack("wproj", jnp.bfloat16)
    bproj = stack("bproj")
    g2, b2 = stack("g2"), stack("b2")
    w1, bb1 = stack("w1", jnp.bfloat16), stack("bb1")
    w2, bb2 = stack("w2", jnp.bfloat16), stack("bb2")
    return (g1, b1, wqkv, wproj, bproj, g2, b2, w1, bb1, w2, bb2)


def _full_spec(shape):
    nd = len(shape)
    return pl.BlockSpec(shape, lambda _nd=nd: (0,) * _nd)


def stage_block_forward(x, params_list, num_heads):
    """Run the whole StageBlock (depth blocks) in a single pallas_call."""
    B, N, C = x.shape
    depth = len(params_list)
    weights = _stack_block_weights(params_list, num_heads)

    x2d = x.reshape(B * N, C)   # whole activation as one 2-D VMEM block
    # TODO(synk): at C=32 the output is lane-sparse (masked partial stores); a
    # lane-dense (multiple-of-128) I/O layout only matters if these shapes scale.

    out2d = pl.pallas_call(
        functools.partial(stage_kernel, depth=depth, batch=B, seq=N,
                          num_heads=num_heads),
        out_shape=jax.ShapeDtypeStruct((B * N, C), x.dtype),
        in_specs=[_full_spec(x2d.shape)] + [_full_spec(w.shape) for w in weights],
        out_specs=_full_spec((B * N, C)),
    )(x2d, *weights)

    return out2d.reshape(B, N, C)


# ---------------------------------------------------------------------------
# Parameter init (deterministic, synthetic) and pure-JAX reference
# ---------------------------------------------------------------------------
def init_block_params(key, dim, mlp_hidden):
    ks = jax.random.split(key, 6)
    s = 0.02
    return {
        "g1":    jnp.ones((1, dim), jnp.float32),
        "b1":    jnp.zeros((1, dim), jnp.float32),
        "wq":    s * jax.random.normal(ks[0], (dim, dim), jnp.float32),
        "wk":    s * jax.random.normal(ks[1], (dim, dim), jnp.float32),
        "wv":    s * jax.random.normal(ks[2], (dim, dim), jnp.float32),
        "wproj": s * jax.random.normal(ks[3], (dim, dim), jnp.float32),
        "bproj": jnp.zeros((1, dim), jnp.float32),
        "g2":    jnp.ones((1, dim), jnp.float32),
        "b2":    jnp.zeros((1, dim), jnp.float32),
        "w1":    s * jax.random.normal(ks[4], (dim, mlp_hidden), jnp.float32),
        "bb1":   jnp.zeros((1, mlp_hidden), jnp.float32),
        "w2":    s * jax.random.normal(ks[5], (mlp_hidden, dim), jnp.float32),
        "bb2":   jnp.zeros((1, dim), jnp.float32),
    }


def reference_block(x, p, num_heads):
    """Faithful f32 / exact-erf reference matching the PyTorch Block."""
    B, N, C = x.shape
    hd = C // num_heads
    scale = hd ** (-0.5)

    def ln(y, g, b):
        m = jnp.mean(y, -1, keepdims=True)
        v = jnp.mean((y - m) ** 2, -1, keepdims=True)
        return (y - m) * lax.rsqrt(v + 1e-5) * g + b

    xn = ln(x, p["g1"][0], p["b1"][0])
    q = (xn @ p["wq"]).reshape(B, N, num_heads, hd).transpose(0, 2, 1, 3)
    k = (xn @ p["wk"]).reshape(B, N, num_heads, hd).transpose(0, 2, 1, 3)
    v = (xn @ p["wv"]).reshape(B, N, num_heads, hd).transpose(0, 2, 1, 3)
    attn = jax.nn.softmax(jnp.einsum("bhnd,bhmd->bhnm", q, k) * scale, axis=-1)
    o = jnp.einsum("bhnm,bhmd->bhnd", attn, v).transpose(0, 2, 1, 3).reshape(B, N, C)
    x = x + o @ p["wproj"] + p["bproj"][0]

    xn2 = ln(x, p["g2"][0], p["b2"][0])
    h = xn2 @ p["w1"] + p["bb1"][0]
    h = h * 0.5 * (1.0 + lax.erf(h / math.sqrt(2.0)))
    return x + h @ p["w2"] + p["bb2"][0]


if __name__ == "__main__":
    # StageBlock(depth=2, dim=32, num_heads=4, mlp_ratio=4.0)
    depth, dim, num_heads, mlp_ratio = 2, 32, 4, 4.0
    B, N = 2, 16
    mlp_hidden = int(dim * mlp_ratio)

    key = jax.random.PRNGKey(0)
    kx, *kps = jax.random.split(key, depth + 1)
    x = jax.random.normal(kx, (B, N, dim), jnp.float32)
    params_list = [init_block_params(kp, dim, mlp_hidden) for kp in kps]

    out = stage_block_forward(x, params_list, num_heads)
    out = jax.block_until_ready(out)

    # sanity check against the exact f32/erf reference; tolerance accounts for
    # bf16 MXU operands, tanh-GELU and the approximate-reciprocal softmax
    # (observed error is well under this bound at these weight scales).
    ref = x
    for p in params_list:
        ref = reference_block(ref, p, num_heads)
    err = float(np.max(np.abs(np.asarray(out) - np.asarray(ref))))
    assert np.allclose(np.asarray(out), np.asarray(ref), atol=1e-2, rtol=1e-2), err

    print("KERNEL_OK")
</pallas_src>

<mosaic_0001>
module attributes {stable_mosaic.version = 11 : i64} {
  func.func @stage_kernel(%arg0: memref<32x32xf32, #tpu.memory_space<vmem>>, %arg1: memref<2x1x32xf32, #tpu.memory_space<vmem>>, %arg2: memref<2x1x32xf32, #tpu.memory_space<vmem>>, %arg3: memref<2x32x96xbf16, #tpu.memory_space<vmem>>, %arg4: memref<2x32x32xbf16, #tpu.memory_space<vmem>>, %arg5: memref<2x1x32xf32, #tpu.memory_space<vmem>>, %arg6: memref<2x1x32xf32, #tpu.memory_space<vmem>>, %arg7: memref<2x1x32xf32, #tpu.memory_space<vmem>>, %arg8: memref<2x32x128xbf16, #tpu.memory_space<vmem>>, %arg9: memref<2x1x128xf32, #tpu.memory_space<vmem>>, %arg10: memref<2x128x32xbf16, #tpu.memory_space<vmem>>, %arg11: memref<2x1x32xf32, #tpu.memory_space<vmem>>, %arg12: memref<32x32xf32, #tpu.memory_space<vmem>>) attributes {dimension_semantics = [], scalar_prefetch = 0 : i64, scratch_operands = 0 : i64, tpu.core_type = #tpu.core_type<tc>} {
    %c0 = arith.constant 0 : index
    %c0_0 = arith.constant 0 : index
    %0 = vector.load %arg0[%c0, %c0_0] : memref<32x32xf32, #tpu.memory_space<vmem>>, vector<32x32xf32>
    %c0_1 = arith.constant 0 : index
    %c0_2 = arith.constant 0 : index
    %c0_3 = arith.constant 0 : index
    %1 = vector.load %arg1[%c0_1, %c0_2, %c0_3] : memref<2x1x32xf32, #tpu.memory_space<vmem>>, vector<1x1x32xf32>
    %2 = vector.shape_cast %1 : vector<1x1x32xf32> to vector<1x32xf32>
    %c0_4 = arith.constant 0 : index
    %c0_5 = arith.constant 0 : index
    %c0_6 = arith.constant 0 : index
    %3 = vector.load %arg2[%c0_4, %c0_5, %c0_6] : memref<2x1x32xf32, #tpu.memory_space<vmem>>, vector<1x1x32xf32>
    %4 = vector.shape_cast %3 : vector<1x1x32xf32> to vector<1x32xf32>
    %cst = arith.constant dense<0.000000e+00> : vector<32xf32>
    %5 = vector.multi_reduction <add>, %0, %cst [1] : vector<32x32xf32> to vector<32xf32>
    %6 = vector.shape_cast %5 : vector<32xf32> to vector<32x1xf32>
    %cst_7 = arith.constant 3.200000e+01 : f32
    %7 = vector.broadcast %cst_7 : f32 to vector<32x1xf32>
    %8 = arith.divf %6, %7 : vector<32x1xf32>
    %9 = vector.broadcast %8 : vector<32x1xf32> to vector<32x32xf32>
    %10 = arith.subf %0, %9 : vector<32x32xf32>
    %11 = arith.mulf %10, %10 : vector<32x32xf32>
    %cst_8 = arith.constant dense<0.000000e+00> : vector<32xf32>
    %12 = vector.multi_reduction <add>, %11, %cst_8 [1] : vector<32x32xf32> to vector<32xf32>
    %13 = vector.shape_cast %12 : vector<32xf32> to vector<32x1xf32>
    %cst_9 = arith.constant 3.200000e+01 : f32
    %14 = vector.broadcast %cst_9 : f32 to vector<32x1xf32>
    %15 = arith.divf %13, %14 : vector<32x1xf32>
    %16 = vector.broadcast %8 : vector<32x1xf32> to vector<32x32xf32>
    %17 = arith.subf %0, %16 : vector<32x32xf32>
    %cst_10 = arith.constant 9.99999974E-6 : f32
    %18 = vector.broadcast %cst_10 : f32 to vector<32x1xf32>
    %19 = arith.addf %15, %18 : vector<32x1xf32>
    %20 = math.rsqrt %19 : vector<32x1xf32>
    %21 = vector.broadcast %20 : vector<32x1xf32> to vector<32x32xf32>
    %22 = arith.mulf %17, %21 : vector<32x32xf32>
    %23 = vector.broadcast %2 : vector<1x32xf32> to vector<32x32xf32>
    %24 = arith.mulf %22, %23 : vector<32x32xf32>
    %25 = vector.broadcast %4 : vector<1x32xf32> to vector<32x32xf32>
    %26 = arith.addf %24, %25 : vector<32x32xf32>
    %27 = arith.truncf %26 : vector<32x32xf32> to vector<32x32xbf16>
    %c0_11 = arith.constant 0 : index
    %c0_12 = arith.constant 0 : index
    %c0_13 = arith.constant 0 : index
    %28 = vector.load %arg3[%c0_11, %c0_12, %c0_13] : memref<2x32x96xbf16, #tpu.memory_space<vmem>>, vector<1x32x96xbf16>
    %29 = vector.shape_cast %28 : vector<1x32x96xbf16> to vector<32x96xbf16>
    %cst_14 = arith.constant dense<0.000000e+00> : vector<32x96xf32>
    %30 = tpu.matmul %27, %29, %cst_14 {dimension_numbers = #tpu.dot_dimension_numbers<[1], [0], [0], [1], [0, 0, 1, 1], [], []>} : vector<32x32xbf16>, vector<32x96xbf16>, vector<32x96xf32> -> vector<32x96xf32>
    %31 = arith.truncf %30 : vector<32x96xf32> to vector<32x96xbf16>
    %32 = vector.extract_strided_slice %31 {offsets = [0, 0], sizes = [32, 8], strides = [1, 1]} : vector<32x96xbf16> to vector<32x8xbf16>
    %33 = vector.shape_cast %32 : vector<32x8xbf16> to vector<2x16x8xbf16>
    %34 = vector.extract_strided_slice %31 {offsets = [0, 8], sizes = [32, 8], strides = [1, 1]} : vector<32x96xbf16> to vector<32x8xbf16>
    %35 = vector.shape_cast %34 : vector<32x8xbf16> to vector<2x16x8xbf16>
    %36 = vector.extract_strided_slice %31 {offsets = [0, 16], sizes = [32, 8], strides = [1, 1]} : vector<32x96xbf16> to vector<32x8xbf16>
    %37 = vector.shape_cast %36 : vector<32x8xbf16> to vector<2x16x8xbf16>
    %38 = vector.extract_strided_slice %31 {offsets = [0, 24], sizes = [32, 8], strides = [1, 1]} : vector<32x96xbf16> to vector<32x8xbf16>
    %39 = vector.shape_cast %38 : vector<32x8xbf16> to vector<2x16x8xbf16>
    %40 = tpu.concatenate %33, %35, %37, %39 in 0 : vector<2x16x8xbf16>, vector<2x16x8xbf16>, vector<2x16x8xbf16>, vector<2x16x8xbf16> -> vector<8x16x8xbf16>
    %41 = vector.extract_strided_slice %31 {offsets = [0, 32], sizes = [32, 8], strides = [1, 1]} : vector<32x96xbf16> to vector<32x8xbf16>
    %42 = vector.shape_cast %41 : vector<32x8xbf16> to vector<2x16x8xbf16>
    %43 = vector.extract_strided_slice %31 {offsets = [0, 40], sizes = [32, 8], strides = [1, 1]} : vector<32x96xbf16> to vector<32x8xbf16>
    %44 = vector.shape_cast %43 : vector<32x8xbf16> to vector<2x16x8xbf16>
    %45 = vector.extract_strided_slice %31 {offsets = [0, 48], sizes = [32, 8], strides = [1, 1]} : vector<32x96xbf16> to vector<32x8xbf16>
    %46 = vector.shape_cast %45 : vector<32x8xbf16> to vector<2x16x8xbf16>
    %47 = vector.extract_strided_slice %31 {offsets = [0, 56], sizes = [32, 8], strides = [1, 1]} : vector<32x96xbf16> to vector<32x8xbf16>
    %48 = vector.shape_cast %47 : vector<32x8xbf16> to vector<2x16x8xbf16>
    %49 = tpu.concatenate %42, %44, %46, %48 in 0 : vector<2x16x8xbf16>, vector<2x16x8xbf16>, vector<2x16x8xbf16>, vector<2x16x8xbf16> -> vector<8x16x8xbf16>
    %50 = vector.extract_strided_slice %31 {offsets = [0, 64], sizes = [32, 8], strides = [1, 1]} : vector<32x96xbf16> to vector<32x8xbf16>
    %51 = vector.shape_cast %50 : vector<32x8xbf16> to vector<2x16x8xbf16>
    %52 = vector.extract_strided_slice %31 {offsets = [0, 72], sizes = [32, 8], strides = [1, 1]} : vector<32x96xbf16> to vector<32x8xbf16>
    %53 = vector.shape_cast %52 : vector<32x8xbf16> to vector<2x16x8xbf16>
    %54 = vector.extract_strided_slice %31 {offsets = [0, 80], sizes = [32, 8], strides = [1, 1]} : vector<32x96xbf16> to vector<32x8xbf16>
    %55 = vector.shape_cast %54 : vector<32x8xbf16> to vector<2x16x8xbf16>
    %56 = vector.extract_strided_slice %31 {offsets = [0, 88], sizes = [32, 8], strides = [1, 1]} : vector<32x96xbf16> to vector<32x8xbf16>
    %57 = vector.shape_cast %56 : vector<32x8xbf16> to vector<2x16x8xbf16>
    %58 = tpu.concatenate %51, %53, %55, %57 in 0 : vector<2x16x8xbf16>, vector<2x16x8xbf16>, vector<2x16x8xbf16>, vector<2x16x8xbf16> -> vector<8x16x8xbf16>
    "tpu.trace_start"() <{level = 10 : i32, message = "gqd,gkd->gqk"}> : () -> ()
    %cst_15 = arith.constant dense<0.000000e+00> : vector<8x16x16xf32>
    %59 = tpu.matmul %40, %49, %cst_15 {dimension_numbers = #tpu.dot_dimension_numbers<[2], [2], [1], [1], [0, 0, 0, 1, 1, 1], [0], [0]>} : vector<8x16x8xbf16>, vector<8x16x8xbf16>, vector<8x16x16xf32> -> vector<8x16x16xf32>
    "tpu.trace_stop"() : () -> ()
    %cst_16 = arith.constant dense<0xFF800000> : vector<8x16xf32>
    %60 = vector.multi_reduction <maximumf>, %59, %cst_16 [2] : vector<8x16x16xf32> to vector<8x16xf32>
    %61 = vector.shape_cast %60 : vector<8x16xf32> to vector<8x16x1xf32>
    %62 = vector.broadcast %61 : vector<8x16x1xf32> to vector<8x16x16xf32>
    %63 = arith.subf %59, %62 : vector<8x16x16xf32>
    %64 = math.exp %63 : vector<8x16x16xf32>
    %cst_17 = arith.constant dense<0.000000e+00> : vector<8x16xf32>
    %65 = vector.multi_reduction <add>, %64, %cst_17 [2] : vector<8x16x16xf32> to vector<8x16xf32>
    %66 = vector.shape_cast %65 : vector<8x16xf32> to vector<8x16x1xf32>
    %67 = tpu.reciprocal %66 {approx = true} : vector<8x16x1xf32> -> vector<8x16x1xf32>
    %68 = vector.broadcast %67 : vector<8x16x1xf32> to vector<8x16x16xf32>
    %69 = arith.mulf %64, %68 : vector<8x16x16xf32>
    %70 = arith.truncf %69 : vector<8x16x16xf32> to vector<8x16x16xbf16>
    "tpu.trace_start"() <{level = 10 : i32, message = "gqk,gkd->gqd"}> : () -> ()
    %cst_18 = arith.constant dense<0.000000e+00> : vector<8x16x8xf32>
    %71 = tpu.matmul %70, %58, %cst_18 {dimension_numbers = #tpu.dot_dimension_numbers<[2], [1], [1], [2], [0, 0, 0, 1, 1, 2], [0], [0]>} : vector<8x16x16xbf16>, vector<8x16x8xbf16>, vector<8x16x8xf32> -> vector<8x16x8xf32>
    "tpu.trace_stop"() : () -> ()
    %72 = vector.extract_strided_slice %71 {offsets = [0, 0, 0], sizes = [2, 16, 8], strides = [1, 1, 1]} : vector<8x16x8xf32> to vector<2x16x8xf32>
    %73 = vector.shape_cast %72 : vector<2x16x8xf32> to vector<32x8xf32>
    %74 = vector.extract_strided_slice %71 {offsets = [2, 0, 0], sizes = [2, 16, 8], strides = [1, 1, 1]} : vector<8x16x8xf32> to vector<2x16x8xf32>
    %75 = vector.shape_cast %74 : vector<2x16x8xf32> to vector<32x8xf32>
    %76 = vector.extract_strided_slice %71 {offsets = [4, 0, 0], sizes = [2, 16, 8], strides = [1, 1, 1]} : vector<8x16x8xf32> to vector<2x16x8xf32>
    %77 = vector.shape_cast %76 : vector<2x16x8xf32> to vector<32x8xf32>
    %78 = vector.extract_strided_slice %71 {offsets = [6, 0, 0], sizes = [2, 16, 8], strides = [1, 1, 1]} : vector<8x16x8xf32> to vector<2x16x8xf32>
    %79 = vector.shape_cast %78 : vector<2x16x8xf32> to vector<32x8xf32>
    %80 = tpu.concatenate %73, %75, %77, %79 in 1 : vector<32x8xf32>, vector<32x8xf32>, vector<32x8xf32>, vector<32x8xf32> -> vector<32x32xf32>
    %81 = arith.truncf %80 : vector<32x32xf32> to vector<32x32xbf16>
    %c0_19 = arith.constant 0 : index
    %c0_20 = arith.constant 0 : index
    %c0_21 = arith.constant 0 : index
    %82 = vector.load %arg4[%c0_19, %c0_20, %c0_21] : memref<2x32x32xbf16, #tpu.memory_space<vmem>>, vector<1x32x32xbf16>
    %83 = vector.shape_cast %82 : vector<1x32x32xbf16> to vector<32x32xbf16>
    %cst_22 = arith.constant dense<0.000000e+00> : vector<32x32xf32>
    %84 = tpu.matmul %81, %83, %cst_22 {dimension_numbers = #tpu.dot_dimension_numbers<[1], [0], [0], [1], [0, 0, 1, 1], [], []>} : vector<32x32xbf16>, vector<32x32xbf16>, vector<32x32xf32> -> vector<32x32xf32>
    %85 = arith.addf %0, %84 : vector<32x32xf32>
    %c0_23 = arith.constant 0 : index
    %c0_24 = arith.constant 0 : index
    %c0_25 = arith.constant 0 : index
    %86 = vector.load %arg5[%c0_23, %c0_24, %c0_25] : memref<2x1x32xf32, #tpu.memory_space<vmem>>, vector<1x1x32xf32>
    %87 = vector.shape_cast %86 : vector<1x1x32xf32> to vector<1x32xf32>
    %88 = vector.broadcast %87 : vector<1x32xf32> to vector<32x32xf32>
    %89 = arith.addf %85, %88 : vector<32x32xf32>
    %c0_26 = arith.constant 0 : index
    %c0_27 = arith.constant 0 : index
    %c0_28 = arith.constant 0 : index
    %90 = vector.load %arg6[%c0_26, %c0_27, %c0_28] : memref<2x1x32xf32, #tpu.memory_space<vmem>>, vector<1x1x32xf32>
    %91 = vector.shape_cast %90 : vector<1x1x32xf32> to vector<1x32xf32>
    %c0_29 = arith.constant 0 : index
    %c0_30 = arith.constant 0 : index
    %c0_31 = arith.constant 0 : index
    %92 = vector.load %arg7[%c0_29, %c0_30, %c0_31] : memref<2x1x32xf32, #tpu.memory_space<vmem>>, vector<1x1x32xf32>
    %93 = vector.shape_cast %92 : vector<1x1x32xf32> to vector<1x32xf32>
    %cst_32 = arith.constant dense<0.000000e+00> : vector<32xf32>
    %94 = vector.multi_reduction <add>, %89, %cst_32 [1] : vector<32x32xf32> to vector<32xf32>
    %95 = vector.shape_cast %94 : vector<32xf32> to vector<32x1xf32>
    %cst_33 = arith.constant 3.200000e+01 : f32
    %96 = vector.broadcast %cst_33 : f32 to vector<32x1xf32>
    %97 = arith.divf %95, %96 : vector<32x1xf32>
    %98 = vector.broadcast %97 : vector<32x1xf32> to vector<32x32xf32>
    %99 = arith.subf %89, %98 : vector<32x32xf32>
    %100 = arith.mulf %99, %99 : vector<32x32xf32>
    %cst_34 = arith.constant dense<0.000000e+00> : vector<32xf32>
    %101 = vector.multi_reduction <add>, %100, %cst_34 [1] : vector<32x32xf32> to vector<32xf32>
    %102 = vector.shape_cast %101 : vector<32xf32> to vector<32x1xf32>
    %cst_35 = arith.constant 3.200000e+01 : f32
    %103 = vector.broadcast %cst_35 : f32 to vector<32x1xf32>
    %104 = arith.divf %102, %103 : vector<32x1xf32>
    %105 = vector.broadcast %97 : vector<32x1xf32> to vector<32x32xf32>
    %106 = arith.subf %89, %105 : vector<32x32xf32>
    %cst_36 = arith.constant 9.99999974E-6 : f32
    %107 = vector.broadcast %cst_36 : f32 to vector<32x1xf32>
    %108 = arith.addf %104, %107 : vector<32x1xf32>
    %109 = math.rsqrt %108 : vector<32x1xf32>
    %110 = vector.broadcast %109 : vector<32x1xf32> to vector<32x32xf32>
    %111 = arith.mulf %106, %110 : vector<32x32xf32>
    %112 = vector.broadcast %91 : vector<1x32xf32> to vector<32x32xf32>
    %113 = arith.mulf %111, %112 : vector<32x32xf32>
    %114 = vector.broadcast %93 : vector<1x32xf32> to vector<32x32xf32>
    %115 = arith.addf %113, %114 : vector<32x32xf32>
    %116 = arith.truncf %115 : vector<32x32xf32> to vector<32x32xbf16>
    %c0_37 = arith.constant 0 : index
    %c0_38 = arith.constant 0 : index
    %c0_39 = arith.constant 0 : index
    %117 = vector.load %arg8[%c0_37, %c0_38, %c0_39] : memref<2x32x128xbf16, #tpu.memory_space<vmem>>, vector<1x32x128xbf16>
    %118 = vector.shape_cast %117 : vector<1x32x128xbf16> to vector<32x128xbf16>
    %cst_40 = arith.constant dense<0.000000e+00> : vector<32x128xf32>
    %119 = tpu.matmul %116, %118, %cst_40 {dimension_numbers = #tpu.dot_dimension_numbers<[1], [0], [0], [1], [0, 0, 1, 1], [], []>} : vector<32x32xbf16>, vector<32x128xbf16>, vector<32x128xf32> -> vector<32x128xf32>
    %c0_41 = arith.constant 0 : index
    %c0_42 = arith.constant 0 : index
    %c0_43 = arith.constant 0 : index
    %120 = vector.load %arg9[%c0_41, %c0_42, %c0_43] : memref<2x1x128xf32, #tpu.memory_space<vmem>>, vector<1x1x128xf32>
    %121 = vector.shape_cast %120 : vector<1x1x128xf32> to vector<1x128xf32>
    %122 = vector.broadcast %121 : vector<1x128xf32> to vector<32x128xf32>
    %123 = arith.addf %119, %122 : vector<32x128xf32>
    %cst_44 = arith.constant 5.000000e-01 : f32
    %124 = vector.broadcast %cst_44 : f32 to vector<32x128xf32>
    %125 = arith.mulf %124, %123 : vector<32x128xf32>
    %cst_45 = arith.constant 4.471500e-02 : f32
    %126 = vector.broadcast %cst_45 : f32 to vector<32x128xf32>
    %127 = arith.mulf %126, %123 : vector<32x128xf32>
    %128 = arith.mulf %127, %123 : vector<32x128xf32>
    %129 = arith.mulf %128, %123 : vector<32x128xf32>
    %130 = arith.addf %123, %129 : vector<32x128xf32>
    %cst_46 = arith.constant 0.797884583 : f32
    %131 = vector.broadcast %cst_46 : f32 to vector<32x128xf32>
    %132 = arith.mulf %131, %130 : vector<32x128xf32>
    %133 = math.tanh %132 : vector<32x128xf32>
    %cst_47 = arith.constant 1.000000e+00 : f32
    %134 = vector.broadcast %cst_47 : f32 to vector<32x128xf32>
    %135 = arith.addf %134, %133 : vector<32x128xf32>
    %136 = arith.mulf %125, %135 : vector<32x128xf32>
    %137 = arith.truncf %136 : vector<32x128xf32> to vector<32x128xbf16>
    %c0_48 = arith.constant 0 : index
    %c0_49 = arith.constant 0 : index
    %c0_50 = arith.constant 0 : index
    %138 = vector.load %arg10[%c0_48, %c0_49, %c0_50] : memref<2x128x32xbf16, #tpu.memory_space<vmem>>, vector<1x128x32xbf16>
    %139 = vector.shape_cast %138 : vector<1x128x32xbf16> to vector<128x32xbf16>
    %cst_51 = arith.constant dense<0.000000e+00> : vector<32x32xf32>
    %140 = tpu.matmul %137, %139, %cst_51 {dimension_numbers = #tpu.dot_dimension_numbers<[1], [0], [0], [1], [0, 0, 1, 1], [], []>} : vector<32x128xbf16>, vector<128x32xbf16>, vector<32x32xf32> -> vector<32x32xf32>
    %c0_52 = arith.constant 0 : index
    %c0_53 = arith.constant 0 : index
    %c0_54 = arith.constant 0 : index
    %141 = vector.load %arg11[%c0_52, %c0_53, %c0_54] : memref<2x1x32xf32, #tpu.memory_space<vmem>>, vector<1x1x32xf32>
    %142 = vector.shape_cast %141 : vector<1x1x32xf32> to vector<1x32xf32>
    %143 = vector.broadcast %142 : vector<1x32xf32> to vector<32x32xf32>
    %144 = arith.addf %140, %143 : vector<32x32xf32>
    %145 = arith.addf %89, %144 : vector<32x32xf32>
    %c1 = arith.constant 1 : index
    %c0_55 = arith.constant 0 : index
    %c0_56 = arith.constant 0 : index
    %146 = vector.load %arg1[%c1, %c0_55, %c0_56] : memref<2x1x32xf32, #tpu.memory_space<vmem>>, vector<1x1x32xf32>
    %147 = vector.shape_cast %146 : vector<1x1x32xf32> to vector<1x32xf32>
    %c1_57 = arith.constant 1 : index
    %c0_58 = arith.constant 0 : index
    %c0_59 = arith.constant 0 : index
    %148 = vector.load %arg2[%c1_57, %c0_58, %c0_59] : memref<2x1x32xf32, #tpu.memory_space<vmem>>, vector<1x1x32xf32>
    %149 = vector.shape_cast %148 : vector<1x1x32xf32> to vector<1x32xf32>
    %cst_60 = arith.constant dense<0.000000e+00> : vector<32xf32>
    %150 = vector.multi_reduction <add>, %145, %cst_60 [1] : vector<32x32xf32> to vector<32xf32>
    %151 = vector.shape_cast %150 : vector<32xf32> to vector<32x1xf32>
    %cst_61 = arith.constant 3.200000e+01 : f32
    %152 = vector.broadcast %cst_61 : f32 to vector<32x1xf32>
    %153 = arith.divf %151, %152 : vector<32x1xf32>
    %154 = vector.broadcast %153 : vector<32x1xf32> to vector<32x32xf32>
    %155 = arith.subf %145, %154 : vector<32x32xf32>
    %156 = arith.mulf %155, %155 : vector<32x32xf32>
    %cst_62 = arith.constant dense<0.000000e+00> : vector<32xf32>
    %157 = vector.multi_reduction <add>, %156, %cst_62 [1] : vector<32x32xf32> to vector<32xf32>
    %158 = vector.shape_cast %157 : vector<32xf32> to vector<32x1xf32>
    %cst_63 = arith.constant 3.200000e+01 : f32
    %159 = vector.broadcast %cst_63 : f32 to vector<32x1xf32>
    %160 = arith.divf %158, %159 : vector<32x1xf32>
    %161 = vector.broadcast %153 : vector<32x1xf32> to vector<32x32xf32>
    %162 = arith.subf %145, %161 : vector<32x32xf32>
    %cst_64 = arith.constant 9.99999974E-6 : f32
    %163 = vector.broadcast %cst_64 : f32 to vector<32x1xf32>
    %164 = arith.addf %160, %163 : vector<32x1xf32>
    %165 = math.rsqrt %164 : vector<32x1xf32>
    %166 = vector.broadcast %165 : vector<32x1xf32> to vector<32x32xf32>
    %167 = arith.mulf %162, %166 : vector<32x32xf32>
    %168 = vector.broadcast %147 : vector<1x32xf32> to vector<32x32xf32>
    %169 = arith.mulf %167, %168 : vector<32x32xf32>
    %170 = vector.broadcast %149 : vector<1x32xf32> to vector<32x32xf32>
    %171 = arith.addf %169, %170 : vector<32x32xf32>
    %172 = arith.truncf %171 : vector<32x32xf32> to vector<32x32xbf16>
    %c1_65 = arith.constant 1 : index
    %c0_66 = arith.constant 0 : index
    %c0_67 = arith.constant 0 : index
    %173 = vector.load %arg3[%c1_65, %c0_66, %c0_67] : memref<2x32x96xbf16, #tpu.memory_space<vmem>>, vector<1x32x96xbf16>
    %174 = vector.shape_cast %173 : vector<1x32x96xbf16> to vector<32x96xbf16>
    %cst_68 = arith.constant dense<0.000000e+00> : vector<32x96xf32>
    %175 = tpu.matmul %172, %174, %cst_68 {dimension_numbers = #tpu.dot_dimension_numbers<[1], [0], [0], [1], [0, 0, 1, 1], [], []>} : vector<32x32xbf16>, vector<32x96xbf16>, vector<32x96xf32> -> vector<32x96xf32>
    %176 = arith.truncf %175 : vector<32x96xf32> to vector<32x96xbf16>
    %177 = vector.extract_strided_slice %176 {offsets = [0, 0], sizes = [32, 8], strides = [1, 1]} : vector<32x96xbf16> to vector<32x8xbf16>
    %178 = vector.shape_cast %177 : vector<32x8xbf16> to vector<2x16x8xbf16>
    %179 = vector.extract_strided_slice %176 {offsets = [0, 8], sizes = [32, 8], strides = [1, 1]} : vector<32x96xbf16> to vector<32x8xbf16>
    %180 = vector.shape_cast %179 : vector<32x8xbf16> to vector<2x16x8xbf16>
    %181 = vector.extract_strided_slice %176 {offsets = [0, 16], sizes = [32, 8], strides = [1, 1]} : vector<32x96xbf16> to vector<32x8xbf16>
    %182 = vector.shape_cast %181 : vector<32x8xbf16> to vector<2x16x8xbf16>
    %183 = vector.extract_strided_slice %176 {offsets = [0, 24], sizes = [32, 8], strides = [1, 1]} : vector<32x96xbf16> to vector<32x8xbf16>
    %184 = vector.shape_cast %183 : vector<32x8xbf16> to vector<2x16x8xbf16>
    %185 = tpu.concatenate %178, %180, %182, %184 in 0 : vector<2x16x8xbf16>, vector<2x16x8xbf16>, vector<2x16x8xbf16>, vector<2x16x8xbf16> -> vector<8x16x8xbf16>
    %186 = vector.extract_strided_slice %176 {offsets = [0, 32], sizes = [32, 8], strides = [1, 1]} : vector<32x96xbf16> to vector<32x8xbf16>
    %187 = vector.shape_cast %186 : vector<32x8xbf16> to vector<2x16x8xbf16>
    %188 = vector.extract_strided_slice %176 {offsets = [0, 40], sizes = [32, 8], strides = [1, 1]} : vector<32x96xbf16> to vector<32x8xbf16>
    %189 = vector.shape_cast %188 : vector<32x8xbf16> to vector<2x16x8xbf16>
    %190 = vector.extract_strided_slice %176 {offsets = [0, 48], sizes = [32, 8], strides = [1, 1]} : vector<32x96xbf16> to vector<32x8xbf16>
    %191 = vector.shape_cast %190 : vector<32x8xbf16> to vector<2x16x8xbf16>
    %192 = vector.extract_strided_slice %176 {offsets = [0, 56], sizes = [32, 8], strides = [1, 1]} : vector<32x96xbf16> to vector<32x8xbf16>
    %193 = vector.shape_cast %192 : vector<32x8xbf16> to vector<2x16x8xbf16>
    %194 = tpu.concatenate %187, %189, %191, %193 in 0 : vector<2x16x8xbf16>, vector<2x16x8xbf16>, vector<2x16x8xbf16>, vector<2x16x8xbf16> -> vector<8x16x8xbf16>
    %195 = vector.extract_strided_slice %176 {offsets = [0, 64], sizes = [32, 8], strides = [1, 1]} : vector<32x96xbf16> to vector<32x8xbf16>
    %196 = vector.shape_cast %195 : vector<32x8xbf16> to vector<2x16x8xbf16>
    %197 = vector.extract_strided_slice %176 {offsets = [0, 72], sizes = [32, 8], strides = [1, 1]} : vector<32x96xbf16> to vector<32x8xbf16>
    %198 = vector.shape_cast %197 : vector<32x8xbf16> to vector<2x16x8xbf16>
    %199 = vector.extract_strided_slice %176 {offsets = [0, 80], sizes = [32, 8], strides = [1, 1]} : vector<32x96xbf16> to vector<32x8xbf16>
    %200 = vector.shape_cast %199 : vector<32x8xbf16> to vector<2x16x8xbf16>
    %201 = vector.extract_strided_slice %176 {offsets = [0, 88], sizes = [32, 8], strides = [1, 1]} : vector<32x96xbf16> to vector<32x8xbf16>
    %202 = vector.shape_cast %201 : vector<32x8xbf16> to vector<2x16x8xbf16>
    %203 = tpu.concatenate %196, %198, %200, %202 in 0 : vector<2x16x8xbf16>, vector<2x16x8xbf16>, vector<2x16x8xbf16>, vector<2x16x8xbf16> -> vector<8x16x8xbf16>
    "tpu.trace_start"() <{level = 10 : i32, message = "gqd,gkd->gqk"}> : () -> ()
    %cst_69 = arith.constant dense<0.000000e+00> : vector<8x16x16xf32>
    %204 = tpu.matmul %185, %194, %cst_69 {dimension_numbers = #tpu.dot_dimension_numbers<[2], [2], [1], [1], [0, 0, 0, 1, 1, 1], [0], [0]>} : vector<8x16x8xbf16>, vector<8x16x8xbf16>, vector<8x16x16xf32> -> vector<8x16x16xf32>
    "tpu.trace_stop"() : () -> ()
    %cst_70 = arith.constant dense<0xFF800000> : vector<8x16xf32>
    %205 = vector.multi_reduction <maximumf>, %204, %cst_70 [2] : vector<8x16x16xf32> to vector<8x16xf32>
    %206 = vector.shape_cast %205 : vector<8x16xf32> to vector<8x16x1xf32>
    %207 = vector.broadcast %206 : vector<8x16x1xf32> to vector<8x16x16xf32>
    %208 = arith.subf %204, %207 : vector<8x16x16xf32>
    %209 = math.exp %208 : vector<8x16x16xf32>
    %cst_71 = arith.constant dense<0.000000e+00> : vector<8x16xf32>
    %210 = vector.multi_reduction <add>, %209, %cst_71 [2] : vector<8x16x16xf32> to vector<8x16xf32>
    %211 = vector.shape_cast %210 : vector<8x16xf32> to vector<8x16x1xf32>
    %212 = tpu.reciprocal %211 {approx = true} : vector<8x16x1xf32> -> vector<8x16x1xf32>
    %213 = vector.broadcast %212 : vector<8x16x1xf32> to vector<8x16x16xf32>
    %214 = arith.mulf %209, %213 : vector<8x16x16xf32>
    %215 = arith.truncf %214 : vector<8x16x16xf32> to vector<8x16x16xbf16>
    "tpu.trace_start"() <{level = 10 : i32, message = "gqk,gkd->gqd"}> : () -> ()
    %cst_72 = arith.constant dense<0.000000e+00> : vector<8x16x8xf32>
    %216 = tpu.matmul %215, %203, %cst_72 {dimension_numbers = #tpu.dot_dimension_numbers<[2], [1], [1], [2], [0, 0, 0, 1, 1, 2], [0], [0]>} : vector<8x16x16xbf16>, vector<8x16x8xbf16>, vector<8x16x8xf32> -> vector<8x16x8xf32>
    "tpu.trace_stop"() : () -> ()
    %217 = vector.extract_strided_slice %216 {offsets = [0, 0, 0], sizes = [2, 16, 8], strides = [1, 1, 1]} : vector<8x16x8xf32> to vector<2x16x8xf32>
    %218 = vector.shape_cast %217 : vector<2x16x8xf32> to vector<32x8xf32>
    %219 = vector.extract_strided_slice %216 {offsets = [2, 0, 0], sizes = [2, 16, 8], strides = [1, 1, 1]} : vector<8x16x8xf32> to vector<2x16x8xf32>
    %220 = vector.shape_cast %219 : vector<2x16x8xf32> to vector<32x8xf32>
    %221 = vector.extract_strided_slice %216 {offsets = [4, 0, 0], sizes = [2, 16, 8], strides = [1, 1, 1]} : vector<8x16x8xf32> to vector<2x16x8xf32>
    %222 = vector.shape_cast %221 : vector<2x16x8xf32> to vector<32x8xf32>
    %223 = vector.extract_strided_slice %216 {offsets = [6, 0, 0], sizes = [2, 16, 8], strides = [1, 1, 1]} : vector<8x16x8xf32> to vector<2x16x8xf32>
    %224 = vector.shape_cast %223 : vector<2x16x8xf32> to vector<32x8xf32>
    %225 = tpu.concatenate %218, %220, %222, %224 in 1 : vector<32x8xf32>, vector<32x8xf32>, vector<32x8xf32>, vector<32x8xf32> -> vector<32x32xf32>
    %226 = arith.truncf %225 : vector<32x32xf32> to vector<32x32xbf16>
    %c1_73 = arith.constant 1 : index
    %c0_74 = arith.constant 0 : index
    %c0_75 = arith.constant 0 : index
    %227 = vector.load %arg4[%c1_73, %c0_74, %c0_75] : memref<2x32x32xbf16, #tpu.memory_space<vmem>>, vector<1x32x32xbf16>
    %228 = vector.shape_cast %227 : vector<1x32x32xbf16> to vector<32x32xbf16>
    %cst_76 = arith.constant dense<0.000000e+00> : vector<32x32xf32>
    %229 = tpu.matmul %226, %228, %cst_76 {dimension_numbers = #tpu.dot_dimension_numbers<[1], [0], [0], [1], [0, 0, 1, 1], [], []>} : vector<32x32xbf16>, vector<32x32xbf16>, vector<32x32xf32> -> vector<32x32xf32>
    %230 = arith.addf %145, %229 : vector<32x32xf32>
    %c1_77 = arith.constant 1 : index
    %c0_78 = arith.constant 0 : index
    %c0_79 = arith.constant 0 : index
    %231 = vector.load %arg5[%c1_77, %c0_78, %c0_79] : memref<2x1x32xf32, #tpu.memory_space<vmem>>, vector<1x1x32xf32>
    %232 = vector.shape_cast %231 : vector<1x1x32xf32> to vector<1x32xf32>
    %233 = vector.broadcast %232 : vector<1x32xf32> to vector<32x32xf32>
    %234 = arith.addf %230, %233 : vector<32x32xf32>
    %c1_80 = arith.constant 1 : index
    %c0_81 = arith.constant 0 : index
    %c0_82 = arith.constant 0 : index
    %235 = vector.load %arg6[%c1_80, %c0_81, %c0_82] : memref<2x1x32xf32, #tpu.memory_space<vmem>>, vector<1x1x32xf32>
    %236 = vector.shape_cast %235 : vector<1x1x32xf32> to vector<1x32xf32>
    %c1_83 = arith.constant 1 : index
    %c0_84 = arith.constant 0 : index
    %c0_85 = arith.constant 0 : index
    %237 = vector.load %arg7[%c1_83, %c0_84, %c0_85] : memref<2x1x32xf32, #tpu.memory_space<vmem>>, vector<1x1x32xf32>
    %238 = vector.shape_cast %237 : vector<1x1x32xf32> to vector<1x32xf32>
    %cst_86 = arith.constant dense<0.000000e+00> : vector<32xf32>
    %239 = vector.multi_reduction <add>, %234, %cst_86 [1] : vector<32x32xf32> to vector<32xf32>
    %240 = vector.shape_cast %239 : vector<32xf32> to vector<32x1xf32>
    %cst_87 = arith.constant 3.200000e+01 : f32
    %241 = vector.broadcast %cst_87 : f32 to vector<32x1xf32>
    %242 = arith.divf %240, %241 : vector<32x1xf32>
    %243 = vector.broadcast %242 : vector<32x1xf32> to vector<32x32xf32>
    %244 = arith.subf %234, %243 : vector<32x32xf32>
    %245 = arith.mulf %244, %244 : vector<32x32xf32>
    %cst_88 = arith.constant dense<0.000000e+00> : vector<32xf32>
    %246 = vector.multi_reduction <add>, %245, %cst_88 [1] : vector<32x32xf32> to vector<32xf32>
    %247 = vector.shape_cast %246 : vector<32xf32> to vector<32x1xf32>
    %cst_89 = arith.constant 3.200000e+01 : f32
    %248 = vector.broadcast %cst_89 : f32 to vector<32x1xf32>
    %249 = arith.divf %247, %248 : vector<32x1xf32>
    %250 = vector.broadcast %242 : vector<32x1xf32> to vector<32x32xf32>
    %251 = arith.subf %234, %250 : vector<32x32xf32>
    %cst_90 = arith.constant 9.99999974E-6 : f32
    %252 = vector.broadcast %cst_90 : f32 to vector<32x1xf32>
    %253 = arith.addf %249, %252 : vector<32x1xf32>
    %254 = math.rsqrt %253 : vector<32x1xf32>
    %255 = vector.broadcast %254 : vector<32x1xf32> to vector<32x32xf32>
    %256 = arith.mulf %251, %255 : vector<32x32xf32>
    %257 = vector.broadcast %236 : vector<1x32xf32> to vector<32x32xf32>
    %258 = arith.mulf %256, %257 : vector<32x32xf32>
    %259 = vector.broadcast %238 : vector<1x32xf32> to vector<32x32xf32>
    %260 = arith.addf %258, %259 : vector<32x32xf32>
    %261 = arith.truncf %260 : vector<32x32xf32> to vector<32x32xbf16>
    %c1_91 = arith.constant 1 : index
    %c0_92 = arith.constant 0 : index
    %c0_93 = arith.constant 0 : index
    %262 = vector.load %arg8[%c1_91, %c0_92, %c0_93] : memref<2x32x128xbf16, #tpu.memory_space<vmem>>, vector<1x32x128xbf16>
    %263 = vector.shape_cast %262 : vector<1x32x128xbf16> to vector<32x128xbf16>
    %cst_94 = arith.constant dense<0.000000e+00> : vector<32x128xf32>
    %264 = tpu.matmul %261, %263, %cst_94 {dimension_numbers = #tpu.dot_dimension_numbers<[1], [0], [0], [1], [0, 0, 1, 1], [], []>} : vector<32x32xbf16>, vector<32x128xbf16>, vector<32x128xf32> -> vector<32x128xf32>
    %c1_95 = arith.constant 1 : index
    %c0_96 = arith.constant 0 : index
    %c0_97 = arith.constant 0 : index
    %265 = vector.load %arg9[%c1_95, %c0_96, %c0_97] : memref<2x1x128xf32, #tpu.memory_space<vmem>>, vector<1x1x128xf32>
    %266 = vector.shape_cast %265 : vector<1x1x128xf32> to vector<1x128xf32>
    %267 = vector.broadcast %266 : vector<1x128xf32> to vector<32x128xf32>
    %268 = arith.addf %264, %267 : vector<32x128xf32>
    %cst_98 = arith.constant 5.000000e-01 : f32
    %269 = vector.broadcast %cst_98 : f32 to vector<32x128xf32>
    %270 = arith.mulf %269, %268 : vector<32x128xf32>
    %cst_99 = arith.constant 4.471500e-02 : f32
    %271 = vector.broadcast %cst_99 : f32 to vector<32x128xf32>
    %272 = arith.mulf %271, %268 : vector<32x128xf32>
    %273 = arith.mulf %272, %268 : vector<32x128xf32>
    %274 = arith.mulf %273, %268 : vector<32x128xf32>
    %275 = arith.addf %268, %274 : vector<32x128xf32>
    %cst_100 = arith.constant 0.797884583 : f32
    %276 = vector.broadcast %cst_100 : f32 to vector<32x128xf32>
    %277 = arith.mulf %276, %275 : vector<32x128xf32>
    %278 = math.tanh %277 : vector<32x128xf32>
    %cst_101 = arith.constant 1.000000e+00 : f32
    %279 = vector.broadcast %cst_101 : f32 to vector<32x128xf32>
    %280 = arith.addf %279, %278 : vector<32x128xf32>
    %281 = arith.mulf %270, %280 : vector<32x128xf32>
    %282 = arith.truncf %281 : vector<32x128xf32> to vector<32x128xbf16>
    %c1_102 = arith.constant 1 : index
    %c0_103 = arith.constant 0 : index
    %c0_104 = arith.constant 0 : index
    %283 = vector.load %arg10[%c1_102, %c0_103, %c0_104] : memref<2x128x32xbf16, #tpu.memory_space<vmem>>, vector<1x128x32xbf16>
    %284 = vector.shape_cast %283 : vector<1x128x32xbf16> to vector<128x32xbf16>
    %cst_105 = arith.constant dense<0.000000e+00> : vector<32x32xf32>
    %285 = tpu.matmul %282, %284, %cst_105 {dimension_numbers = #tpu.dot_dimension_numbers<[1], [0], [0], [1], [0, 0, 1, 1], [], []>} : vector<32x128xbf16>, vector<128x32xbf16>, vector<32x32xf32> -> vector<32x32xf32>
    %c1_106 = arith.constant 1 : index
    %c0_107 = arith.constant 0 : index
    %c0_108 = arith.constant 0 : index
    %286 = vector.load %arg11[%c1_106, %c0_107, %c0_108] : memref<2x1x32xf32, #tpu.memory_space<vmem>>, vector<1x1x32xf32>
    %287 = vector.shape_cast %286 : vector<1x1x32xf32> to vector<1x32xf32>
    %288 = vector.broadcast %287 : vector<1x32xf32> to vector<32x32xf32>
    %289 = arith.addf %285, %288 : vector<32x32xf32>
    %290 = arith.addf %234, %289 : vector<32x32xf32>
    %c0_109 = arith.constant 0 : index
    %c0_110 = arith.constant 0 : index
    %291 = vector.load %arg12[%c0_109, %c0_110] : memref<32x32xf32, #tpu.memory_space<vmem>>, vector<32x32xf32>
    tpu.vector_store %arg12[%c0_109, %c0_110], %290 {strides = array<i32>} : memref<32x32xf32, #tpu.memory_space<vmem>>, vector<32x32xf32>,
    return
  }
}

</mosaic_0001>

<llo_original>
// kernel: tpu_custom_call.1
$region0: #{tpu_custom_call.1}
  #allocation0 [shape = 'u32[]', space=smem, size = 0x4, offset = 0x4, fixed_abs, tag = 'smem constant byte address 0x4 - core index']
  #allocation1 [shape = 'u32[144,128]{1,0:T(1,128)}', space=vmem, size = 0x12000, scoped, tag = 'internal scratch']
  %s0 = inlined_call_operand.vmem [shape: f32[32,32], index: 0, kind: input, shape index: {}]
  %s1 = inlined_call_operand.vmem [shape: f32[2,1,32], index: 1, kind: input, shape index: {}]
  %s2 = inlined_call_operand.vmem [shape: f32[2,1,32], index: 2, kind: input, shape index: {}]
  %s3 = inlined_call_operand.vmem [shape: bf16[2,32,96], index: 3, kind: input, shape index: {}]
  %s4 = inlined_call_operand.vmem [shape: bf16[2,32,32], index: 4, kind: input, shape index: {}]
  %s5 = inlined_call_operand.vmem [shape: f32[2,1,32], index: 5, kind: input, shape index: {}]
  %s6 = inlined_call_operand.vmem [shape: f32[2,1,32], index: 6, kind: input, shape index: {}]
  %s7 = inlined_call_operand.vmem [shape: f32[2,1,32], index: 7, kind: input, shape index: {}]
  %s8 = inlined_call_operand.vmem [shape: bf16[2,32,128], index: 8, kind: input, shape index: {}]
  %s9 = inlined_call_operand.vmem [shape: f32[2,1,128], index: 9, kind: input, shape index: {}]
  %s10 = inlined_call_operand.vmem [shape: bf16[2,128,32], index: 10, kind: input, shape index: {}]
  %s11 = inlined_call_operand.vmem [shape: f32[2,1,32], index: 11, kind: input, shape index: {}]
  %s12 = inlined_call_operand.hbm [shape: f32[32,32], index: 12, kind: output, shape index: {}]
  %s13 = sld [smem:[#allocation0]]
  $region58: #{tpu_custom_call.1} parent=0
    _
  %s15 = ssub.s32 1, %s13
  %s16 = scalar_select 0, %s15, %s13
  $region1: #{tpu_custom_call.1} parent=0
    #allocation2 [shape = 'u8[16384]{0}', space=vmem, size = 0x4000, scoped, tag = 'output window, operand 0, single buffered']
    #allocation3 [shape = 's32[1]{0}', space=sflag, size = 0x4, scoped, tag = 'scoped memory for tpu_custom_call.1']
    %17 = vsyncpa [#allocation3], 0
    // Predicated region
    $region2: #{tpu_custom_call.1} parent=1 // pred_check
      _
    $region3: #{tpu_custom_call.1} parent=1 // pred_check_branch
      %19 = sbr.rel (0) target = $region5
    $region4: #{tpu_custom_call.1} parent=1 // pred_region
      _
    $region5: #{tpu_custom_call.1} parent=1 // pred_fallthru
      _
    // Predicated region
    $region6: #{tpu_custom_call.1} parent=1 // pred_check
      _
    $region7: #{tpu_custom_call.1} parent=1 // pred_check_branch
      %21 = sbr.rel (0) target = $region9
    $region8: #{tpu_custom_call.1} parent=1 // pred_region
      _
    $region9: #{tpu_custom_call.1} parent=1 // pred_fallthru
      _
    // Predicated region
    $region10: #{tpu_custom_call.1} parent=1 // pred_check
      _
    $region11: #{tpu_custom_call.1} parent=1 // pred_check_branch
      %23 = sbr.rel (0) target = $region13
    $region12: #{tpu_custom_call.1} parent=1 // pred_region
      _
    $region13: #{tpu_custom_call.1} parent=1 // pred_fallthru
      _
    // Predicated region
    $region14: #{tpu_custom_call.1} parent=1 // pred_check
      _
    $region15: #{tpu_custom_call.1} parent=1 // pred_check_branch
      %25 = sbr.rel (0) target = $region17
    $region16: #{tpu_custom_call.1} parent=1 // pred_region
      _
    $region17: #{tpu_custom_call.1} parent=1 // pred_fallthru
      _
    // Predicated region
    $region18: #{tpu_custom_call.1} parent=1 // pred_check
      _
    $region19: #{tpu_custom_call.1} parent=1 // pred_check_branch
      %27 = sbr.rel (0) target = $region21
    $region20: #{tpu_custom_call.1} parent=1 // pred_region
      _
    $region21: #{tpu_custom_call.1} parent=1 // pred_fallthru
      _
    // Predicated region
    $region22: #{tpu_custom_call.1} parent=1 // pred_check
      _
    $region23: #{tpu_custom_call.1} parent=1 // pred_check_branch
      %29 = sbr.rel (0) target = $region25
    $region24: #{tpu_custom_call.1} parent=1 // pred_region
      _
    $region25: #{tpu_custom_call.1} parent=1 // pred_fallthru
      _
    // Predicated region
    $region26: #{tpu_custom_call.1} parent=1 // pred_check
      _
    $region27: #{tpu_custom_call.1} parent=1 // pred_check_branch
      %31 = sbr.rel (0) target = $region29
    $region28: #{tpu_custom_call.1} parent=1 // pred_region
      _
    $region29: #{tpu_custom_call.1} parent=1 // pred_fallthru
      _
    // Predicated region
    $region30: #{tpu_custom_call.1} parent=1 // pred_check
      _
    $region31: #{tpu_custom_call.1} parent=1 // pred_check_branch
      %33 = sbr.rel (0) target = $region33
    $region32: #{tpu_custom_call.1} parent=1 // pred_region
      _
    $region33: #{tpu_custom_call.1} parent=1 // pred_fallthru
      _
    // Predicated region
    $region34: #{tpu_custom_call.1} parent=1 // pred_check
      _
    $region35: #{tpu_custom_call.1} parent=1 // pred_check_branch
      %35 = sbr.rel (0) target = $region37
    $region36: #{tpu_custom_call.1} parent=1 // pred_region
      _
    $region37: #{tpu_custom_call.1} parent=1 // pred_fallthru
      _
    // Predicated region
    $region38: #{tpu_custom_call.1} parent=1 // pred_check
      _
    $region39: #{tpu_custom_call.1} parent=1 // pred_check_branch
      %37 = sbr.rel (0) target = $region41
    $region40: #{tpu_custom_call.1} parent=1 // pred_region
      _
    $region41: #{tpu_custom_call.1} parent=1 // pred_fallthru
      _
    // Predicated region
    $region42: #{tpu_custom_call.1} parent=1 // pred_check
      _
    $region43: #{tpu_custom_call.1} parent=1 // pred_check_branch
      %39 = sbr.rel (0) target = $region45
    $region44: #{tpu_custom_call.1} parent=1 // pred_region
      _
    $region45: #{tpu_custom_call.1} parent=1 // pred_fallthru
      _
    // Predicated region
    $region46: #{tpu_custom_call.1} parent=1 // pred_check
      _
    $region47: #{tpu_custom_call.1} parent=1 // pred_check_branch
      %41 = sbr.rel (0) target = $region49
    $region48: #{tpu_custom_call.1} parent=1 // pred_region
      _
    $region49: #{tpu_custom_call.1} parent=1 // pred_fallthru
      _
    %v43 = vld [vmem:[%s0] sm:$0xff]
    %v44 = vld [vmem:[%s0 + $0x8] sm:$0xff]
    %v45 = vld [vmem:[%s0 + $0x10] sm:$0xff]
    %v46 = vld [vmem:[%s0 + $0x18] sm:$0xff]
    %v47 = vld [vmem:[%s1] sm:$0x1]
    %v48 = vld [vmem:[%s2] sm:$0x1]
    %vm49 = vcmask 261120
    %v50 = vsel %vm49, %v43, 0.0
    %51 = vadd.xlane.f32.xlu0 %v50
    %v52 = vpop.xlane.xlu0 %51
    %v53 = vsel %vm49, %v44, 0.0
    %54 = vadd.xlane.f32.xlu0 %v53
    %v55 = vpop.xlane.xlu0 %54
    %v56 = vsel %vm49, %v45, 0.0
    %57 = vadd.xlane.f32.xlu0 %v56
    %v58 = vpop.xlane.xlu0 %57
    %v59 = vsel %vm49, %v46, 0.0
    %60 = vadd.xlane.f32.xlu0 %v59
    %v61 = vpop.xlane.xlu0 %60
    %v62 = vrcp.pop 32.0
    %v63 = vmul.f32 %v52, %v62
    %v64 = vmul.f32 %v55, %v62
    %v65 = vmul.f32 %v58, %v62
    %v66 = vmul.f32 %v61, %v62
    %v67 = vsub.f32 %v43, %v63
    %v68 = vsub.f32 %v44, %v64
    %v69 = vsub.f32 %v45, %v65
    %v70 = vsub.f32 %v46, %v66
    %v71 = vmul.f32 %v67, %v67
    %v72 = vmul.f32 %v68, %v68
    %v73 = vmul.f32 %v69, %v69
    %v74 = vmul.f32 %v70, %v70
    %v75 = vsel %vm49, %v71, 0.0
    %76 = vadd.xlane.f32.xlu0 %v75
    %v77 = vpop.xlane.xlu0 %76
    %v78 = vsel %vm49, %v72, 0.0
    %79 = vadd.xlane.f32.xlu0 %v78
    %v80 = vpop.xlane.xlu0 %79
    %v81 = vsel %vm49, %v73, 0.0
    %82 = vadd.xlane.f32.xlu0 %v81
    %v83 = vpop.xlane.xlu0 %82
    %v84 = vsel %vm49, %v74, 0.0
    %85 = vadd.xlane.f32.xlu0 %v84
    %v86 = vpop.xlane.xlu0 %85
    %v87 = vmul.f32 %v77, %v62
    %v88 = vmul.f32 %v80, %v62
    %v89 = vmul.f32 %v83, %v62
    %v90 = vmul.f32 %v86, %v62
    %v91 = vadd.f32 %v87, 1e-05
    %v92 = vadd.f32 %v88, 1e-05
    %v93 = vadd.f32 %v89, 1e-05
    %v94 = vadd.f32 %v90, 1e-05
    %v95 = vrsqrt.pop %v91
    %v96 = vrsqrt.pop %v92
    %v97 = vrsqrt.pop %v93
    %v98 = vrsqrt.pop %v94
    %v99 = vmul.f32 %v67, %v95
    %v100 = vmul.f32 %v68, %v96
    %v101 = vmul.f32 %v69, %v97
    %v102 = vmul.f32 %v70, %v98
    %v104 = vlaneseq
    %v105 = vshrl.u32 %v104, 7
    %v106 = vsub.s32 0, %v105
    %v107 = vrot.slane %v47, %v106
    %v109 = vmul.f32 %v99, %v107
    %v110 = vmul.f32 %v100, %v107
    %v111 = vmul.f32 %v101, %v107
    %v112 = vmul.f32 %v102, %v107
    %v114 = vlaneseq
    %v115 = vshrl.u32 %v114, 7
    %v116 = vsub.s32 0, %v115
    %v117 = vrot.slane %v48, %v116
    %v119 = vadd.f32 %v109, %v117
    %v120 = vadd.f32 %v110, %v117
    %v121 = vadd.f32 %v111, %v117
    %v122 = vadd.f32 %v112, %v117
    %v123 = vpack.c.bf16 %v120, %v119
    %v124 = vpack.c.bf16 %v122, %v121
    %v125 = vld [vmem:[%s3] sm:$0xf]
    %v126 = vld [vmem:[%s3 + $0x4] sm:$0xf]
    %v127 = vld [vmem:[%s3 + $0x8] sm:$0xf]
    %v128 = vld [vmem:[%s3 + $0xc] sm:$0xf]
    %v133 = vunpack.c.l.b16 %v125
    %v134 = vunpack.c.l.b16 %v126
    %v135 = vunpack.c.l.b16 %v127
    %v136 = vunpack.c.l.b16 %v128
    %v137 = vpack.c.b16 %v134, %v133
    %v138 = vpack.c.b16 %v136, %v135
    %v142 = vsel %vm49, %v123, 0
    %v145 = vsel %vm49, %v124, 0
    %147 = vmatprep.subr.bf16.mxu0 0
    %148 = vmatpush1.bf16.msra.mxu0 0
    %149 = vmatprep.subr.bf16.mxu0 0
    %150 = vmatpush1.bf16.msra.mxu0 0
    %151 = vmatprep.subr.bf16.mxu0 0
    %152 = vmatpush1.bf16.msra.mxu0 0
    %153 = vmatprep.subr.bf16.mxu0 0
    %154 = vmatpush1.bf16.msra.mxu0 0
    %155 = vmatprep.subr.bf16.mxu0 0
    %156 = vmatpush1.bf16.msra.mxu0 0
    %157 = vmatprep.subr.bf16.mxu0 0
    %158 = vmatpush1.bf16.msra.mxu0 0
    %159 = vmatprep.subr.bf16.mxu0 0
    %160 = vmatpush1.bf16.msra.mxu0 %v138
    %161 = vmatprep.subr.bf16.mxu0 0
    %162 = vmatpush1.bf16.msra.mxu0 %v137
    %163 = vmatprep.subr.bf16.mxu0 0
    %164 = vmatpush2.bf16.msra.mxu0 0
    %165 = vmatprep.subr.bf16.mxu0 0
    %166 = vmatpush2.bf16.msra.mxu0 0
    %167 = vmatprep.subr.bf16.mxu0 0
    %168 = vmatpush2.bf16.msra.mxu0 0
    %169 = vmatprep.subr.bf16.mxu0 0
    %170 = vmatpush2.bf16.msra.mxu0 0
    %171 = vmatprep.subr.bf16.mxu0 0
    %172 = vmatpush2.bf16.msra.mxu0 0
    %173 = vmatprep.subr.bf16.mxu0 0
    %174 = vmatpush2.bf16.msra.mxu0 0
    %175 = vmatprep.subr.bf16.mxu0 0
    %176 = vmatpush2.bf16.msra.mxu0 0
    %177 = vmatprep.subr.bf16.mxu0 0
    %178 = vmatpush2.bf16.msra.mxu0 0
    %179 = vmatprep.mubr.bf16.mxu0 0
    %180 = vmatmul.mubr.bf16.gmra.mxu0 %v142
    %v181 = vpop.f32.mrf.mxu0
    %v182 = vadd.f32 0.0, %v181
    %v183 = vpop.f32.mrf.mxu0
    %v184 = vpop.f32.mrf.mxu0
    %v185 = vadd.f32 0.0, %v184
    %v186 = vpop.f32.mrf.mxu0
    %187 = vmatprep.mubr.bf16.mxu0 0
    %188 = vmatmul.mubr.bf16.gmra.mxu0 %v145
    %v189 = vpop.f32.mrf.mxu0
    %v190 = vadd.f32 0.0, %v189
    %v191 = vpop.f32.mrf.mxu0
    %v192 = vpop.f32.mrf.mxu0
    %v193 = vadd.f32 0.0, %v192
    %v194 = vpop.f32.mrf.mxu0
    %195 = vdwg.mxu0
    %v196 = vpack.c.bf16 %v185, %v182
    %v197 = vpack.c.bf16 %v193, %v190
    %200 = vrot.lane.b32.xlu0 %v196, 120
    %v201 = vpop.permute.xlu0 %200
    %202 = vrot.lane.b32.xlu0 %v197, 120
    %v203 = vpop.permute.xlu0 %202
    %204 = vrot.lane.b32.xlu0 %v196, 112
    %v205 = vpop.permute.xlu0 %204
    %206 = vrot.lane.b32.xlu0 %v197, 112
    %v207 = vpop.permute.xlu0 %206
    %208 = vrot.lane.b32.xlu0 %v196, 104
    %v209 = vpop.permute.xlu0 %208
    %210 = vrot.lane.b32.xlu0 %v197, 104
    %v211 = vpop.permute.xlu0 %210
    %212 = vrot.lane.b32.xlu0 %v196, 96
    %v213 = vpop.permute.xlu0 %212
    %vm214 = vcmask 64512
    %v216 = vsel %vm214, %v196, 0
    %v219 = vsel %vm214, %v213, 0
    %221 = vmatprep.subr.bf16.mxu0 0
    %222 = vmatpush1.bf16.xpose.msra.mxu0 0
    %223 = vmatprep.subr.bf16.mxu0 0
    %224 = vmatpush1.bf16.xpose.msra.mxu0 0
    %225 = vmatprep.subr.bf16.mxu0 0
    %226 = vmatpush1.bf16.xpose.msra.mxu0 0
    %227 = vmatprep.subr.bf16.mxu0 0
    %228 = vmatpush1.bf16.xpose.msra.mxu0 0
    %229 = vmatprep.subr.bf16.mxu0 0
    %230 = vmatpush1.bf16.xpose.msra.mxu0 0
    %231 = vmatprep.subr.bf16.mxu0 0
    %232 = vmatpush1.bf16.xpose.msra.mxu0 0
    %233 = vmatprep.subr.bf16.mxu0 0
    %234 = vmatpush1.bf16.xpose.msra.mxu0 0
    %235 = vmatprep.subr.bf16.mxu0 0
    %236 = vmatpush1.bf16.xpose.msra.mxu0 %v219
    %237 = vmatprep.subr.bf16.mxu0 0
    %238 = vmatpush2.bf16.xpose.msra.mxu0 0
    %239 = vmatprep.subr.bf16.mxu0 0
    %240 = vmatpush2.bf16.xpose.msra.mxu0 0
    %241 = vmatprep.subr.bf16.mxu0 0
    %242 = vmatpush2.bf16.xpose.msra.mxu0 0
    %243 = vmatprep.subr.bf16.mxu0 0
    %244 = vmatpush2.bf16.xpose.msra.mxu0 0
    %245 = vmatprep.subr.bf16.mxu0 0
    %246 = vmatpush2.bf16.xpose.msra.mxu0 0
    %247 = vmatprep.subr.bf16.mxu0 0
    %248 = vmatpush2.bf16.xpose.msra.mxu0 0
    %249 = vmatprep.subr.bf16.mxu0 0
    %250 = vmatpush2.bf16.xpose.msra.mxu0 0
    %251 = vmatprep.subr.bf16.mxu0 0
    %252 = vmatpush2.bf16.xpose.msra.mxu0 0
    %253 = vmatprep.mubr.bf16.mxu0 0
    %254 = vmatmul.mubr.bf16.gmra.mxu0 %v216
    %v255 = vpop.f32.mrf.mxu0
    %v256 = vadd.f32 0.0, %v255
    %v257 = vpop.f32.mrf.mxu0
    %v258 = vpop.f32.mrf.mxu0
    %v259 = vadd.f32 0.0, %v258
    %v260 = vpop.f32.mrf.mxu0
    %261 = vdwg.mxu0
    %262 = vrot.lane.b32.xlu0 %v197, 96
    %v263 = vpop.permute.xlu0 %262
    %v265 = vsel %vm214, %v197, 0
    %v268 = vsel %vm214, %v263, 0
    %270 = vmatprep.subr.bf16.mxu0 0
    %271 = vmatpush1.bf16.xpose.msra.mxu0 0
    %272 = vmatprep.subr.bf16.mxu0 0
    %273 = vmatpush1.bf16.xpose.msra.mxu0 0
    %274 = vmatprep.subr.bf16.mxu0 0
    %275 = vmatpush1.bf16.xpose.msra.mxu0 0
    %276 = vmatprep.subr.bf16.mxu0 0
    %277 = vmatpush1.bf16.xpose.msra.mxu0 0
    %278 = vmatprep.subr.bf16.mxu0 0
    %279 = vmatpush1.bf16.xpose.msra.mxu0 0
    %280 = vmatprep.subr.bf16.mxu0 0
    %281 = vmatpush1.bf16.xpose.msra.mxu0 0
    %282 = vmatprep.subr.bf16.mxu0 0
    %283 = vmatpush1.bf16.xpose.msra.mxu0 0
    %284 = vmatprep.subr.bf16.mxu0 0
    %285 = vmatpush1.bf16.xpose.msra.mxu0 %v268
    %286 = vmatprep.subr.bf16.mxu0 0
    %287 = vmatpush2.bf16.xpose.msra.mxu0 0
    %288 = vmatprep.subr.bf16.mxu0 0
    %289 = vmatpush2.bf16.xpose.msra.mxu0 0
    %290 = vmatprep.subr.bf16.mxu0 0
    %291 = vmatpush2.bf16.xpose.msra.mxu0 0
    %292 = vmatprep.subr.bf16.mxu0 0
    %293 = vmatpush2.bf16.xpose.msra.mxu0 0
    %294 = vmatprep.subr.bf16.mxu0 0
    %295 = vmatpush2.bf16.xpose.msra.mxu0 0
    %296 = vmatprep.subr.bf16.mxu0 0
    %297 = vmatpush2.bf16.xpose.msra.mxu0 0
    %298 = vmatprep.subr.bf16.mxu0 0
    %299 = vmatpush2.bf16.xpose.msra.mxu0 0
    %300 = vmatprep.subr.bf16.mxu0 0
    %301 = vmatpush2.bf16.xpose.msra.mxu0 0
    %302 = vmatprep.mubr.bf16.mxu0 0
    %303 = vmatmul.mubr.bf16.gmra.mxu0 %v265
    %v304 = vpop.f32.mrf.mxu0
    %v305 = vadd.f32 0.0, %v304
    %v306 = vpop.f32.mrf.mxu0
    %v307 = vpop.f32.mrf.mxu0
    %v308 = vadd.f32 0.0, %v307
    %v309 = vpop.f32.mrf.mxu0
    %310 = vdwg.mxu0
    %311 = vrot.lane.b32.xlu0 %v201, 96
    %v312 = vpop.permute.xlu0 %311
    %v314 = vsel %vm214, %v201, 0
    %v317 = vsel %vm214, %v312, 0
    %319 = vmatprep.subr.bf16.mxu0 0
    %320 = vmatpush1.bf16.xpose.msra.mxu0 0
    %321 = vmatprep.subr.bf16.mxu0 0
    %322 = vmatpush1.bf16.xpose.msra.mxu0 0
    %323 = vmatprep.subr.bf16.mxu0 0
    %324 = vmatpush1.bf16.xpose.msra.mxu0 0
    %325 = vmatprep.subr.bf16.mxu0 0
    %326 = vmatpush1.bf16.xpose.msra.mxu0 0
    %327 = vmatprep.subr.bf16.mxu0 0
    %328 = vmatpush1.bf16.xpose.msra.mxu0 0
    %329 = vmatprep.subr.bf16.mxu0 0
    %330 = vmatpush1.bf16.xpose.msra.mxu0 0
    %331 = vmatprep.subr.bf16.mxu0 0
    %332 = vmatpush1.bf16.xpose.msra.mxu0 0
    %333 = vmatprep.subr.bf16.mxu0 0
    %334 = vmatpush1.bf16.xpose.msra.mxu0 %v317
    %335 = vmatprep.subr.bf16.mxu0 0
    %336 = vmatpush2.bf16.xpose.msra.mxu0 0
    %337 = vmatprep.subr.bf16.mxu0 0
    %338 = vmatpush2.bf16.xpose.msra.mxu0 0
    %339 = vmatprep.subr.bf16.mxu0 0
    %340 = vmatpush2.bf16.xpose.msra.mxu0 0
    %341 = vmatprep.subr.bf16.mxu0 0
    %342 = vmatpush2.bf16.xpose.msra.mxu0 0
    %343 = vmatprep.subr.bf16.mxu0 0
    %344 = vmatpush2.bf16.xpose.msra.mxu0 0
    %345 = vmatprep.subr.bf16.mxu0 0
    %346 = vmatpush2.bf16.xpose.msra.mxu0 0
    %347 = vmatprep.subr.bf16.mxu0 0
    %348 = vmatpush2.bf16.xpose.msra.mxu0 0
    %349 = vmatprep.subr.bf16.mxu0 0
    %350 = vmatpush2.bf16.xpose.msra.mxu0 0
    %351 = vmatprep.mubr.bf16.mxu0 0
    %352 = vmatmul.mubr.bf16.gmra.mxu0 %v314
    %v353 = vpop.f32.mrf.mxu0
    %v354 = vadd.f32 0.0, %v353
    %v355 = vpop.f32.mrf.mxu0
    %v356 = vpop.f32.mrf.mxu0
    %v357 = vadd.f32 0.0, %v356
    %v358 = vpop.f32.mrf.mxu0
    %359 = vdwg.mxu0
    %360 = vrot.lane.b32.xlu0 %v203, 96
    %v361 = vpop.permute.xlu0 %360
    %v363 = vsel %vm214, %v203, 0
    %v366 = vsel %vm214, %v361, 0
    %368 = vmatprep.subr.bf16.mxu0 0
    %369 = vmatpush1.bf16.xpose.msra.mxu0 0
    %370 = vmatprep.subr.bf16.mxu0 0
    %371 = vmatpush1.bf16.xpose.msra.mxu0 0
    %372 = vmatprep.subr.bf16.mxu0 0
    %373 = vmatpush1.bf16.xpose.msra.mxu0 0
    %374 = vmatprep.subr.bf16.mxu0 0
    %375 = vmatpush1.bf16.xpose.msra.mxu0 0
    %376 = vmatprep.subr.bf16.mxu0 0
    %377 = vmatpush1.bf16.xpose.msra.mxu0 0
    %378 = vmatprep.subr.bf16.mxu0 0
    %379 = vmatpush1.bf16.xpose.msra.mxu0 0
    %380 = vmatprep.subr.bf16.mxu0 0
    %381 = vmatpush1.bf16.xpose.msra.mxu0 0
    %382 = vmatprep.subr.bf16.mxu0 0
    %383 = vmatpush1.bf16.xpose.msra.mxu0 %v366
    %384 = vmatprep.subr.bf16.mxu0 0
    %385 = vmatpush2.bf16.xpose.msra.mxu0 0
    %386 = vmatprep.subr.bf16.mxu0 0
    %387 = vmatpush2.bf16.xpose.msra.mxu0 0
    %388 = vmatprep.subr.bf16.mxu0 0
    %389 = vmatpush2.bf16.xpose.msra.mxu0 0
    %390 = vmatprep.subr.bf16.mxu0 0
    %391 = vmatpush2.bf16.xpose.msra.mxu0 0
    %392 = vmatprep.subr.bf16.mxu0 0
    %393 = vmatpush2.bf16.xpose.msra.mxu0 0
    %394 = vmatprep.subr.bf16.mxu0 0
    %395 = vmatpush2.bf16.xpose.msra.mxu0 0
    %396 = vmatprep.subr.bf16.mxu0 0
    %397 = vmatpush2.bf16.xpose.msra.mxu0 0
    %398 = vmatprep.subr.bf16.mxu0 0
    %399 = vmatpush2.bf16.xpose.msra.mxu0 0
    %400 = vmatprep.mubr.bf16.mxu0 0
    %401 = vmatmul.mubr.bf16.gmra.mxu0 %v363
    %v402 = vpop.f32.mrf.mxu0
    %v403 = vadd.f32 0.0, %v402
    %v404 = vpop.f32.mrf.mxu0
    %v405 = vpop.f32.mrf.mxu0
    %v406 = vadd.f32 0.0, %v405
    %v407 = vpop.f32.mrf.mxu0
    %408 = vdwg.mxu0
    %409 = vrot.lane.b32.xlu0 %v205, 96
    %v410 = vpop.permute.xlu0 %409
    %v412 = vsel %vm214, %v205, 0
    %v415 = vsel %vm214, %v410, 0
    %417 = vmatprep.subr.bf16.mxu0 0
    %418 = vmatpush1.bf16.xpose.msra.mxu0 0
    %419 = vmatprep.subr.bf16.mxu0 0
    %420 = vmatpush1.bf16.xpose.msra.mxu0 0
    %421 = vmatprep.subr.bf16.mxu0 0
    %422 = vmatpush1.bf16.xpose.msra.mxu0 0
    %423 = vmatprep.subr.bf16.mxu0 0
    %424 = vmatpush1.bf16.xpose.msra.mxu0 0
    %425 = vmatprep.subr.bf16.mxu0 0
    %426 = vmatpush1.bf16.xpose.msra.mxu0 0
    %427 = vmatprep.subr.bf16.mxu0 0
    %428 = vmatpush1.bf16.xpose.msra.mxu0 0
    %429 = vmatprep.subr.bf16.mxu0 0
    %430 = vmatpush1.bf16.xpose.msra.mxu0 0
    %431 = vmatprep.subr.bf16.mxu0 0
    %432 = vmatpush1.bf16.xpose.msra.mxu0 %v415
    %433 = vmatprep.subr.bf16.mxu0 0
    %434 = vmatpush2.bf16.xpose.msra.mxu0 0
    %435 = vmatprep.subr.bf16.mxu0 0
    %436 = vmatpush2.bf16.xpose.msra.mxu0 0
    %437 = vmatprep.subr.bf16.mxu0 0
    %438 = vmatpush2.bf16.xpose.msra.mxu0 0
    %439 = vmatprep.subr.bf16.mxu0 0
    %440 = vmatpush2.bf16.xpose.msra.mxu0 0
    %441 = vmatprep.subr.bf16.mxu0 0
    %442 = vmatpush2.bf16.xpose.msra.mxu0 0
    %443 = vmatprep.subr.bf16.mxu0 0
    %444 = vmatpush2.bf16.xpose.msra.mxu0 0
    %445 = vmatprep.subr.bf16.mxu0 0
    %446 = vmatpush2.bf16.xpose.msra.mxu0 0
    %447 = vmatprep.subr.bf16.mxu0 0
    %448 = vmatpush2.bf16.xpose.msra.mxu0 0
    %449 = vmatprep.mubr.bf16.mxu0 0
    %450 = vmatmul.mubr.bf16.gmra.mxu0 %v412
    %v451 = vpop.f32.mrf.mxu0
    %v452 = vadd.f32 0.0, %v451
    %v453 = vpop.f32.mrf.mxu0
    %v454 = vpop.f32.mrf.mxu0
    %v455 = vadd.f32 0.0, %v454
    %v456 = vpop.f32.mrf.mxu0
    %457 = vdwg.mxu0
    %458 = vrot.lane.b32.xlu0 %v207, 96
    %v459 = vpop.permute.xlu0 %458
    %v461 = vsel %vm214, %v207, 0
    %v464 = vsel %vm214, %v459, 0
    %466 = vmatprep.subr.bf16.mxu0 0
    %467 = vmatpush1.bf16.xpose.msra.mxu0 0
    %468 = vmatprep.subr.bf16.mxu0 0
    %469 = vmatpush1.bf16.xpose.msra.mxu0 0
    %470 = vmatprep.subr.bf16.mxu0 0
    %471 = vmatpush1.bf16.xpose.msra.mxu0 0
    %472 = vmatprep.subr.bf16.mxu0 0
    %473 = vmatpush1.bf16.xpose.msra.mxu0 0
    %474 = vmatprep.subr.bf16.mxu0 0
    %475 = vmatpush1.bf16.xpose.msra.mxu0 0
    %476 = vmatprep.subr.bf16.mxu0 0
    %477 = vmatpush1.bf16.xpose.msra.mxu0 0
    %478 = vmatprep.subr.bf16.mxu0 0
    %479 = vmatpush1.bf16.xpose.msra.mxu0 0
    %480 = vmatprep.subr.bf16.mxu0 0
    %481 = vmatpush1.bf16.xpose.msra.mxu0 %v464
    %482 = vmatprep.subr.bf16.mxu0 0
    %483 = vmatpush2.bf16.xpose.msra.mxu0 0
    %484 = vmatprep.subr.bf16.mxu0 0
    %485 = vmatpush2.bf16.xpose.msra.mxu0 0
    %486 = vmatprep.subr.bf16.mxu0 0
    %487 = vmatpush2.bf16.xpose.msra.mxu0 0
    %488 = vmatprep.subr.bf16.mxu0 0
    %489 = vmatpush2.bf16.xpose.msra.mxu0 0
    %490 = vmatprep.subr.bf16.mxu0 0
    %491 = vmatpush2.bf16.xpose.msra.mxu0 0
    %492 = vmatprep.subr.bf16.mxu0 0
    %493 = vmatpush2.bf16.xpose.msra.mxu0 0
    %494 = vmatprep.subr.bf16.mxu0 0
    %495 = vmatpush2.bf16.xpose.msra.mxu0 0
    %496 = vmatprep.subr.bf16.mxu0 0
    %497 = vmatpush2.bf16.xpose.msra.mxu0 0
    %498 = vmatprep.mubr.bf16.mxu0 0
    %499 = vmatmul.mubr.bf16.gmra.mxu0 %v461
    %v500 = vpop.f32.mrf.mxu0
    %v501 = vadd.f32 0.0, %v500
    %v502 = vpop.f32.mrf.mxu0
    %v503 = vpop.f32.mrf.mxu0
    %v504 = vadd.f32 0.0, %v503
    %v505 = vpop.f32.mrf.mxu0
    %506 = vdwg.mxu0
    %507 = vrot.lane.b32.xlu0 %v209, 96
    %v508 = vpop.permute.xlu0 %507
    %v510 = vsel %vm214, %v209, 0
    %v513 = vsel %vm214, %v508, 0
    %515 = vmatprep.subr.bf16.mxu0 0
    %516 = vmatpush1.bf16.xpose.msra.mxu0 0
    %517 = vmatprep.subr.bf16.mxu0 0
    %518 = vmatpush1.bf16.xpose.msra.mxu0 0
    %519 = vmatprep.subr.bf16.mxu0 0
    %520 = vmatpush1.bf16.xpose.msra.mxu0 0
    %521 = vmatprep.subr.bf16.mxu0 0
    %522 = vmatpush1.bf16.xpose.msra.mxu0 0
    %523 = vmatprep.subr.bf16.mxu0 0
    %524 = vmatpush1.bf16.xpose.msra.mxu0 0
    %525 = vmatprep.subr.bf16.mxu0 0
    %526 = vmatpush1.bf16.xpose.msra.mxu0 0
    %527 = vmatprep.subr.bf16.mxu0 0
    %528 = vmatpush1.bf16.xpose.msra.mxu0 0
    %529 = vmatprep.subr.bf16.mxu0 0
    %530 = vmatpush1.bf16.xpose.msra.mxu0 %v513
    %531 = vmatprep.subr.bf16.mxu0 0
    %532 = vmatpush2.bf16.xpose.msra.mxu0 0
    %533 = vmatprep.subr.bf16.mxu0 0
    %534 = vmatpush2.bf16.xpose.msra.mxu0 0
    %535 = vmatprep.subr.bf16.mxu0 0
    %536 = vmatpush2.bf16.xpose.msra.mxu0 0
    %537 = vmatprep.subr.bf16.mxu0 0
    %538 = vmatpush2.bf16.xpose.msra.mxu0 0
    %539 = vmatprep.subr.bf16.mxu0 0
    %540 = vmatpush2.bf16.xpose.msra.mxu0 0
    %541 = vmatprep.subr.bf16.mxu0 0
    %542 = vmatpush2.bf16.xpose.msra.mxu0 0
    %543 = vmatprep.subr.bf16.mxu0 0
    %544 = vmatpush2.bf16.xpose.msra.mxu0 0
    %545 = vmatprep.subr.bf16.mxu0 0
    %546 = vmatpush2.bf16.xpose.msra.mxu0 0
    %547 = vmatprep.mubr.bf16.mxu0 0
    %548 = vmatmul.mubr.bf16.gmra.mxu0 %v510
    %v549 = vpop.f32.mrf.mxu0
    %v550 = vadd.f32 0.0, %v549
    %v551 = vpop.f32.mrf.mxu0
    %v552 = vpop.f32.mrf.mxu0
    %v553 = vadd.f32 0.0, %v552
    %v554 = vpop.f32.mrf.mxu0
    %555 = vdwg.mxu0
    %556 = vrot.lane.b32.xlu0 %v211, 96
    %v557 = vpop.permute.xlu0 %556
    %v559 = vsel %vm214, %v211, 0
    %v562 = vsel %vm214, %v557, 0
    %564 = vmatprep.subr.bf16.mxu0 0
    %565 = vmatpush1.bf16.xpose.msra.mxu0 0
    %566 = vmatprep.subr.bf16.mxu0 0
    %567 = vmatpush1.bf16.xpose.msra.mxu0 0
    %568 = vmatprep.subr.bf16.mxu0 0
    %569 = vmatpush1.bf16.xpose.msra.mxu0 0
    %570 = vmatprep.subr.bf16.mxu0 0
    %571 = vmatpush1.bf16.xpose.msra.mxu0 0
    %572 = vmatprep.subr.bf16.mxu0 0
    %573 = vmatpush1.bf16.xpose.msra.mxu0 0
    %574 = vmatprep.subr.bf16.mxu0 0
    %575 = vmatpush1.bf16.xpose.msra.mxu0 0
    %576 = vmatprep.subr.bf16.mxu0 0
    %577 = vmatpush1.bf16.xpose.msra.mxu0 0
    %578 = vmatprep.subr.bf16.mxu0 0
    %579 = vmatpush1.bf16.xpose.msra.mxu0 %v562
    %580 = vmatprep.subr.bf16.mxu0 0
    %581 = vmatpush2.bf16.xpose.msra.mxu0 0
    %582 = vmatprep.subr.bf16.mxu0 0
    %583 = vmatpush2.bf16.xpose.msra.mxu0 0
    %584 = vmatprep.subr.bf16.mxu0 0
    %585 = vmatpush2.bf16.xpose.msra.mxu0 0
    %586 = vmatprep.subr.bf16.mxu0 0
    %587 = vmatpush2.bf16.xpose.msra.mxu0 0
    %588 = vmatprep.subr.bf16.mxu0 0
    %589 = vmatpush2.bf16.xpose.msra.mxu0 0
    %590 = vmatprep.subr.bf16.mxu0 0
    %591 = vmatpush2.bf16.xpose.msra.mxu0 0
    %592 = vmatprep.subr.bf16.mxu0 0
    %593 = vmatpush2.bf16.xpose.msra.mxu0 0
    %594 = vmatprep.subr.bf16.mxu0 0
    %595 = vmatpush2.bf16.xpose.msra.mxu0 0
    %596 = vmatprep.mubr.bf16.mxu0 0
    %597 = vmatmul.mubr.bf16.gmra.mxu0 %v559
    %v598 = vpop.f32.mrf.mxu0
    %v599 = vadd.f32 0.0, %v598
    %v600 = vpop.f32.mrf.mxu0
    %v601 = vpop.f32.mrf.mxu0
    %v602 = vadd.f32 0.0, %v601
    %v603 = vpop.f32.mrf.mxu0
    %604 = vdwg.mxu0
    %vm605 = vcmask 130048
    %v606 = vsel %vm605, %v256, -inf
    %607 = vmax.xlane.f32.xlu0 %v606
    %v608 = vpop.xlane.xlu0 %607
    %v609 = vsel %vm605, %v259, -inf
    %610 = vmax.xlane.f32.xlu0 %v609
    %v611 = vpop.xlane.xlu0 %610
    %v612 = vsel %vm605, %v305, -inf
    %613 = vmax.xlane.f32.xlu0 %v612
    %v614 = vpop.xlane.xlu0 %613
    %v615 = vsel %vm605, %v308, -inf
    %616 = vmax.xlane.f32.xlu0 %v615
    %v617 = vpop.xlane.xlu0 %616
    %v618 = vsel %vm605, %v354, -inf
    %619 = vmax.xlane.f32.xlu0 %v618
    %v620 = vpop.xlane.xlu0 %619
    %v621 = vsel %vm605, %v357, -inf
    %622 = vmax.xlane.f32.xlu0 %v621
    %v623 = vpop.xlane.xlu0 %622
    %v624 = vsel %vm605, %v403, -inf
    %625 = vmax.xlane.f32.xlu0 %v624
    %v626 = vpop.xlane.xlu0 %625
    %v627 = vsel %vm605, %v406, -inf
    %628 = vmax.xlane.f32.xlu0 %v627
    %v629 = vpop.xlane.xlu0 %628
    %v630 = vsel %vm605, %v452, -inf
    %631 = vmax.xlane.f32.xlu0 %v630
    %v632 = vpop.xlane.xlu0 %631
    %v633 = vsel %vm605, %v455, -inf
    %634 = vmax.xlane.f32.xlu0 %v633
    %v635 = vpop.xlane.xlu0 %634
    %v636 = vsel %vm605, %v501, -inf
    %637 = vmax.xlane.f32.xlu0 %v636
    %v638 = vpop.xlane.xlu0 %637
    %v639 = vsel %vm605, %v504, -inf
    %640 = vmax.xlane.f32.xlu0 %v639
    %v641 = vpop.xlane.xlu0 %640
    %v642 = vsel %vm605, %v550, -inf
    %643 = vmax.xlane.f32.xlu0 %v642
    %v644 = vpop.xlane.xlu0 %643
    %v645 = vsel %vm605, %v553, -inf
    %646 = vmax.xlane.f32.xlu0 %v645
    %v647 = vpop.xlane.xlu0 %646
    %v648 = vsel %vm605, %v599, -inf
    %649 = vmax.xlane.f32.xlu0 %v648
    %v650 = vpop.xlane.xlu0 %649
    %v651 = vsel %vm605, %v602, -inf
    %652 = vmax.xlane.f32.xlu0 %v651
    %v653 = vpop.xlane.xlu0 %652
    %v654 = vsub.f32 %v256, %v608
    %v655 = vsub.f32 %v259, %v611
    %v656 = vsub.f32 %v305, %v614
    %v657 = vsub.f32 %v308, %v617
    %v658 = vsub.f32 %v354, %v620
    %v659 = vsub.f32 %v357, %v623
    %v660 = vsub.f32 %v403, %v626
    %v661 = vsub.f32 %v406, %v629
    %v662 = vsub.f32 %v452, %v632
    %v663 = vsub.f32 %v455, %v635
    %v664 = vsub.f32 %v501, %v638
    %v665 = vsub.f32 %v504, %v641
    %v666 = vsub.f32 %v550, %v644
    %v667 = vsub.f32 %v553, %v647
    %v668 = vsub.f32 %v599, %v650
    %v669 = vsub.f32 %v602, %v653
    %v670 = vmul.f32 %v654, 1.442695
    %v671 = vpow.pop %v670
    %v672 = vmul.f32 %v655, 1.442695
    %v673 = vpow.pop %v672
    %v674 = vmul.f32 %v656, 1.442695
    %v675 = vpow.pop %v674
    %v676 = vmul.f32 %v657, 1.442695
    %v677 = vpow.pop %v676
    %v678 = vmul.f32 %v658, 1.442695
    %v679 = vpow.pop %v678
    %v680 = vmul.f32 %v659, 1.442695
    %v681 = vpow.pop %v680
    %v682 = vmul.f32 %v660, 1.442695
    %v683 = vpow.pop %v682
    %v684 = vmul.f32 %v661, 1.442695
    %v685 = vpow.pop %v684
    %v686 = vmul.f32 %v662, 1.442695
    %v687 = vpow.pop %v686
    %v688 = vmul.f32 %v663, 1.442695
    %v689 = vpow.pop %v688
    %v690 = vmul.f32 %v664, 1.442695
    %v691 = vpow.pop %v690
    %v692 = vmul.f32 %v665, 1.442695
    %v693 = vpow.pop %v692
    %v694 = vmul.f32 %v666, 1.442695
    %v695 = vpow.pop %v694
    %v696 = vmul.f32 %v667, 1.442695
    %v697 = vpow.pop %v696
    %v698 = vmul.f32 %v668, 1.442695
    %v699 = vpow.pop %v698
    %v700 = vmul.f32 %v669, 1.442695
    %v701 = vpow.pop %v700
    %v702 = vsel %vm605, %v671, 0.0
    %703 = vadd.xlane.f32.xlu0 %v702
    %v704 = vpop.xlane.xlu0 %703
    %v705 = vsel %vm605, %v673, 0.0
    %706 = vadd.xlane.f32.xlu0 %v705
    %v707 = vpop.xlane.xlu0 %706
    %v708 = vsel %vm605, %v675, 0.0
    %709 = vadd.xlane.f32.xlu0 %v708
    %v710 = vpop.xlane.xlu0 %709
    %v711 = vsel %vm605, %v677, 0.0
    %712 = vadd.xlane.f32.xlu0 %v711
    %v713 = vpop.xlane.xlu0 %712
    %v714 = vsel %vm605, %v679, 0.0
    %715 = vadd.xlane.f32.xlu0 %v714
    %v716 = vpop.xlane.xlu0 %715
    %v717 = vsel %vm605, %v681, 0.0
    %718 = vadd.xlane.f32.xlu0 %v717
    %v719 = vpop.xlane.xlu0 %718
    %v720 = vsel %vm605, %v683, 0.0
    %721 = vadd.xlane.f32.xlu0 %v720
    %v722 = vpop.xlane.xlu0 %721
    %v723 = vsel %vm605, %v685, 0.0
    %724 = vadd.xlane.f32.xlu0 %v723
    %v725 = vpop.xlane.xlu0 %724
    %v726 = vsel %vm605, %v687, 0.0
    %727 = vadd.xlane.f32.xlu0 %v726
    %v728 = vpop.xlane.xlu0 %727
    %v729 = vsel %vm605, %v689, 0.0
    %730 = vadd.xlane.f32.xlu0 %v729
    %v731 = vpop.xlane.xlu0 %730
    %v732 = vsel %vm605, %v691, 0.0
    %733 = vadd.xlane.f32.xlu0 %v732
    %v734 = vpop.xlane.xlu0 %733
    %v735 = vsel %vm605, %v693, 0.0
    %736 = vadd.xlane.f32.xlu0 %v735
    %v737 = vpop.xlane.xlu0 %736
    %v738 = vsel %vm605, %v695, 0.0
    %739 = vadd.xlane.f32.xlu0 %v738
    %v740 = vpop.xlane.xlu0 %739
    %v741 = vsel %vm605, %v697, 0.0
    %742 = vadd.xlane.f32.xlu0 %v741
    %v743 = vpop.xlane.xlu0 %742
    %v744 = vsel %vm605, %v699, 0.0
    %745 = vadd.xlane.f32.xlu0 %v744
    %v746 = vpop.xlane.xlu0 %745
    %v747 = vsel %vm605, %v701, 0.0
    %748 = vadd.xlane.f32.xlu0 %v747
    %v749 = vpop.xlane.xlu0 %748
    %v750 = vrcp.pop %v704
    %v751 = vrcp.pop %v707
    %v752 = vrcp.pop %v710
    %v753 = vrcp.pop %v713
    %v754 = vrcp.pop %v716
    %v755 = vrcp.pop %v719
    %v756 = vrcp.pop %v722
    %v757 = vrcp.pop %v725
    %v758 = vrcp.pop %v728
    %v759 = vrcp.pop %v731
    %v760 = vrcp.pop %v734
    %v761 = vrcp.pop %v737
    %v762 = vrcp.pop %v740
    %v763 = vrcp.pop %v743
    %v764 = vrcp.pop %v746
    %v765 = vrcp.pop %v749
    %v766 = vmul.f32 %v671, %v750
    %v767 = vmul.f32 %v673, %v751
    %v768 = vmul.f32 %v675, %v752
    %v769 = vmul.f32 %v677, %v753
    %v770 = vmul.f32 %v679, %v754
    %v771 = vmul.f32 %v681, %v755
    %v772 = vmul.f32 %v683, %v756
    %v773 = vmul.f32 %v685, %v757
    %v774 = vmul.f32 %v687, %v758
    %v775 = vmul.f32 %v689, %v759
    %v776 = vmul.f32 %v691, %v760
    %v777 = vmul.f32 %v693, %v761
    %v778 = vmul.f32 %v695, %v762
    %v779 = vmul.f32 %v697, %v763
    %v780 = vmul.f32 %v699, %v764
    %v781 = vmul.f32 %v701, %v765
    %v782 = vpack.c.bf16 %v767, %v766
    %v783 = vpack.c.bf16 %v769, %v768
    %v784 = vpack.c.bf16 %v771, %v770
    %v785 = vpack.c.bf16 %v773, %v772
    %v786 = vpack.c.bf16 %v775, %v774
    %v787 = vpack.c.bf16 %v777, %v776
    %v788 = vpack.c.bf16 %v779, %v778
    %v789 = vpack.c.bf16 %v781, %v780
    %790 = vrot.lane.b32.xlu0 %v196, 64
    %v791 = vpop.permute.xlu0 %790
    %v794 = vsel %vm605, %v782, 0
    %796 = vmatprep.subr.bf16.mxu0 0
    %797 = vmatpush1.bf16.msra.mxu0 0
    %798 = vmatprep.subr.bf16.mxu0 0
    %799 = vmatpush1.bf16.msra.mxu0 0
    %800 = vmatprep.subr.bf16.mxu0 0
    %801 = vmatpush1.bf16.msra.mxu0 0
    %802 = vmatprep.subr.bf16.mxu0 0
    %803 = vmatpush1.bf16.msra.mxu0 0
    %804 = vmatprep.subr.bf16.mxu0 0
    %805 = vmatpush1.bf16.msra.mxu0 0
    %806 = vmatprep.subr.bf16.mxu0 0
    %807 = vmatpush1.bf16.msra.mxu0 0
    %808 = vmatprep.subr.bf16.mxu0 0
    %809 = vmatpush1.bf16.msra.mxu0 0
    %810 = vmatprep.subr.bf16.mxu0 0
    %811 = vmatpush1.bf16.msra.mxu0 %v791
    %812 = vmatprep.subr.bf16.mxu0 0
    %813 = vmatpush2.bf16.msra.mxu0 0
    %814 = vmatprep.subr.bf16.mxu0 0
    %815 = vmatpush2.bf16.msra.mxu0 0
    %816 = vmatprep.subr.bf16.mxu0 0
    %817 = vmatpush2.bf16.msra.mxu0 0
    %818 = vmatprep.subr.bf16.mxu0 0
    %819 = vmatpush2.bf16.msra.mxu0 0
    %820 = vmatprep.subr.bf16.mxu0 0
    %821 = vmatpush2.bf16.msra.mxu0 0
    %822 = vmatprep.subr.bf16.mxu0 0
    %823 = vmatpush2.bf16.msra.mxu0 0
    %824 = vmatprep.subr.bf16.mxu0 0
    %825 = vmatpush2.bf16.msra.mxu0 0
    %826 = vmatprep.subr.bf16.mxu0 0
    %827 = vmatpush2.bf16.msra.mxu0 0
    %828 = vmatprep.mubr.bf16.mxu0 0
    %829 = vmatmul.mubr.bf16.gmra.mxu0 %v794
    %v830 = vpop.f32.mrf.mxu0
    %v831 = vadd.f32 0.0, %v830
    %v832 = vpop.f32.mrf.mxu0
    %v833 = vpop.f32.mrf.mxu0
    %v834 = vadd.f32 0.0, %v833
    %v835 = vpop.f32.mrf.mxu0
    %836 = vdwg.mxu0
    %837 = vrot.lane.b32.xlu0 %v197, 64
    %v838 = vpop.permute.xlu0 %837
    %v841 = vsel %vm605, %v783, 0
    %843 = vmatprep.subr.bf16.mxu0 0
    %844 = vmatpush1.bf16.msra.mxu0 0
    %845 = vmatprep.subr.bf16.mxu0 0
    %846 = vmatpush1.bf16.msra.mxu0 0
    %847 = vmatprep.subr.bf16.mxu0 0
    %848 = vmatpush1.bf16.msra.mxu0 0
    %849 = vmatprep.subr.bf16.mxu0 0
    %850 = vmatpush1.bf16.msra.mxu0 0
    %851 = vmatprep.subr.bf16.mxu0 0
    %852 = vmatpush1.bf16.msra.mxu0 0
    %853 = vmatprep.subr.bf16.mxu0 0
    %854 = vmatpush1.bf16.msra.mxu0 0
    %855 = vmatprep.subr.bf16.mxu0 0
    %856 = vmatpush1.bf16.msra.mxu0 0
    %857 = vmatprep.subr.bf16.mxu0 0
    %858 = vmatpush1.bf16.msra.mxu0 %v838
    %859 = vmatprep.subr.bf16.mxu0 0
    %860 = vmatpush2.bf16.msra.mxu0 0
    %861 = vmatprep.subr.bf16.mxu0 0
    %862 = vmatpush2.bf16.msra.mxu0 0
    %863 = vmatprep.subr.bf16.mxu0 0
    %864 = vmatpush2.bf16.msra.mxu0 0
    %865 = vmatprep.subr.bf16.mxu0 0
    %866 = vmatpush2.bf16.msra.mxu0 0
    %867 = vmatprep.subr.bf16.mxu0 0
    %868 = vmatpush2.bf16.msra.mxu0 0
    %869 = vmatprep.subr.bf16.mxu0 0
    %870 = vmatpush2.bf16.msra.mxu0 0
    %871 = vmatprep.subr.bf16.mxu0 0
    %872 = vmatpush2.bf16.msra.mxu0 0
    %873 = vmatprep.subr.bf16.mxu0 0
    %874 = vmatpush2.bf16.msra.mxu0 0
    %875 = vmatprep.mubr.bf16.mxu0 0
    %876 = vmatmul.mubr.bf16.gmra.mxu0 %v841
    %v877 = vpop.f32.mrf.mxu0
    %v878 = vadd.f32 0.0, %v877
    %v879 = vpop.f32.mrf.mxu0
    %v880 = vpop.f32.mrf.mxu0
    %v881 = vadd.f32 0.0, %v880
    %v882 = vpop.f32.mrf.mxu0
    %883 = vdwg.mxu0
    %884 = vrot.lane.b32.xlu0 %v201, 64
    %v885 = vpop.permute.xlu0 %884
    %v888 = vsel %vm605, %v784, 0
    %890 = vmatprep.subr.bf16.mxu0 0
    %891 = vmatpush1.bf16.msra.mxu0 0
    %892 = vmatprep.subr.bf16.mxu0 0
    %893 = vmatpush1.bf16.msra.mxu0 0
    %894 = vmatprep.subr.bf16.mxu0 0
    %895 = vmatpush1.bf16.msra.mxu0 0
    %896 = vmatprep.subr.bf16.mxu0 0
    %897 = vmatpush1.bf16.msra.mxu0 0
    %898 = vmatprep.subr.bf16.mxu0 0
    %899 = vmatpush1.bf16.msra.mxu0 0
    %900 = vmatprep.subr.bf16.mxu0 0
    %901 = vmatpush1.bf16.msra.mxu0 0
    %902 = vmatprep.subr.bf16.mxu0 0
    %903 = vmatpush1.bf16.msra.mxu0 0
    %904 = vmatprep.subr.bf16.mxu0 0
    %905 = vmatpush1.bf16.msra.mxu0 %v885
    %906 = vmatprep.subr.bf16.mxu0 0
    %907 = vmatpush2.bf16.msra.mxu0 0
    %908 = vmatprep.subr.bf16.mxu0 0
    %909 = vmatpush2.bf16.msra.mxu0 0
    %910 = vmatprep.subr.bf16.mxu0 0
    %911 = vmatpush2.bf16.msra.mxu0 0
    %912 = vmatprep.subr.bf16.mxu0 0
    %913 = vmatpush2.bf16.msra.mxu0 0
    %914 = vmatprep.subr.bf16.mxu0 0
    %915 = vmatpush2.bf16.msra.mxu0 0
    %916 = vmatprep.subr.bf16.mxu0 0
    %917 = vmatpush2.bf16.msra.mxu0 0
    %918 = vmatprep.subr.bf16.mxu0 0
    %919 = vmatpush2.bf16.msra.mxu0 0
    %920 = vmatprep.subr.bf16.mxu0 0
    %921 = vmatpush2.bf16.msra.mxu0 0
    %922 = vmatprep.mubr.bf16.mxu0 0
    %923 = vmatmul.mubr.bf16.gmra.mxu0 %v888
    %v924 = vpop.f32.mrf.mxu0
    %v925 = vadd.f32 0.0, %v924
    %v926 = vpop.f32.mrf.mxu0
    %v927 = vpop.f32.mrf.mxu0
    %v928 = vadd.f32 0.0, %v927
    %v929 = vpop.f32.mrf.mxu0
    %930 = vdwg.mxu0
    %931 = vrot.lane.b32.xlu0 %v203, 64
    %v932 = vpop.permute.xlu0 %931
    %v935 = vsel %vm605, %v785, 0
    %937 = vmatprep.subr.bf16.mxu0 0
    %938 = vmatpush1.bf16.msra.mxu0 0
    %939 = vmatprep.subr.bf16.mxu0 0
    %940 = vmatpush1.bf16.msra.mxu0 0
    %941 = vmatprep.subr.bf16.mxu0 0
    %942 = vmatpush1.bf16.msra.mxu0 0
    %943 = vmatprep.subr.bf16.mxu0 0
    %944 = vmatpush1.bf16.msra.mxu0 0
    %945 = vmatprep.subr.bf16.mxu0 0
    %946 = vmatpush1.bf16.msra.mxu0 0
    %947 = vmatprep.subr.bf16.mxu0 0
    %948 = vmatpush1.bf16.msra.mxu0 0
    %949 = vmatprep.subr.bf16.mxu0 0
    %950 = vmatpush1.bf16.msra.mxu0 0
    %951 = vmatprep.subr.bf16.mxu0 0
    %952 = vmatpush1.bf16.msra.mxu0 %v932
    %953 = vmatprep.subr.bf16.mxu0 0
    %954 = vmatpush2.bf16.msra.mxu0 0
    %955 = vmatprep.subr.bf16.mxu0 0
    %956 = vmatpush2.bf16.msra.mxu0 0
    %957 = vmatprep.subr.bf16.mxu0 0
    %958 = vmatpush2.bf16.msra.mxu0 0
    %959 = vmatprep.subr.bf16.mxu0 0
    %960 = vmatpush2.bf16.msra.mxu0 0
    %961 = vmatprep.subr.bf16.mxu0 0
    %962 = vmatpush2.bf16.msra.mxu0 0
    %963 = vmatprep.subr.bf16.mxu0 0
    %964 = vmatpush2.bf16.msra.mxu0 0
    %965 = vmatprep.subr.bf16.mxu0 0
    %966 = vmatpush2.bf16.msra.mxu0 0
    %967 = vmatprep.subr.bf16.mxu0 0
    %968 = vmatpush2.bf16.msra.mxu0 0
    %969 = vmatprep.mubr.bf16.mxu0 0
    %970 = vmatmul.mubr.bf16.gmra.mxu0 %v935
    %v971 = vpop.f32.mrf.mxu0
    %v972 = vadd.f32 0.0, %v971
    %v973 = vpop.f32.mrf.mxu0
    %v974 = vpop.f32.mrf.mxu0
    %v975 = vadd.f32 0.0, %v974
    %v976 = vpop.f32.mrf.mxu0
    %977 = vdwg.mxu0
    %978 = vrot.lane.b32.xlu0 %v205, 64
    %v979 = vpop.permute.xlu0 %978
    %v982 = vsel %vm605, %v786, 0
    %984 = vmatprep.subr.bf16.mxu0 0
    %985 = vmatpush1.bf16.msra.mxu0 0
    %986 = vmatprep.subr.bf16.mxu0 0
    %987 = vmatpush1.bf16.msra.mxu0 0
    %988 = vmatprep.subr.bf16.mxu0 0
    %989 = vmatpush1.bf16.msra.mxu0 0
    %990 = vmatprep.subr.bf16.mxu0 0
    %991 = vmatpush1.bf16.msra.mxu0 0
    %992 = vmatprep.subr.bf16.mxu0 0
    %993 = vmatpush1.bf16.msra.mxu0 0
    %994 = vmatprep.subr.bf16.mxu0 0
    %995 = vmatpush1.bf16.msra.mxu0 0
    %996 = vmatprep.subr.bf16.mxu0 0
    %997 = vmatpush1.bf16.msra.mxu0 0
    %998 = vmatprep.subr.bf16.mxu0 0
    %999 = vmatpush1.bf16.msra.mxu0 %v979
    %1000 = vmatprep.subr.bf16.mxu0 0
    %1001 = vmatpush2.bf16.msra.mxu0 0
    %1002 = vmatprep.subr.bf16.mxu0 0
    %1003 = vmatpush2.bf16.msra.mxu0 0
    %1004 = vmatprep.subr.bf16.mxu0 0
    %1005 = vmatpush2.bf16.msra.mxu0 0
    %1006 = vmatprep.subr.bf16.mxu0 0
    %1007 = vmatpush2.bf16.msra.mxu0 0
    %1008 = vmatprep.subr.bf16.mxu0 0
    %1009 = vmatpush2.bf16.msra.mxu0 0
    %1010 = vmatprep.subr.bf16.mxu0 0
    %1011 = vmatpush2.bf16.msra.mxu0 0
    %1012 = vmatprep.subr.bf16.mxu0 0
    %1013 = vmatpush2.bf16.msra.mxu0 0
    %1014 = vmatprep.subr.bf16.mxu0 0
    %1015 = vmatpush2.bf16.msra.mxu0 0
    %1016 = vmatprep.mubr.bf16.mxu0 0
    %1017 = vmatmul.mubr.bf16.gmra.mxu0 %v982
    %v1018 = vpop.f32.mrf.mxu0
    %v1019 = vadd.f32 0.0, %v1018
    %v1020 = vpop.f32.mrf.mxu0
    %v1021 = vpop.f32.mrf.mxu0
    %v1022 = vadd.f32 0.0, %v1021
    %v1023 = vpop.f32.mrf.mxu0
    %1024 = vdwg.mxu0
    %1025 = vrot.lane.b32.xlu0 %v207, 64
    %v1026 = vpop.permute.xlu0 %1025
    %v1029 = vsel %vm605, %v787, 0
    %1031 = vmatprep.subr.bf16.mxu0 0
    %1032 = vmatpush1.bf16.msra.mxu0 0
    %1033 = vmatprep.subr.bf16.mxu0 0
    %1034 = vmatpush1.bf16.msra.mxu0 0
    %1035 = vmatprep.subr.bf16.mxu0 0
    %1036 = vmatpush1.bf16.msra.mxu0 0
    %1037 = vmatprep.subr.bf16.mxu0 0
    %1038 = vmatpush1.bf16.msra.mxu0 0
    %1039 = vmatprep.subr.bf16.mxu0 0
    %1040 = vmatpush1.bf16.msra.mxu0 0
    %1041 = vmatprep.subr.bf16.mxu0 0
    %1042 = vmatpush1.bf16.msra.mxu0 0
    %1043 = vmatprep.subr.bf16.mxu0 0
    %1044 = vmatpush1.bf16.msra.mxu0 0
    %1045 = vmatprep.subr.bf16.mxu0 0
    %1046 = vmatpush1.bf16.msra.mxu0 %v1026
    %1047 = vmatprep.subr.bf16.mxu0 0
    %1048 = vmatpush2.bf16.msra.mxu0 0
    %1049 = vmatprep.subr.bf16.mxu0 0
    %1050 = vmatpush2.bf16.msra.mxu0 0
    %1051 = vmatprep.subr.bf16.mxu0 0
    %1052 = vmatpush2.bf16.msra.mxu0 0
    %1053 = vmatprep.subr.bf16.mxu0 0
    %1054 = vmatpush2.bf16.msra.mxu0 0
    %1055 = vmatprep.subr.bf16.mxu0 0
    %1056 = vmatpush2.bf16.msra.mxu0 0
    %1057 = vmatprep.subr.bf16.mxu0 0
    %1058 = vmatpush2.bf16.msra.mxu0 0
    %1059 = vmatprep.subr.bf16.mxu0 0
    %1060 = vmatpush2.bf16.msra.mxu0 0
    %1061 = vmatprep.subr.bf16.mxu0 0
    %1062 = vmatpush2.bf16.msra.mxu0 0
    %1063 = vmatprep.mubr.bf16.mxu0 0
    %1064 = vmatmul.mubr.bf16.gmra.mxu0 %v1029
    %v1065 = vpop.f32.mrf.mxu0
    %v1066 = vadd.f32 0.0, %v1065
    %v1067 = vpop.f32.mrf.mxu0
    %v1068 = vpop.f32.mrf.mxu0
    %v1069 = vadd.f32 0.0, %v1068
    %v1070 = vpop.f32.mrf.mxu0
    %1071 = vdwg.mxu0
    %1072 = vrot.lane.b32.xlu0 %v209, 64
    %v1073 = vpop.permute.xlu0 %1072
    %v1076 = vsel %vm605, %v788, 0
    %1078 = vmatprep.subr.bf16.mxu0 0
    %1079 = vmatpush1.bf16.msra.mxu0 0
    %1080 = vmatprep.subr.bf16.mxu0 0
    %1081 = vmatpush1.bf16.msra.mxu0 0
    %1082 = vmatprep.subr.bf16.mxu0 0
    %1083 = vmatpush1.bf16.msra.mxu0 0
    %1084 = vmatprep.subr.bf16.mxu0 0
    %1085 = vmatpush1.bf16.msra.mxu0 0
    %1086 = vmatprep.subr.bf16.mxu0 0
    %1087 = vmatpush1.bf16.msra.mxu0 0
    %1088 = vmatprep.subr.bf16.mxu0 0
    %1089 = vmatpush1.bf16.msra.mxu0 0
    %1090 = vmatprep.subr.bf16.mxu0 0
    %1091 = vmatpush1.bf16.msra.mxu0 0
    %1092 = vmatprep.subr.bf16.mxu0 0
    %1093 = vmatpush1.bf16.msra.mxu0 %v1073
    %1094 = vmatprep.subr.bf16.mxu0 0
    %1095 = vmatpush2.bf16.msra.mxu0 0
    %1096 = vmatprep.subr.bf16.mxu0 0
    %1097 = vmatpush2.bf16.msra.mxu0 0
    %1098 = vmatprep.subr.bf16.mxu0 0
    %1099 = vmatpush2.bf16.msra.mxu0 0
    %1100 = vmatprep.subr.bf16.mxu0 0
    %1101 = vmatpush2.bf16.msra.mxu0 0
    %1102 = vmatprep.subr.bf16.mxu0 0
    %1103 = vmatpush2.bf16.msra.mxu0 0
    %1104 = vmatprep.subr.bf16.mxu0 0
    %1105 = vmatpush2.bf16.msra.mxu0 0
    %1106 = vmatprep.subr.bf16.mxu0 0
    %1107 = vmatpush2.bf16.msra.mxu0 0
    %1108 = vmatprep.subr.bf16.mxu0 0
    %1109 = vmatpush2.bf16.msra.mxu0 0
    %1110 = vmatprep.mubr.bf16.mxu0 0
    %1111 = vmatmul.mubr.bf16.gmra.mxu0 %v1076
    %v1112 = vpop.f32.mrf.mxu0
    %v1113 = vadd.f32 0.0, %v1112
    %v1114 = vpop.f32.mrf.mxu0
    %v1115 = vpop.f32.mrf.mxu0
    %v1116 = vadd.f32 0.0, %v1115
    %v1117 = vpop.f32.mrf.mxu0
    %1118 = vdwg.mxu0
    %1119 = vrot.lane.b32.xlu0 %v211, 64
    %v1120 = vpop.permute.xlu0 %1119
    %v1123 = vsel %vm605, %v789, 0
    %1125 = vmatprep.subr.bf16.mxu0 0
    %1126 = vmatpush1.bf16.msra.mxu0 0
    %1127 = vmatprep.subr.bf16.mxu0 0
    %1128 = vmatpush1.bf16.msra.mxu0 0
    %1129 = vmatprep.subr.bf16.mxu0 0
    %1130 = vmatpush1.bf16.msra.mxu0 0
    %1131 = vmatprep.subr.bf16.mxu0 0
    %1132 = vmatpush1.bf16.msra.mxu0 0
    %1133 = vmatprep.subr.bf16.mxu0 0
    %1134 = vmatpush1.bf16.msra.mxu0 0
    %1135 = vmatprep.subr.bf16.mxu0 0
    %1136 = vmatpush1.bf16.msra.mxu0 0
    %1137 = vmatprep.subr.bf16.mxu0 0
    %1138 = vmatpush1.bf16.msra.mxu0 0
    %1139 = vmatprep.subr.bf16.mxu0 0
    %1140 = vmatpush1.bf16.msra.mxu0 %v1120
    %1141 = vmatprep.subr.bf16.mxu0 0
    %1142 = vmatpush2.bf16.msra.mxu0 0
    %1143 = vmatprep.subr.bf16.mxu0 0
    %1144 = vmatpush2.bf16.msra.mxu0 0
    %1145 = vmatprep.subr.bf16.mxu0 0
    %1146 = vmatpush2.bf16.msra.mxu0 0
    %1147 = vmatprep.subr.bf16.mxu0 0
    %1148 = vmatpush2.bf16.msra.mxu0 0
    %1149 = vmatprep.subr.bf16.mxu0 0
    %1150 = vmatpush2.bf16.msra.mxu0 0
    %1151 = vmatprep.subr.bf16.mxu0 0
    %1152 = vmatpush2.bf16.msra.mxu0 0
    %1153 = vmatprep.subr.bf16.mxu0 0
    %1154 = vmatpush2.bf16.msra.mxu0 0
    %1155 = vmatprep.subr.bf16.mxu0 0
    %1156 = vmatpush2.bf16.msra.mxu0 0
    %1157 = vmatprep.mubr.bf16.mxu0 0
    %1158 = vmatmul.mubr.bf16.gmra.mxu0 %v1123
    %v1159 = vpop.f32.mrf.mxu0
    %v1160 = vadd.f32 0.0, %v1159
    %v1161 = vpop.f32.mrf.mxu0
    %v1162 = vpop.f32.mrf.mxu0
    %v1163 = vadd.f32 0.0, %v1162
    %v1164 = vpop.f32.mrf.mxu0
    %1165 = vdwg.mxu0
    %1170 = vrot.lane.b32.xlu0 %v925, 8
    %v1171 = vpop.permute.xlu0 %1170
    %1172 = vrot.lane.b32.xlu0 %v928, 8
    %v1173 = vpop.permute.xlu0 %1172
    %1174 = vrot.lane.b32.xlu0 %v972, 8
    %v1175 = vpop.permute.xlu0 %1174
    %1176 = vrot.lane.b32.xlu0 %v975, 8
    %v1177 = vpop.permute.xlu0 %1176
    %1186 = vrot.lane.b32.xlu0 %v1019, 16
    %v1187 = vpop.permute.xlu0 %1186
    %1188 = vrot.lane.b32.xlu0 %v1022, 16
    %v1189 = vpop.permute.xlu0 %1188
    %1190 = vrot.lane.b32.xlu0 %v1066, 16
    %v1191 = vpop.permute.xlu0 %1190
    %1192 = vrot.lane.b32.xlu0 %v1069, 16
    %v1193 = vpop.permute.xlu0 %1192
    %1202 = vrot.lane.b32.xlu0 %v1113, 24
    %v1203 = vpop.permute.xlu0 %1202
    %1204 = vrot.lane.b32.xlu0 %v1116, 24
    %v1205 = vpop.permute.xlu0 %1204
    %1206 = vrot.lane.b32.xlu0 %v1160, 24
    %v1207 = vpop.permute.xlu0 %1206
    %1208 = vrot.lane.b32.xlu0 %v1163, 24
    %v1209 = vpop.permute.xlu0 %1208
    %v1214 = vsel %vm214, %v831, %v1171
    %v1215 = vsel %vm214, %v834, %v1173
    %v1216 = vsel %vm214, %v878, %v1175
    %v1217 = vsel %vm214, %v881, %v1177
    %v1218 = vsel %vm605, %v1214, %v1187
    %v1219 = vsel %vm605, %v1215, %v1189
    %v1220 = vsel %vm605, %v1216, %v1191
    %v1221 = vsel %vm605, %v1217, %v1193
    %vm1222 = vcmask 195584
    %v1223 = vsel %vm1222, %v1218, %v1203
    %v1224 = vsel %vm1222, %v1219, %v1205
    %v1225 = vsel %vm1222, %v1220, %v1207
    %v1226 = vsel %vm1222, %v1221, %v1209
    %v1227 = vpack.c.bf16 %v1224, %v1223
    %v1228 = vpack.c.bf16 %v1226, %v1225
    %v1229 = vld [vmem:[%s4] sm:$0xf]
    %v1230 = vld [vmem:[%s4 + $0x4] sm:$0xf]
    %v1231 = vld [vmem:[%s4 + $0x8] sm:$0xf]
    %v1232 = vld [vmem:[%s4 + $0xc] sm:$0xf]
    %v1237 = vunpack.c.l.b16 %v1229
    %v1238 = vunpack.c.l.b16 %v1230
    %v1239 = vunpack.c.l.b16 %v1231
    %v1240 = vunpack.c.l.b16 %v1232
    %v1241 = vpack.c.b16 %v1238, %v1237
    %v1242 = vpack.c.b16 %v1240, %v1239
    %v1246 = vsel %vm49, %v1227, 0
    %v1249 = vsel %vm49, %v1228, 0
    %1251 = vmatprep.subr.bf16.mxu0 0
    %1252 = vmatpush1.bf16.msra.mxu0 0
    %1253 = vmatprep.subr.bf16.mxu0 0
    %1254 = vmatpush1.bf16.msra.mxu0 0
    %1255 = vmatprep.subr.bf16.mxu0 0
    %1256 = vmatpush1.bf16.msra.mxu0 0
    %1257 = vmatprep.subr.bf16.mxu0 0
    %1258 = vmatpush1.bf16.msra.mxu0 0
    %1259 = vmatprep.subr.bf16.mxu0 0
    %1260 = vmatpush1.bf16.msra.mxu0 0
    %1261 = vmatprep.subr.bf16.mxu0 0
    %1262 = vmatpush1.bf16.msra.mxu0 0
    %1263 = vmatprep.subr.bf16.mxu0 0
    %1264 = vmatpush1.bf16.msra.mxu0 %v1242
    %1265 = vmatprep.subr.bf16.mxu0 0
    %1266 = vmatpush1.bf16.msra.mxu0 %v1241
    %1267 = vmatprep.subr.bf16.mxu0 0
    %1268 = vmatpush2.bf16.msra.mxu0 0
    %1269 = vmatprep.subr.bf16.mxu0 0
    %1270 = vmatpush2.bf16.msra.mxu0 0
    %1271 = vmatprep.subr.bf16.mxu0 0
    %1272 = vmatpush2.bf16.msra.mxu0 0
    %1273 = vmatprep.subr.bf16.mxu0 0
    %1274 = vmatpush2.bf16.msra.mxu0 0
    %1275 = vmatprep.subr.bf16.mxu0 0
    %1276 = vmatpush2.bf16.msra.mxu0 0
    %1277 = vmatprep.subr.bf16.mxu0 0
    %1278 = vmatpush2.bf16.msra.mxu0 0
    %1279 = vmatprep.subr.bf16.mxu0 0
    %1280 = vmatpush2.bf16.msra.mxu0 0
    %1281 = vmatprep.subr.bf16.mxu0 0
    %1282 = vmatpush2.bf16.msra.mxu0 0
    %1283 = vmatprep.mubr.bf16.mxu0 0
    %1284 = vmatmul.mubr.bf16.gmra.mxu0 %v1246
    %v1285 = vpop.f32.mrf.mxu0
    %v1286 = vadd.f32 0.0, %v1285
    %v1287 = vpop.f32.mrf.mxu0
    %v1288 = vpop.f32.mrf.mxu0
    %v1289 = vadd.f32 0.0, %v1288
    %v1290 = vpop.f32.mrf.mxu0
    %1291 = vmatprep.mubr.bf16.mxu0 0
    %1292 = vmatmul.mubr.bf16.gmra.mxu0 %v1249
    %v1293 = vpop.f32.mrf.mxu0
    %v1294 = vadd.f32 0.0, %v1293
    %v1295 = vpop.f32.mrf.mxu0
    %v1296 = vpop.f32.mrf.mxu0
    %v1297 = vadd.f32 0.0, %v1296
    %v1298 = vpop.f32.mrf.mxu0
    %1299 = vdwg.mxu0
    %v1300 = vadd.f32 %v43, %v1286
    %v1301 = vadd.f32 %v44, %v1289
    %v1302 = vadd.f32 %v45, %v1294
    %v1303 = vadd.f32 %v46, %v1297
    %v1304 = vld [vmem:[%s5] sm:$0x1]
    %v1306 = vlaneseq
    %v1307 = vshrl.u32 %v1306, 7
    %v1308 = vsub.s32 0, %v1307
    %v1309 = vrot.slane %v1304, %v1308
    %v1311 = vadd.f32 %v1300, %v1309
    %v1312 = vadd.f32 %v1301, %v1309
    %v1313 = vadd.f32 %v1302, %v1309
    %v1314 = vadd.f32 %v1303, %v1309
    %v1315 = vld [vmem:[%s6] sm:$0x1]
    %v1316 = vld [vmem:[%s7] sm:$0x1]
    %v1317 = vsel %vm49, %v1311, 0.0
    %1318 = vadd.xlane.f32.xlu0 %v1317
    %v1319 = vpop.xlane.xlu0 %1318
    %v1320 = vsel %vm49, %v1312, 0.0
    %1321 = vadd.xlane.f32.xlu0 %v1320
    %v1322 = vpop.xlane.xlu0 %1321
    %v1323 = vsel %vm49, %v1313, 0.0
    %1324 = vadd.xlane.f32.xlu0 %v1323
    %v1325 = vpop.xlane.xlu0 %1324
    %v1326 = vsel %vm49, %v1314, 0.0
    %1327 = vadd.xlane.f32.xlu0 %v1326
    %v1328 = vpop.xlane.xlu0 %1327
    %v1329 = vmul.f32 %v1319, %v62
    %v1330 = vmul.f32 %v1322, %v62
    %v1331 = vmul.f32 %v1325, %v62
    %v1332 = vmul.f32 %v1328, %v62
    %v1333 = vsub.f32 %v1311, %v1329
    %v1334 = vsub.f32 %v1312, %v1330
    %v1335 = vsub.f32 %v1313, %v1331
    %v1336 = vsub.f32 %v1314, %v1332
    %v1337 = vmul.f32 %v1333, %v1333
    %v1338 = vmul.f32 %v1334, %v1334
    %v1339 = vmul.f32 %v1335, %v1335
    %v1340 = vmul.f32 %v1336, %v1336
    %v1341 = vsel %vm49, %v1337, 0.0
    %1342 = vadd.xlane.f32.xlu0 %v1341
    %v1343 = vpop.xlane.xlu0 %1342
    %v1344 = vsel %vm49, %v1338, 0.0
    %1345 = vadd.xlane.f32.xlu0 %v1344
    %v1346 = vpop.xlane.xlu0 %1345
    %v1347 = vsel %vm49, %v1339, 0.0
    %1348 = vadd.xlane.f32.xlu0 %v1347
    %v1349 = vpop.xlane.xlu0 %1348
    %v1350 = vsel %vm49, %v1340, 0.0
    %1351 = vadd.xlane.f32.xlu0 %v1350
    %v1352 = vpop.xlane.xlu0 %1351
    %v1353 = vmul.f32 %v1343, %v62
    %v1354 = vmul.f32 %v1346, %v62
    %v1355 = vmul.f32 %v1349, %v62
    %v1356 = vmul.f32 %v1352, %v62
    %v1357 = vadd.f32 %v1353, 1e-05
    %v1358 = vadd.f32 %v1354, 1e-05
    %v1359 = vadd.f32 %v1355, 1e-05
    %v1360 = vadd.f32 %v1356, 1e-05
    %v1361 = vrsqrt.pop %v1357
    %v1362 = vrsqrt.pop %v1358
    %v1363 = vrsqrt.pop %v1359
    %v1364 = vrsqrt.pop %v1360
    %v1365 = vmul.f32 %v1333, %v1361
    %v1366 = vmul.f32 %v1334, %v1362
    %v1367 = vmul.f32 %v1335, %v1363
    %v1368 = vmul.f32 %v1336, %v1364
    %v1370 = vlaneseq
    %v1371 = vshrl.u32 %v1370, 7
    %v1372 = vsub.s32 0, %v1371
    %v1373 = vrot.slane %v1315, %v1372
    %v1375 = vmul.f32 %v1365, %v1373
    %v1376 = vmul.f32 %v1366, %v1373
    %v1377 = vmul.f32 %v1367, %v1373
    %v1378 = vmul.f32 %v1368, %v1373
    %v1380 = vlaneseq
    %v1381 = vshrl.u32 %v1380, 7
    %v1382 = vsub.s32 0, %v1381
    %v1383 = vrot.slane %v1316, %v1382
    %v1385 = vadd.f32 %v1375, %v1383
    %v1386 = vadd.f32 %v1376, %v1383
    %v1387 = vadd.f32 %v1377, %v1383
    %v1388 = vadd.f32 %v1378, %v1383
    %v1389 = vpack.c.bf16 %v1386, %v1385
    %v1390 = vpack.c.bf16 %v1388, %v1387
    %v1391 = vld [vmem:[%s8] sm:$0xf]
    %v1392 = vld [vmem:[%s8 + $0x4] sm:$0xf]
    %v1393 = vld [vmem:[%s8 + $0x8] sm:$0xf]
    %v1394 = vld [vmem:[%s8 + $0xc] sm:$0xf]
    %v1395 = vld [vmem:[%s9] sm:$0x1]
    %v1397 = vlaneseq
    %v1398 = vshrl.u32 %v1397, 7
    %v1399 = vsub.s32 0, %v1398
    %v1400 = vrot.slane %v1395, %v1399
    %v1406 = vunpack.c.l.b16 %v1391
    %v1407 = vunpack.c.l.b16 %v1392
    %v1408 = vunpack.c.l.b16 %v1393
    %v1409 = vunpack.c.l.b16 %v1394
    %v1410 = vpack.c.b16 %v1407, %v1406
    %v1411 = vpack.c.b16 %v1409, %v1408
    %v1415 = vsel %vm49, %v1389, 0
    %v1418 = vsel %vm49, %v1390, 0
    %1420 = vmatprep.subr.bf16.mxu0 0
    %1421 = vmatpush1.bf16.msra.mxu0 0
    %1422 = vmatprep.subr.bf16.mxu0 0
    %1423 = vmatpush1.bf16.msra.mxu0 0
    %1424 = vmatprep.subr.bf16.mxu0 0
    %1425 = vmatpush1.bf16.msra.mxu0 0
    %1426 = vmatprep.subr.bf16.mxu0 0
    %1427 = vmatpush1.bf16.msra.mxu0 0
    %1428 = vmatprep.subr.bf16.mxu0 0
    %1429 = vmatpush1.bf16.msra.mxu0 0
    %1430 = vmatprep.subr.bf16.mxu0 0
    %1431 = vmatpush1.bf16.msra.mxu0 0
    %1432 = vmatprep.subr.bf16.mxu0 0
    %1433 = vmatpush1.bf16.msra.mxu0 %v1411
    %1434 = vmatprep.subr.bf16.mxu0 0
    %1435 = vmatpush1.bf16.msra.mxu0 %v1410
    %1436 = vmatprep.subr.bf16.mxu0 0
    %1437 = vmatpush2.bf16.msra.mxu0 0
    %1438 = vmatprep.subr.bf16.mxu0 0
    %1439 = vmatpush2.bf16.msra.mxu0 0
    %1440 = vmatprep.subr.bf16.mxu0 0
    %1441 = vmatpush2.bf16.msra.mxu0 0
    %1442 = vmatprep.subr.bf16.mxu0 0
    %1443 = vmatpush2.bf16.msra.mxu0 0
    %1444 = vmatprep.subr.bf16.mxu0 0
    %1445 = vmatpush2.bf16.msra.mxu0 0
    %1446 = vmatprep.subr.bf16.mxu0 0
    %1447 = vmatpush2.bf16.msra.mxu0 0
    %1448 = vmatprep.subr.bf16.mxu0 0
    %1449 = vmatpush2.bf16.msra.mxu0 0
    %1450 = vmatprep.subr.bf16.mxu0 0
    %1451 = vmatpush2.bf16.msra.mxu0 0
    %1452 = vmatprep.mubr.bf16.mxu0 0
    %1453 = vmatmul.mubr.bf16.gmra.mxu0 %v1415
    %v1454 = vpop.f32.mrf.mxu0
    %v1455 = vadd.f32 %v1400, %v1454
    %v1456 = vpop.f32.mrf.mxu0
    %v1457 = vpop.f32.mrf.mxu0
    %v1458 = vadd.f32 %v1400, %v1457
    %v1459 = vpop.f32.mrf.mxu0
    %1460 = vmatprep.mubr.bf16.mxu0 0
    %1461 = vmatmul.mubr.bf16.gmra.mxu0 %v1418
    %v1462 = vpop.f32.mrf.mxu0
    %v1463 = vadd.f32 %v1400, %v1462
    %v1464 = vpop.f32.mrf.mxu0
    %v1465 = vpop.f32.mrf.mxu0
    %v1466 = vadd.f32 %v1400, %v1465
    %v1467 = vpop.f32.mrf.mxu0
    %1468 = vdwg.mxu0
    %v1469 = vmul.f32 %v1455, 0.5
    %v1470 = vmul.f32 %v1458, 0.5
    %v1471 = vmul.f32 %v1463, 0.5
    %v1472 = vmul.f32 %v1466, 0.5
    %v1473 = vmul.f32 %v1455, 0.044715
    %v1474 = vmul.f32 %v1458, 0.044715
    %v1475 = vmul.f32 %v1463, 0.044715
    %v1476 = vmul.f32 %v1466, 0.044715
    %v1477 = vmul.f32 %v1473, %v1455
    %v1478 = vmul.f32 %v1474, %v1458
    %v1479 = vmul.f32 %v1475, %v1463
    %v1480 = vmul.f32 %v1476, %v1466
    %v1481 = vmul.f32 %v1477, %v1455
    %v1482 = vmul.f32 %v1478, %v1458
    %v1483 = vmul.f32 %v1479, %v1463
    %v1484 = vmul.f32 %v1480, %v1466
    %v1485 = vadd.f32 %v1455, %v1481
    %v1486 = vadd.f32 %v1458, %v1482
    %v1487 = vadd.f32 %v1463, %v1483
    %v1488 = vadd.f32 %v1466, %v1484
    %v1489 = vmul.f32 %v1485, 0.7978846
    %v1490 = vmul.f32 %v1486, 0.7978846
    %v1491 = vmul.f32 %v1487, 0.7978846
    %v1492 = vmul.f32 %v1488, 0.7978846
    %v1493 = vtanh.pop %v1489
    %v1494 = vtanh.pop %v1490
    %v1495 = vtanh.pop %v1491
    %v1496 = vtanh.pop %v1492
    %v1497 = vadd.f32 %v1493, 1.0
    %v1498 = vadd.f32 %v1494, 1.0
    %v1499 = vadd.f32 %v1495, 1.0
    %v1500 = vadd.f32 %v1496, 1.0
    %v1501 = vmul.f32 %v1469, %v1497
    %v1502 = vmul.f32 %v1470, %v1498
    %v1503 = vmul.f32 %v1471, %v1499
    %v1504 = vmul.f32 %v1472, %v1500
    %v1505 = vpack.c.bf16 %v1502, %v1501
    %v1506 = vpack.c.bf16 %v1504, %v1503
    %v1507 = vld [vmem:[%s10] sm:$0xf]
    %v1508 = vld [vmem:[%s10 + $0x4] sm:$0xf]
    %v1509 = vld [vmem:[%s10 + $0x8] sm:$0xf]
    %v1510 = vld [vmem:[%s10 + $0xc] sm:$0xf]
    %v1511 = vld [vmem:[%s10 + $0x10] sm:$0xf]
    %v1512 = vld [vmem:[%s10 + $0x14] sm:$0xf]
    %v1513 = vld [vmem:[%s10 + $0x18] sm:$0xf]
    %v1514 = vld [vmem:[%s10 + $0x1c] sm:$0xf]
    %v1515 = vld [vmem:[%s10 + $0x20] sm:$0xf]
    %v1516 = vld [vmem:[%s10 + $0x24] sm:$0xf]
    %v1517 = vld [vmem:[%s10 + $0x28] sm:$0xf]
    %v1518 = vld [vmem:[%s10 + $0x2c] sm:$0xf]
    %v1519 = vld [vmem:[%s10 + $0x30] sm:$0xf]
    %v1520 = vld [vmem:[%s10 + $0x34] sm:$0xf]
    %v1521 = vld [vmem:[%s10 + $0x38] sm:$0xf]
    %v1522 = vld [vmem:[%s10 + $0x3c] sm:$0xf]
    %v1523 = vld [vmem:[%s11] sm:$0x1]
    %v1525 = vlaneseq
    %v1526 = vshrl.u32 %v1525, 7
    %v1527 = vsub.s32 0, %v1526
    %v1528 = vrot.slane %v1523, %v1527
    %v1546 = vunpack.c.l.b16 %v1507
    %v1547 = vunpack.c.l.b16 %v1508
    %v1548 = vunpack.c.l.b16 %v1509
    %v1549 = vunpack.c.l.b16 %v1510
    %v1550 = vunpack.c.l.b16 %v1511
    %v1551 = vunpack.c.l.b16 %v1512
    %v1552 = vunpack.c.l.b16 %v1513
    %v1553 = vunpack.c.l.b16 %v1514
    %v1554 = vunpack.c.l.b16 %v1515
    %v1555 = vunpack.c.l.b16 %v1516
    %v1556 = vunpack.c.l.b16 %v1517
    %v1557 = vunpack.c.l.b16 %v1518
    %v1558 = vunpack.c.l.b16 %v1519
    %v1559 = vunpack.c.l.b16 %v1520
    %v1560 = vunpack.c.l.b16 %v1521
    %v1561 = vunpack.c.l.b16 %v1522
    %v1562 = vpack.c.b16 %v1547, %v1546
    %v1563 = vpack.c.b16 %v1549, %v1548
    %v1564 = vpack.c.b16 %v1551, %v1550
    %v1565 = vpack.c.b16 %v1553, %v1552
    %v1566 = vpack.c.b16 %v1555, %v1554
    %v1567 = vpack.c.b16 %v1557, %v1556
    %v1568 = vpack.c.b16 %v1559, %v1558
    %v1569 = vpack.c.b16 %v1561, %v1560
    %1578 = vmatprep.subr.bf16.mxu0 0
    %1579 = vmatpush1.bf16.msra.mxu0 %v1569
    %1580 = vmatprep.subr.bf16.mxu0 0
    %1581 = vmatpush1.bf16.msra.mxu0 %v1568
    %1582 = vmatprep.subr.bf16.mxu0 0
    %1583 = vmatpush1.bf16.msra.mxu0 %v1567
    %1584 = vmatprep.subr.bf16.mxu0 0
    %1585 = vmatpush1.bf16.msra.mxu0 %v1566
    %1586 = vmatprep.subr.bf16.mxu0 0
    %1587 = vmatpush1.bf16.msra.mxu0 %v1565
    %1588 = vmatprep.subr.bf16.mxu0 0
    %1589 = vmatpush1.bf16.msra.mxu0 %v1564
    %1590 = vmatprep.subr.bf16.mxu0 0
    %1591 = vmatpush1.bf16.msra.mxu0 %v1563
    %1592 = vmatprep.subr.bf16.mxu0 0
    %1593 = vmatpush1.bf16.msra.mxu0 %v1562
    %1594 = vmatprep.subr.bf16.mxu0 0
    %1595 = vmatpush2.bf16.msra.mxu0 0
    %1596 = vmatprep.subr.bf16.mxu0 0
    %1597 = vmatpush2.bf16.msra.mxu0 0
    %1598 = vmatprep.subr.bf16.mxu0 0
    %1599 = vmatpush2.bf16.msra.mxu0 0
    %1600 = vmatprep.subr.bf16.mxu0 0
    %1601 = vmatpush2.bf16.msra.mxu0 0
    %1602 = vmatprep.subr.bf16.mxu0 0
    %1603 = vmatpush2.bf16.msra.mxu0 0
    %1604 = vmatprep.subr.bf16.mxu0 0
    %1605 = vmatpush2.bf16.msra.mxu0 0
    %1606 = vmatprep.subr.bf16.mxu0 0
    %1607 = vmatpush2.bf16.msra.mxu0 0
    %1608 = vmatprep.subr.bf16.mxu0 0
    %1609 = vmatpush2.bf16.msra.mxu0 0
    %1610 = vmatprep.mubr.bf16.mxu0 0
    %1611 = vmatmul.mubr.bf16.gmra.mxu0 %v1505
    %v1612 = vpop.f32.mrf.mxu0
    %v1613 = vadd.f32 %v1528, %v1612
    %v1614 = vpop.f32.mrf.mxu0
    %v1615 = vpop.f32.mrf.mxu0
    %v1616 = vadd.f32 %v1528, %v1615
    %v1617 = vpop.f32.mrf.mxu0
    %1618 = vmatprep.mubr.bf16.mxu0 0
    %1619 = vmatmul.mubr.bf16.gmra.mxu0 %v1506
    %v1620 = vpop.f32.mrf.mxu0
    %v1621 = vadd.f32 %v1528, %v1620
    %v1622 = vpop.f32.mrf.mxu0
    %v1623 = vpop.f32.mrf.mxu0
    %v1624 = vadd.f32 %v1528, %v1623
    %v1625 = vpop.f32.mrf.mxu0
    %1626 = vdwg.mxu0
    %v1627 = vadd.f32 %v1311, %v1613
    %v1628 = vadd.f32 %v1312, %v1616
    %v1629 = vadd.f32 %v1313, %v1621
    %v1630 = vadd.f32 %v1314, %v1624
    %s1631 = scalar_lea.vmem %s1, 1
    %v1632 = vld [vmem:[%s1631] sm:$0x1]
    %s1633 = scalar_lea.vmem %s2, 1
    %v1634 = vld [vmem:[%s1633] sm:$0x1]
    %v1635 = vsel %vm49, %v1627, 0.0
    %1636 = vadd.xlane.f32.xlu0 %v1635
    %v1637 = vpop.xlane.xlu0 %1636
    %v1638 = vsel %vm49, %v1628, 0.0
    %1639 = vadd.xlane.f32.xlu0 %v1638
    %v1640 = vpop.xlane.xlu0 %1639
    %v1641 = vsel %vm49, %v1629, 0.0
    %1642 = vadd.xlane.f32.xlu0 %v1641
    %v1643 = vpop.xlane.xlu0 %1642
    %v1644 = vsel %vm49, %v1630, 0.0
    %1645 = vadd.xlane.f32.xlu0 %v1644
    %v1646 = vpop.xlane.xlu0 %1645
    %v1647 = vmul.f32 %v1637, %v62
    %v1648 = vmul.f32 %v1640, %v62
    %v1649 = vmul.f32 %v1643, %v62
    %v1650 = vmul.f32 %v1646, %v62
    %v1651 = vsub.f32 %v1627, %v1647
    %v1652 = vsub.f32 %v1628, %v1648
    %v1653 = vsub.f32 %v1629, %v1649
    %v1654 = vsub.f32 %v1630, %v1650
    %v1655 = vmul.f32 %v1651, %v1651
    %v1656 = vmul.f32 %v1652, %v1652
    %v1657 = vmul.f32 %v1653, %v1653
    %v1658 = vmul.f32 %v1654, %v1654
    %v1659 = vsel %vm49, %v1655, 0.0
    %1660 = vadd.xlane.f32.xlu0 %v1659
    %v1661 = vpop.xlane.xlu0 %1660
    %v1662 = vsel %vm49, %v1656, 0.0
    %1663 = vadd.xlane.f32.xlu0 %v1662
    %v1664 = vpop.xlane.xlu0 %1663
    %v1665 = vsel %vm49, %v1657, 0.0
    %1666 = vadd.xlane.f32.xlu0 %v1665
    %v1667 = vpop.xlane.xlu0 %1666
    %v1668 = vsel %vm49, %v1658, 0.0
    %1669 = vadd.xlane.f32.xlu0 %v1668
    %v1670 = vpop.xlane.xlu0 %1669
    %v1671 = vmul.f32 %v1661, %v62
    %v1672 = vmul.f32 %v1664, %v62
    %v1673 = vmul.f32 %v1667, %v62
    %v1674 = vmul.f32 %v1670, %v62
    %v1675 = vadd.f32 %v1671, 1e-05
    %v1676 = vadd.f32 %v1672, 1e-05
    %v1677 = vadd.f32 %v1673, 1e-05
    %v1678 = vadd.f32 %v1674, 1e-05
    %v1679 = vrsqrt.pop %v1675
    %v1680 = vrsqrt.pop %v1676
    %v1681 = vrsqrt.pop %v1677
    %v1682 = vrsqrt.pop %v1678
    %v1683 = vmul.f32 %v1651, %v1679
    %v1684 = vmul.f32 %v1652, %v1680
    %v1685 = vmul.f32 %v1653, %v1681
    %v1686 = vmul.f32 %v1654, %v1682
    %v1688 = vlaneseq
    %v1689 = vshrl.u32 %v1688, 7
    %v1690 = vsub.s32 0, %v1689
    %v1691 = vrot.slane %v1632, %v1690
    %v1693 = vmul.f32 %v1683, %v1691
    %v1694 = vmul.f32 %v1684, %v1691
    %v1695 = vmul.f32 %v1685, %v1691
    %v1696 = vmul.f32 %v1686, %v1691
    %v1698 = vlaneseq
    %v1699 = vshrl.u32 %v1698, 7
    %v1700 = vsub.s32 0, %v1699
    %v1701 = vrot.slane %v1634, %v1700
    %v1703 = vadd.f32 %v1693, %v1701
    %v1704 = vadd.f32 %v1694, %v1701
    %v1705 = vadd.f32 %v1695, %v1701
    %v1706 = vadd.f32 %v1696, %v1701
    %v1707 = vpack.c.bf16 %v1704, %v1703
    %v1708 = vpack.c.bf16 %v1706, %v1705
    %s1709 = scalar_lea.vmem %s3, 16
    %v1710 = vld [vmem:[%s1709] sm:$0xf]
    %v1711 = vld [vmem:[%s1709 + $0x4] sm:$0xf]
    %v1712 = vld [vmem:[%s1709 + $0x8] sm:$0xf]
    %v1713 = vld [vmem:[%s1709 + $0xc] sm:$0xf]
    %v1718 = vunpack.c.l.b16 %v1710
    %v1719 = vunpack.c.l.b16 %v1711
    %v1720 = vunpack.c.l.b16 %v1712
    %v1721 = vunpack.c.l.b16 %v1713
    %v1722 = vpack.c.b16 %v1719, %v1718
    %v1723 = vpack.c.b16 %v1721, %v1720
    %v1727 = vsel %vm49, %v1707, 0
    %v1730 = vsel %vm49, %v1708, 0
    %1732 = vmatprep.subr.bf16.mxu0 0
    %1733 = vmatpush1.bf16.msra.mxu0 0
    %1734 = vmatprep.subr.bf16.mxu0 0
    %1735 = vmatpush1.bf16.msra.mxu0 0
    %1736 = vmatprep.subr.bf16.mxu0 0
    %1737 = vmatpush1.bf16.msra.mxu0 0
    %1738 = vmatprep.subr.bf16.mxu0 0
    %1739 = vmatpush1.bf16.msra.mxu0 0
    %1740 = vmatprep.subr.bf16.mxu0 0
    %1741 = vmatpush1.bf16.msra.mxu0 0
    %1742 = vmatprep.subr.bf16.mxu0 0
    %1743 = vmatpush1.bf16.msra.mxu0 0
    %1744 = vmatprep.subr.bf16.mxu0 0
    %1745 = vmatpush1.bf16.msra.mxu0 %v1723
    %1746 = vmatprep.subr.bf16.mxu0 0
    %1747 = vmatpush1.bf16.msra.mxu0 %v1722
    %1748 = vmatprep.subr.bf16.mxu0 0
    %1749 = vmatpush2.bf16.msra.mxu0 0
    %1750 = vmatprep.subr.bf16.mxu0 0
    %1751 = vmatpush2.bf16.msra.mxu0 0
    %1752 = vmatprep.subr.bf16.mxu0 0
    %1753 = vmatpush2.bf16.msra.mxu0 0
    %1754 = vmatprep.subr.bf16.mxu0 0
    %1755 = vmatpush2.bf16.msra.mxu0 0
    %1756 = vmatprep.subr.bf16.mxu0 0
    %1757 = vmatpush2.bf16.msra.mxu0 0
    %1758 = vmatprep.subr.bf16.mxu0 0
    %1759 = vmatpush2.bf16.msra.mxu0 0
    %1760 = vmatprep.subr.bf16.mxu0 0
    %1761 = vmatpush2.bf16.msra.mxu0 0
    %1762 = vmatprep.subr.bf16.mxu0 0
    %1763 = vmatpush2.bf16.msra.mxu0 0
    %1764 = vmatprep.mubr.bf16.mxu0 0
    %1765 = vmatmul.mubr.bf16.gmra.mxu0 %v1727
    %v1766 = vpop.f32.mrf.mxu0
    %v1767 = vadd.f32 0.0, %v1766
    %v1768 = vpop.f32.mrf.mxu0
    %v1769 = vpop.f32.mrf.mxu0
    %v1770 = vadd.f32 0.0, %v1769
    %v1771 = vpop.f32.mrf.mxu0
    %1772 = vmatprep.mubr.bf16.mxu0 0
    %1773 = vmatmul.mubr.bf16.gmra.mxu0 %v1730
    %v1774 = vpop.f32.mrf.mxu0
    %v1775 = vadd.f32 0.0, %v1774
    %v1776 = vpop.f32.mrf.mxu0
    %v1777 = vpop.f32.mrf.mxu0
    %v1778 = vadd.f32 0.0, %v1777
    %v1779 = vpop.f32.mrf.mxu0
    %1780 = vdwg.mxu0
    %v1781 = vpack.c.bf16 %v1770, %v1767
    %v1782 = vpack.c.bf16 %v1778, %v1775
    %1785 = vrot.lane.b32.xlu0 %v1781, 120
    %v1786 = vpop.permute.xlu0 %1785
    %1787 = vrot.lane.b32.xlu0 %v1782, 120
    %v1788 = vpop.permute.xlu0 %1787
    %1789 = vrot.lane.b32.xlu0 %v1781, 112
    %v1790 = vpop.permute.xlu0 %1789
    %1791 = vrot.lane.b32.xlu0 %v1782, 112
    %v1792 = vpop.permute.xlu0 %1791
    %1793 = vrot.lane.b32.xlu0 %v1781, 104
    %v1794 = vpop.permute.xlu0 %1793
    %1795 = vrot.lane.b32.xlu0 %v1782, 104
    %v1796 = vpop.permute.xlu0 %1795
    %1797 = vrot.lane.b32.xlu0 %v1781, 96
    %v1798 = vpop.permute.xlu0 %1797
    %v1800 = vsel %vm214, %v1781, 0
    %v1803 = vsel %vm214, %v1798, 0
    %1805 = vmatprep.subr.bf16.mxu0 0
    %1806 = vmatpush1.bf16.xpose.msra.mxu0 0
    %1807 = vmatprep.subr.bf16.mxu0 0
    %1808 = vmatpush1.bf16.xpose.msra.mxu0 0
    %1809 = vmatprep.subr.bf16.mxu0 0
    %1810 = vmatpush1.bf16.xpose.msra.mxu0 0
    %1811 = vmatprep.subr.bf16.mxu0 0
    %1812 = vmatpush1.bf16.xpose.msra.mxu0 0
    %1813 = vmatprep.subr.bf16.mxu0 0
    %1814 = vmatpush1.bf16.xpose.msra.mxu0 0
    %1815 = vmatprep.subr.bf16.mxu0 0
    %1816 = vmatpush1.bf16.xpose.msra.mxu0 0
    %1817 = vmatprep.subr.bf16.mxu0 0
    %1818 = vmatpush1.bf16.xpose.msra.mxu0 0
    %1819 = vmatprep.subr.bf16.mxu0 0
    %1820 = vmatpush1.bf16.xpose.msra.mxu0 %v1803
    %1821 = vmatprep.subr.bf16.mxu0 0
    %1822 = vmatpush2.bf16.xpose.msra.mxu0 0
    %1823 = vmatprep.subr.bf16.mxu0 0
    %1824 = vmatpush2.bf16.xpose.msra.mxu0 0
    %1825 = vmatprep.subr.bf16.mxu0 0
    %1826 = vmatpush2.bf16.xpose.msra.mxu0 0
    %1827 = vmatprep.subr.bf16.mxu0 0
    %1828 = vmatpush2.bf16.xpose.msra.mxu0 0
    %1829 = vmatprep.subr.bf16.mxu0 0
    %1830 = vmatpush2.bf16.xpose.msra.mxu0 0
    %1831 = vmatprep.subr.bf16.mxu0 0
    %1832 = vmatpush2.bf16.xpose.msra.mxu0 0
    %1833 = vmatprep.subr.bf16.mxu0 0
    %1834 = vmatpush2.bf16.xpose.msra.mxu0 0
    %1835 = vmatprep.subr.bf16.mxu0 0
    %1836 = vmatpush2.bf16.xpose.msra.mxu0 0
    %1837 = vmatprep.mubr.bf16.mxu0 0
    %1838 = vmatmul.mubr.bf16.gmra.mxu0 %v1800
    %v1839 = vpop.f32.mrf.mxu0
    %v1840 = vadd.f32 0.0, %v1839
    %v1841 = vpop.f32.mrf.mxu0
    %v1842 = vpop.f32.mrf.mxu0
    %v1843 = vadd.f32 0.0, %v1842
    %v1844 = vpop.f32.mrf.mxu0
    %1845 = vdwg.mxu0
    %1846 = vrot.lane.b32.xlu0 %v1782, 96
    %v1847 = vpop.permute.xlu0 %1846
    %v1849 = vsel %vm214, %v1782, 0
    %v1852 = vsel %vm214, %v1847, 0
    %1854 = vmatprep.subr.bf16.mxu0 0
    %1855 = vmatpush1.bf16.xpose.msra.mxu0 0
    %1856 = vmatprep.subr.bf16.mxu0 0
    %1857 = vmatpush1.bf16.xpose.msra.mxu0 0
    %1858 = vmatprep.subr.bf16.mxu0 0
    %1859 = vmatpush1.bf16.xpose.msra.mxu0 0
    %1860 = vmatprep.subr.bf16.mxu0 0
    %1861 = vmatpush1.bf16.xpose.msra.mxu0 0
    %1862 = vmatprep.subr.bf16.mxu0 0
    %1863 = vmatpush1.bf16.xpose.msra.mxu0 0
    %1864 = vmatprep.subr.bf16.mxu0 0
    %1865 = vmatpush1.bf16.xpose.msra.mxu0 0
    %1866 = vmatprep.subr.bf16.mxu0 0
    %1867 = vmatpush1.bf16.xpose.msra.mxu0 0
    %1868 = vmatprep.subr.bf16.mxu0 0
    %1869 = vmatpush1.bf16.xpose.msra.mxu0 %v1852
    %1870 = vmatprep.subr.bf16.mxu0 0
    %1871 = vmatpush2.bf16.xpose.msra.mxu0 0
    %1872 = vmatprep.subr.bf16.mxu0 0
    %1873 = vmatpush2.bf16.xpose.msra.mxu0 0
    %1874 = vmatprep.subr.bf16.mxu0 0
    %1875 = vmatpush2.bf16.xpose.msra.mxu0 0
    %1876 = vmatprep.subr.bf16.mxu0 0
    %1877 = vmatpush2.bf16.xpose.msra.mxu0 0
    %1878 = vmatprep.subr.bf16.mxu0 0
    %1879 = vmatpush2.bf16.xpose.msra.mxu0 0
    %1880 = vmatprep.subr.bf16.mxu0 0
    %1881 = vmatpush2.bf16.xpose.msra.mxu0 0
    %1882 = vmatprep.subr.bf16.mxu0 0
    %1883 = vmatpush2.bf16.xpose.msra.mxu0 0
    %1884 = vmatprep.subr.bf16.mxu0 0
    %1885 = vmatpush2.bf16.xpose.msra.mxu0 0
    %1886 = vmatprep.mubr.bf16.mxu0 0
    %1887 = vmatmul.mubr.bf16.gmra.mxu0 %v1849
    %v1888 = vpop.f32.mrf.mxu0
    %v1889 = vadd.f32 0.0, %v1888
    %v1890 = vpop.f32.mrf.mxu0
    %v1891 = vpop.f32.mrf.mxu0
    %v1892 = vadd.f32 0.0, %v1891
    %v1893 = vpop.f32.mrf.mxu0
    %1894 = vdwg.mxu0
    %1895 = vrot.lane.b32.xlu0 %v1786, 96
    %v1896 = vpop.permute.xlu0 %1895
    %v1898 = vsel %vm214, %v1786, 0
    %v1901 = vsel %vm214, %v1896, 0
    %1903 = vmatprep.subr.bf16.mxu0 0
    %1904 = vmatpush1.bf16.xpose.msra.mxu0 0
    %1905 = vmatprep.subr.bf16.mxu0 0
    %1906 = vmatpush1.bf16.xpose.msra.mxu0 0
    %1907 = vmatprep.subr.bf16.mxu0 0
    %1908 = vmatpush1.bf16.xpose.msra.mxu0 0
    %1909 = vmatprep.subr.bf16.mxu0 0
    %1910 = vmatpush1.bf16.xpose.msra.mxu0 0
    %1911 = vmatprep.subr.bf16.mxu0 0
    %1912 = vmatpush1.bf16.xpose.msra.mxu0 0
    %1913 = vmatprep.subr.bf16.mxu0 0
    %1914 = vmatpush1.bf16.xpose.msra.mxu0 0
    %1915 = vmatprep.subr.bf16.mxu0 0
    %1916 = vmatpush1.bf16.xpose.msra.mxu0 0
    %1917 = vmatprep.subr.bf16.mxu0 0
    %1918 = vmatpush1.bf16.xpose.msra.mxu0 %v1901
    %1919 = vmatprep.subr.bf16.mxu0 0
    %1920 = vmatpush2.bf16.xpose.msra.mxu0 0
    %1921 = vmatprep.subr.bf16.mxu0 0
    %1922 = vmatpush2.bf16.xpose.msra.mxu0 0
    %1923 = vmatprep.subr.bf16.mxu0 0
    %1924 = vmatpush2.bf16.xpose.msra.mxu0 0
    %1925 = vmatprep.subr.bf16.mxu0 0
    %1926 = vmatpush2.bf16.xpose.msra.mxu0 0
    %1927 = vmatprep.subr.bf16.mxu0 0
    %1928 = vmatpush2.bf16.xpose.msra.mxu0 0
    %1929 = vmatprep.subr.bf16.mxu0 0
    %1930 = vmatpush2.bf16.xpose.msra.mxu0 0
    %1931 = vmatprep.subr.bf16.mxu0 0
    %1932 = vmatpush2.bf16.xpose.msra.mxu0 0
    %1933 = vmatprep.subr.bf16.mxu0 0
    %1934 = vmatpush2.bf16.xpose.msra.mxu0 0
    %1935 = vmatprep.mubr.bf16.mxu0 0
    %1936 = vmatmul.mubr.bf16.gmra.mxu0 %v1898
    %v1937 = vpop.f32.mrf.mxu0
    %v1938 = vadd.f32 0.0, %v1937
    %v1939 = vpop.f32.mrf.mxu0
    %v1940 = vpop.f32.mrf.mxu0
    %v1941 = vadd.f32 0.0, %v1940
    %v1942 = vpop.f32.mrf.mxu0
    %1943 = vdwg.mxu0
    %1944 = vrot.lane.b32.xlu0 %v1788, 96
    %v1945 = vpop.permute.xlu0 %1944
    %v1947 = vsel %vm214, %v1788, 0
    %v1950 = vsel %vm214, %v1945, 0
    %1952 = vmatprep.subr.bf16.mxu0 0
    %1953 = vmatpush1.bf16.xpose.msra.mxu0 0
    %1954 = vmatprep.subr.bf16.mxu0 0
    %1955 = vmatpush1.bf16.xpose.msra.mxu0 0
    %1956 = vmatprep.subr.bf16.mxu0 0
    %1957 = vmatpush1.bf16.xpose.msra.mxu0 0
    %1958 = vmatprep.subr.bf16.mxu0 0
    %1959 = vmatpush1.bf16.xpose.msra.mxu0 0
    %1960 = vmatprep.subr.bf16.mxu0 0
    %1961 = vmatpush1.bf16.xpose.msra.mxu0 0
    %1962 = vmatprep.subr.bf16.mxu0 0
    %1963 = vmatpush1.bf16.xpose.msra.mxu0 0
    %1964 = vmatprep.subr.bf16.mxu0 0
    %1965 = vmatpush1.bf16.xpose.msra.mxu0 0
    %1966 = vmatprep.subr.bf16.mxu0 0
    %1967 = vmatpush1.bf16.xpose.msra.mxu0 %v1950
    %1968 = vmatprep.subr.bf16.mxu0 0
    %1969 = vmatpush2.bf16.xpose.msra.mxu0 0
    %1970 = vmatprep.subr.bf16.mxu0 0
    %1971 = vmatpush2.bf16.xpose.msra.mxu0 0
    %1972 = vmatprep.subr.bf16.mxu0 0
    %1973 = vmatpush2.bf16.xpose.msra.mxu0 0
    %1974 = vmatprep.subr.bf16.mxu0 0
    %1975 = vmatpush2.bf16.xpose.msra.mxu0 0
    %1976 = vmatprep.subr.bf16.mxu0 0
    %1977 = vmatpush2.bf16.xpose.msra.mxu0 0
    %1978 = vmatprep.subr.bf16.mxu0 0
    %1979 = vmatpush2.bf16.xpose.msra.mxu0 0
    %1980 = vmatprep.subr.bf16.mxu0 0
    %1981 = vmatpush2.bf16.xpose.msra.mxu0 0
    %1982 = vmatprep.subr.bf16.mxu0 0
    %1983 = vmatpush2.bf16.xpose.msra.mxu0 0
    %1984 = vmatprep.mubr.bf16.mxu0 0
    %1985 = vmatmul.mubr.bf16.gmra.mxu0 %v1947
    %v1986 = vpop.f32.mrf.mxu0
    %v1987 = vadd.f32 0.0, %v1986
    %v1988 = vpop.f32.mrf.mxu0
    %v1989 = vpop.f32.mrf.mxu0
    %v1990 = vadd.f32 0.0, %v1989
    %v1991 = vpop.f32.mrf.mxu0
    %1992 = vdwg.mxu0
    %1993 = vrot.lane.b32.xlu0 %v1790, 96
    %v1994 = vpop.permute.xlu0 %1993
    %v1996 = vsel %vm214, %v1790, 0
    %v1999 = vsel %vm214, %v1994, 0
    %2001 = vmatprep.subr.bf16.mxu0 0
    %2002 = vmatpush1.bf16.xpose.msra.mxu0 0
    %2003 = vmatprep.subr.bf16.mxu0 0
    %2004 = vmatpush1.bf16.xpose.msra.mxu0 0
    %2005 = vmatprep.subr.bf16.mxu0 0
    %2006 = vmatpush1.bf16.xpose.msra.mxu0 0
    %2007 = vmatprep.subr.bf16.mxu0 0
    %2008 = vmatpush1.bf16.xpose.msra.mxu0 0
    %2009 = vmatprep.subr.bf16.mxu0 0
    %2010 = vmatpush1.bf16.xpose.msra.mxu0 0
    %2011 = vmatprep.subr.bf16.mxu0 0
    %2012 = vmatpush1.bf16.xpose.msra.mxu0 0
    %2013 = vmatprep.subr.bf16.mxu0 0
    %2014 = vmatpush1.bf16.xpose.msra.mxu0 0
    %2015 = vmatprep.subr.bf16.mxu0 0
    %2016 = vmatpush1.bf16.xpose.msra.mxu0 %v1999
    %2017 = vmatprep.subr.bf16.mxu0 0
    %2018 = vmatpush2.bf16.xpose.msra.mxu0 0
    %2019 = vmatprep.subr.bf16.mxu0 0
    %2020 = vmatpush2.bf16.xpose.msra.mxu0 0
    %2021 = vmatprep.subr.bf16.mxu0 0
    %2022 = vmatpush2.bf16.xpose.msra.mxu0 0
    %2023 = vmatprep.subr.bf16.mxu0 0
    %2024 = vmatpush2.bf16.xpose.msra.mxu0 0
    %2025 = vmatprep.subr.bf16.mxu0 0
    %2026 = vmatpush2.bf16.xpose.msra.mxu0 0
    %2027 = vmatprep.subr.bf16.mxu0 0
    %2028 = vmatpush2.bf16.xpose.msra.mxu0 0
    %2029 = vmatprep.subr.bf16.mxu0 0
    %2030 = vmatpush2.bf16.xpose.msra.mxu0 0
    %2031 = vmatprep.subr.bf16.mxu0 0
    %2032 = vmatpush2.bf16.xpose.msra.mxu0 0
    %2033 = vmatprep.mubr.bf16.mxu0 0
    %2034 = vmatmul.mubr.bf16.gmra.mxu0 %v1996
    %v2035 = vpop.f32.mrf.mxu0
    %v2036 = vadd.f32 0.0, %v2035
    %v2037 = vpop.f32.mrf.mxu0
    %v2038 = vpop.f32.mrf.mxu0
    %v2039 = vadd.f32 0.0, %v2038
    %v2040 = vpop.f32.mrf.mxu0
    %2041 = vdwg.mxu0
    %2042 = vrot.lane.b32.xlu0 %v1792, 96
    %v2043 = vpop.permute.xlu0 %2042
    %v2045 = vsel %vm214, %v1792, 0
    %v2048 = vsel %vm214, %v2043, 0
    %2050 = vmatprep.subr.bf16.mxu0 0
    %2051 = vmatpush1.bf16.xpose.msra.mxu0 0
    %2052 = vmatprep.subr.bf16.mxu0 0
    %2053 = vmatpush1.bf16.xpose.msra.mxu0 0
    %2054 = vmatprep.subr.bf16.mxu0 0
    %2055 = vmatpush1.bf16.xpose.msra.mxu0 0
    %2056 = vmatprep.subr.bf16.mxu0 0
    %2057 = vmatpush1.bf16.xpose.msra.mxu0 0
    %2058 = vmatprep.subr.bf16.mxu0 0
    %2059 = vmatpush1.bf16.xpose.msra.mxu0 0
    %2060 = vmatprep.subr.bf16.mxu0 0
    %2061 = vmatpush1.bf16.xpose.msra.mxu0 0
    %2062 = vmatprep.subr.bf16.mxu0 0
    %2063 = vmatpush1.bf16.xpose.msra.mxu0 0
    %2064 = vmatprep.subr.bf16.mxu0 0
    %2065 = vmatpush1.bf16.xpose.msra.mxu0 %v2048
    %2066 = vmatprep.subr.bf16.mxu0 0
    %2067 = vmatpush2.bf16.xpose.msra.mxu0 0
    %2068 = vmatprep.subr.bf16.mxu0 0
    %2069 = vmatpush2.bf16.xpose.msra.mxu0 0
    %2070 = vmatprep.subr.bf16.mxu0 0
    %2071 = vmatpush2.bf16.xpose.msra.mxu0 0
    %2072 = vmatprep.subr.bf16.mxu0 0
    %2073 = vmatpush2.bf16.xpose.msra.mxu0 0
    %2074 = vmatprep.subr.bf16.mxu0 0
    %2075 = vmatpush2.bf16.xpose.msra.mxu0 0
    %2076 = vmatprep.subr.bf16.mxu0 0
    %2077 = vmatpush2.bf16.xpose.msra.mxu0 0
    %2078 = vmatprep.subr.bf16.mxu0 0
    %2079 = vmatpush2.bf16.xpose.msra.mxu0 0
    %2080 = vmatprep.subr.bf16.mxu0 0
    %2081 = vmatpush2.bf16.xpose.msra.mxu0 0
    %2082 = vmatprep.mubr.bf16.mxu0 0
    %2083 = vmatmul.mubr.bf16.gmra.mxu0 %v2045
    %v2084 = vpop.f32.mrf.mxu0
    %v2085 = vadd.f32 0.0, %v2084
    %v2086 = vpop.f32.mrf.mxu0
    %v2087 = vpop.f32.mrf.mxu0
    %v2088 = vadd.f32 0.0, %v2087
    %v2089 = vpop.f32.mrf.mxu0
    %2090 = vdwg.mxu0
    %2091 = vrot.lane.b32.xlu0 %v1794, 96
    %v2092 = vpop.permute.xlu0 %2091
    %v2094 = vsel %vm214, %v1794, 0
    %v2097 = vsel %vm214, %v2092, 0
    %2099 = vmatprep.subr.bf16.mxu0 0
    %2100 = vmatpush1.bf16.xpose.msra.mxu0 0
    %2101 = vmatprep.subr.bf16.mxu0 0
    %2102 = vmatpush1.bf16.xpose.msra.mxu0 0
    %2103 = vmatprep.subr.bf16.mxu0 0
    %2104 = vmatpush1.bf16.xpose.msra.mxu0 0
    %2105 = vmatprep.subr.bf16.mxu0 0
    %2106 = vmatpush1.bf16.xpose.msra.mxu0 0
    %2107 = vmatprep.subr.bf16.mxu0 0
    %2108 = vmatpush1.bf16.xpose.msra.mxu0 0
    %2109 = vmatprep.subr.bf16.mxu0 0
    %2110 = vmatpush1.bf16.xpose.msra.mxu0 0
    %2111 = vmatprep.subr.bf16.mxu0 0
    %2112 = vmatpush1.bf16.xpose.msra.mxu0 0
    %2113 = vmatprep.subr.bf16.mxu0 0
    %2114 = vmatpush1.bf16.xpose.msra.mxu0 %v2097
    %2115 = vmatprep.subr.bf16.mxu0 0
    %2116 = vmatpush2.bf16.xpose.msra.mxu0 0
    %2117 = vmatprep.subr.bf16.mxu0 0
    %2118 = vmatpush2.bf16.xpose.msra.mxu0 0
    %2119 = vmatprep.subr.bf16.mxu0 0
    %2120 = vmatpush2.bf16.xpose.msra.mxu0 0
    %2121 = vmatprep.subr.bf16.mxu0 0
    %2122 = vmatpush2.bf16.xpose.msra.mxu0 0
    %2123 = vmatprep.subr.bf16.mxu0 0
    %2124 = vmatpush2.bf16.xpose.msra.mxu0 0
    %2125 = vmatprep.subr.bf16.mxu0 0
    %2126 = vmatpush2.bf16.xpose.msra.mxu0 0
    %2127 = vmatprep.subr.bf16.mxu0 0
    %2128 = vmatpush2.bf16.xpose.msra.mxu0 0
    %2129 = vmatprep.subr.bf16.mxu0 0
    %2130 = vmatpush2.bf16.xpose.msra.mxu0 0
    %2131 = vmatprep.mubr.bf16.mxu0 0
    %2132 = vmatmul.mubr.bf16.gmra.mxu0 %v2094
    %v2133 = vpop.f32.mrf.mxu0
    %v2134 = vadd.f32 0.0, %v2133
    %v2135 = vpop.f32.mrf.mxu0
    %v2136 = vpop.f32.mrf.mxu0
    %v2137 = vadd.f32 0.0, %v2136
    %v2138 = vpop.f32.mrf.mxu0
    %2139 = vdwg.mxu0
    %2140 = vrot.lane.b32.xlu0 %v1796, 96
    %v2141 = vpop.permute.xlu0 %2140
    %v2143 = vsel %vm214, %v1796, 0
    %v2146 = vsel %vm214, %v2141, 0
    %2148 = vmatprep.subr.bf16.mxu0 0
    %2149 = vmatpush1.bf16.xpose.msra.mxu0 0
    %2150 = vmatprep.subr.bf16.mxu0 0
    %2151 = vmatpush1.bf16.xpose.msra.mxu0 0
    %2152 = vmatprep.subr.bf16.mxu0 0
    %2153 = vmatpush1.bf16.xpose.msra.mxu0 0
    %2154 = vmatprep.subr.bf16.mxu0 0
    %2155 = vmatpush1.bf16.xpose.msra.mxu0 0
    %2156 = vmatprep.subr.bf16.mxu0 0
    %2157 = vmatpush1.bf16.xpose.msra.mxu0 0
    %2158 = vmatprep.subr.bf16.mxu0 0
    %2159 = vmatpush1.bf16.xpose.msra.mxu0 0
    %2160 = vmatprep.subr.bf16.mxu0 0
    %2161 = vmatpush1.bf16.xpose.msra.mxu0 0
    %2162 = vmatprep.subr.bf16.mxu0 0
    %2163 = vmatpush1.bf16.xpose.msra.mxu0 %v2146
    %2164 = vmatprep.subr.bf16.mxu0 0
    %2165 = vmatpush2.bf16.xpose.msra.mxu0 0
    %2166 = vmatprep.subr.bf16.mxu0 0
    %2167 = vmatpush2.bf16.xpose.msra.mxu0 0
    %2168 = vmatprep.subr.bf16.mxu0 0
    %2169 = vmatpush2.bf16.xpose.msra.mxu0 0
    %2170 = vmatprep.subr.bf16.mxu0 0
    %2171 = vmatpush2.bf16.xpose.msra.mxu0 0
    %2172 = vmatprep.subr.bf16.mxu0 0
    %2173 = vmatpush2.bf16.xpose.msra.mxu0 0
    %2174 = vmatprep.subr.bf16.mxu0 0
    %2175 = vmatpush2.bf16.xpose.msra.mxu0 0
    %2176 = vmatprep.subr.bf16.mxu0 0
    %2177 = vmatpush2.bf16.xpose.msra.mxu0 0
    %2178 = vmatprep.subr.bf16.mxu0 0
    %2179 = vmatpush2.bf16.xpose.msra.mxu0 0
    %2180 = vmatprep.mubr.bf16.mxu0 0
    %2181 = vmatmul.mubr.bf16.gmra.mxu0 %v2143
    %v2182 = vpop.f32.mrf.mxu0
    %v2183 = vadd.f32 0.0, %v2182
    %v2184 = vpop.f32.mrf.mxu0
    %v2185 = vpop.f32.mrf.mxu0
    %v2186 = vadd.f32 0.0, %v2185
    %v2187 = vpop.f32.mrf.mxu0
    %2188 = vdwg.mxu0
    %v2189 = vsel %vm605, %v1840, -inf
    %2190 = vmax.xlane.f32.xlu0 %v2189
    %v2191 = vpop.xlane.xlu0 %2190
    %v2192 = vsel %vm605, %v1843, -inf
    %2193 = vmax.xlane.f32.xlu0 %v2192
    %v2194 = vpop.xlane.xlu0 %2193
    %v2195 = vsel %vm605, %v1889, -inf
    %2196 = vmax.xlane.f32.xlu0 %v2195
    %v2197 = vpop.xlane.xlu0 %2196
    %v2198 = vsel %vm605, %v1892, -inf
    %2199 = vmax.xlane.f32.xlu0 %v2198
    %v2200 = vpop.xlane.xlu0 %2199
    %v2201 = vsel %vm605, %v1938, -inf
    %2202 = vmax.xlane.f32.xlu0 %v2201
    %v2203 = vpop.xlane.xlu0 %2202
    %v2204 = vsel %vm605, %v1941, -inf
    %2205 = vmax.xlane.f32.xlu0 %v2204
    %v2206 = vpop.xlane.xlu0 %2205
    %v2207 = vsel %vm605, %v1987, -inf
    %2208 = vmax.xlane.f32.xlu0 %v2207
    %v2209 = vpop.xlane.xlu0 %2208
    %v2210 = vsel %vm605, %v1990, -inf
    %2211 = vmax.xlane.f32.xlu0 %v2210
    %v2212 = vpop.xlane.xlu0 %2211
    %v2213 = vsel %vm605, %v2036, -inf
    %2214 = vmax.xlane.f32.xlu0 %v2213
    %v2215 = vpop.xlane.xlu0 %2214
    %v2216 = vsel %vm605, %v2039, -inf
    %2217 = vmax.xlane.f32.xlu0 %v2216
    %v2218 = vpop.xlane.xlu0 %2217
    %v2219 = vsel %vm605, %v2085, -inf
    %2220 = vmax.xlane.f32.xlu0 %v2219
    %v2221 = vpop.xlane.xlu0 %2220
    %v2222 = vsel %vm605, %v2088, -inf
    %2223 = vmax.xlane.f32.xlu0 %v2222
    %v2224 = vpop.xlane.xlu0 %2223
    %v2225 = vsel %vm605, %v2134, -inf
    %2226 = vmax.xlane.f32.xlu0 %v2225
    %v2227 = vpop.xlane.xlu0 %2226
    %v2228 = vsel %vm605, %v2137, -inf
    %2229 = vmax.xlane.f32.xlu0 %v2228
    %v2230 = vpop.xlane.xlu0 %2229
    %v2231 = vsel %vm605, %v2183, -inf
    %2232 = vmax.xlane.f32.xlu0 %v2231
    %v2233 = vpop.xlane.xlu0 %2232
    %v2234 = vsel %vm605, %v2186, -inf
    %2235 = vmax.xlane.f32.xlu0 %v2234
    %v2236 = vpop.xlane.xlu0 %2235
    %v2237 = vsub.f32 %v1840, %v2191
    %v2238 = vsub.f32 %v1843, %v2194
    %v2239 = vsub.f32 %v1889, %v2197
    %v2240 = vsub.f32 %v1892, %v2200
    %v2241 = vsub.f32 %v1938, %v2203
    %v2242 = vsub.f32 %v1941, %v2206
    %v2243 = vsub.f32 %v1987, %v2209
    %v2244 = vsub.f32 %v1990, %v2212
    %v2245 = vsub.f32 %v2036, %v2215
    %v2246 = vsub.f32 %v2039, %v2218
    %v2247 = vsub.f32 %v2085, %v2221
    %v2248 = vsub.f32 %v2088, %v2224
    %v2249 = vsub.f32 %v2134, %v2227
    %v2250 = vsub.f32 %v2137, %v2230
    %v2251 = vsub.f32 %v2183, %v2233
    %v2252 = vsub.f32 %v2186, %v2236
    %v2253 = vmul.f32 %v2237, 1.442695
    %v2254 = vpow.pop %v2253
    %v2255 = vmul.f32 %v2238, 1.442695
    %v2256 = vpow.pop %v2255
    %v2257 = vmul.f32 %v2239, 1.442695
    %v2258 = vpow.pop %v2257
    %v2259 = vmul.f32 %v2240, 1.442695
    %v2260 = vpow.pop %v2259
    %v2261 = vmul.f32 %v2241, 1.442695
    %v2262 = vpow.pop %v2261
    %v2263 = vmul.f32 %v2242, 1.442695
    %v2264 = vpow.pop %v2263
    %v2265 = vmul.f32 %v2243, 1.442695
    %v2266 = vpow.pop %v2265
    %v2267 = vmul.f32 %v2244, 1.442695
    %v2268 = vpow.pop %v2267
    %v2269 = vmul.f32 %v2245, 1.442695
    %v2270 = vpow.pop %v2269
    %v2271 = vmul.f32 %v2246, 1.442695
    %v2272 = vpow.pop %v2271
    %v2273 = vmul.f32 %v2247, 1.442695
    %v2274 = vpow.pop %v2273
    %v2275 = vmul.f32 %v2248, 1.442695
    %v2276 = vpow.pop %v2275
    %v2277 = vmul.f32 %v2249, 1.442695
    %v2278 = vpow.pop %v2277
    %v2279 = vmul.f32 %v2250, 1.442695
    %v2280 = vpow.pop %v2279
    %v2281 = vmul.f32 %v2251, 1.442695
    %v2282 = vpow.pop %v2281
    %v2283 = vmul.f32 %v2252, 1.442695
    %v2284 = vpow.pop %v2283
    %v2285 = vsel %vm605, %v2254, 0.0
    %2286 = vadd.xlane.f32.xlu0 %v2285
    %v2287 = vpop.xlane.xlu0 %2286
    %v2288 = vsel %vm605, %v2256, 0.0
    %2289 = vadd.xlane.f32.xlu0 %v2288
    %v2290 = vpop.xlane.xlu0 %2289
    %v2291 = vsel %vm605, %v2258, 0.0
    %2292 = vadd.xlane.f32.xlu0 %v2291
    %v2293 = vpop.xlane.xlu0 %2292
    %v2294 = vsel %vm605, %v2260, 0.0
    %2295 = vadd.xlane.f32.xlu0 %v2294
    %v2296 = vpop.xlane.xlu0 %2295
    %v2297 = vsel %vm605, %v2262, 0.0
    %2298 = vadd.xlane.f32.xlu0 %v2297
    %v2299 = vpop.xlane.xlu0 %2298
    %v2300 = vsel %vm605, %v2264, 0.0
    %2301 = vadd.xlane.f32.xlu0 %v2300
    %v2302 = vpop.xlane.xlu0 %2301
    %v2303 = vsel %vm605, %v2266, 0.0
    %2304 = vadd.xlane.f32.xlu0 %v2303
    %v2305 = vpop.xlane.xlu0 %2304
    %v2306 = vsel %vm605, %v2268, 0.0
    %2307 = vadd.xlane.f32.xlu0 %v2306
    %v2308 = vpop.xlane.xlu0 %2307
    %v2309 = vsel %vm605, %v2270, 0.0
    %2310 = vadd.xlane.f32.xlu0 %v2309
    %v2311 = vpop.xlane.xlu0 %2310
    %v2312 = vsel %vm605, %v2272, 0.0
    %2313 = vadd.xlane.f32.xlu0 %v2312
    %v2314 = vpop.xlane.xlu0 %2313
    %v2315 = vsel %vm605, %v2274, 0.0
    %2316 = vadd.xlane.f32.xlu0 %v2315
    %v2317 = vpop.xlane.xlu0 %2316
    %v2318 = vsel %vm605, %v2276, 0.0
    %2319 = vadd.xlane.f32.xlu0 %v2318
    %v2320 = vpop.xlane.xlu0 %2319
    %v2321 = vsel %vm605, %v2278, 0.0
    %2322 = vadd.xlane.f32.xlu0 %v2321
    %v2323 = vpop.xlane.xlu0 %2322
    %v2324 = vsel %vm605, %v2280, 0.0
    %2325 = vadd.xlane.f32.xlu0 %v2324
    %v2326 = vpop.xlane.xlu0 %2325
    %v2327 = vsel %vm605, %v2282, 0.0
    %2328 = vadd.xlane.f32.xlu0 %v2327
    %v2329 = vpop.xlane.xlu0 %2328
    %v2330 = vsel %vm605, %v2284, 0.0
    %2331 = vadd.xlane.f32.xlu0 %v2330
    %v2332 = vpop.xlane.xlu0 %2331
    %v2333 = vrcp.pop %v2287
    %v2334 = vrcp.pop %v2290
    %v2335 = vrcp.pop %v2293
    %v2336 = vrcp.pop %v2296
    %v2337 = vrcp.pop %v2299
    %v2338 = vrcp.pop %v2302
    %v2339 = vrcp.pop %v2305
    %v2340 = vrcp.pop %v2308
    %v2341 = vrcp.pop %v2311
    %v2342 = vrcp.pop %v2314
    %v2343 = vrcp.pop %v2317
    %v2344 = vrcp.pop %v2320
    %v2345 = vrcp.pop %v2323
    %v2346 = vrcp.pop %v2326
    %v2347 = vrcp.pop %v2329
    %v2348 = vrcp.pop %v2332
    %v2349 = vmul.f32 %v2254, %v2333
    %v2350 = vmul.f32 %v2256, %v2334
    %v2351 = vmul.f32 %v2258, %v2335
    %v2352 = vmul.f32 %v2260, %v2336
    %v2353 = vmul.f32 %v2262, %v2337
    %v2354 = vmul.f32 %v2264, %v2338
    %v2355 = vmul.f32 %v2266, %v2339
    %v2356 = vmul.f32 %v2268, %v2340
    %v2357 = vmul.f32 %v2270, %v2341
    %v2358 = vmul.f32 %v2272, %v2342
    %v2359 = vmul.f32 %v2274, %v2343
    %v2360 = vmul.f32 %v2276, %v2344
    %v2361 = vmul.f32 %v2278, %v2345
    %v2362 = vmul.f32 %v2280, %v2346
    %v2363 = vmul.f32 %v2282, %v2347
    %v2364 = vmul.f32 %v2284, %v2348
    %v2365 = vpack.c.bf16 %v2350, %v2349
    %v2366 = vpack.c.bf16 %v2352, %v2351
    %v2367 = vpack.c.bf16 %v2354, %v2353
    %v2368 = vpack.c.bf16 %v2356, %v2355
    %v2369 = vpack.c.bf16 %v2358, %v2357
    %v2370 = vpack.c.bf16 %v2360, %v2359
    %v2371 = vpack.c.bf16 %v2362, %v2361
    %v2372 = vpack.c.bf16 %v2364, %v2363
    %2373 = vrot.lane.b32.xlu0 %v1781, 64
    %v2374 = vpop.permute.xlu0 %2373
    %v2377 = vsel %vm605, %v2365, 0
    %2379 = vmatprep.subr.bf16.mxu0 0
    %2380 = vmatpush1.bf16.msra.mxu0 0
    %2381 = vmatprep.subr.bf16.mxu0 0
    %2382 = vmatpush1.bf16.msra.mxu0 0
    %2383 = vmatprep.subr.bf16.mxu0 0
    %2384 = vmatpush1.bf16.msra.mxu0 0
    %2385 = vmatprep.subr.bf16.mxu0 0
    %2386 = vmatpush1.bf16.msra.mxu0 0
    %2387 = vmatprep.subr.bf16.mxu0 0
    %2388 = vmatpush1.bf16.msra.mxu0 0
    %2389 = vmatprep.subr.bf16.mxu0 0
    %2390 = vmatpush1.bf16.msra.mxu0 0
    %2391 = vmatprep.subr.bf16.mxu0 0
    %2392 = vmatpush1.bf16.msra.mxu0 0
    %2393 = vmatprep.subr.bf16.mxu0 0
    %2394 = vmatpush1.bf16.msra.mxu0 %v2374
    %2395 = vmatprep.subr.bf16.mxu0 0
    %2396 = vmatpush2.bf16.msra.mxu0 0
    %2397 = vmatprep.subr.bf16.mxu0 0
    %2398 = vmatpush2.bf16.msra.mxu0 0
    %2399 = vmatprep.subr.bf16.mxu0 0
    %2400 = vmatpush2.bf16.msra.mxu0 0
    %2401 = vmatprep.subr.bf16.mxu0 0
    %2402 = vmatpush2.bf16.msra.mxu0 0
    %2403 = vmatprep.subr.bf16.mxu0 0
    %2404 = vmatpush2.bf16.msra.mxu0 0
    %2405 = vmatprep.subr.bf16.mxu0 0
    %2406 = vmatpush2.bf16.msra.mxu0 0
    %2407 = vmatprep.subr.bf16.mxu0 0
    %2408 = vmatpush2.bf16.msra.mxu0 0
    %2409 = vmatprep.subr.bf16.mxu0 0
    %2410 = vmatpush2.bf16.msra.mxu0 0
    %2411 = vmatprep.mubr.bf16.mxu0 0
    %2412 = vmatmul.mubr.bf16.gmra.mxu0 %v2377
    %v2413 = vpop.f32.mrf.mxu0
    %v2414 = vadd.f32 0.0, %v2413
    %v2415 = vpop.f32.mrf.mxu0
    %v2416 = vpop.f32.mrf.mxu0
    %v2417 = vadd.f32 0.0, %v2416
    %v2418 = vpop.f32.mrf.mxu0
    %2419 = vdwg.mxu0
    %2420 = vrot.lane.b32.xlu0 %v1782, 64
    %v2421 = vpop.permute.xlu0 %2420
    %v2424 = vsel %vm605, %v2366, 0
    %2426 = vmatprep.subr.bf16.mxu0 0
    %2427 = vmatpush1.bf16.msra.mxu0 0
    %2428 = vmatprep.subr.bf16.mxu0 0
    %2429 = vmatpush1.bf16.msra.mxu0 0
    %2430 = vmatprep.subr.bf16.mxu0 0
    %2431 = vmatpush1.bf16.msra.mxu0 0
    %2432 = vmatprep.subr.bf16.mxu0 0
    %2433 = vmatpush1.bf16.msra.mxu0 0
    %2434 = vmatprep.subr.bf16.mxu0 0
    %2435 = vmatpush1.bf16.msra.mxu0 0
    %2436 = vmatprep.subr.bf16.mxu0 0
    %2437 = vmatpush1.bf16.msra.mxu0 0
    %2438 = vmatprep.subr.bf16.mxu0 0
    %2439 = vmatpush1.bf16.msra.mxu0 0
    %2440 = vmatprep.subr.bf16.mxu0 0
    %2441 = vmatpush1.bf16.msra.mxu0 %v2421
    %2442 = vmatprep.subr.bf16.mxu0 0
    %2443 = vmatpush2.bf16.msra.mxu0 0
    %2444 = vmatprep.subr.bf16.mxu0 0
    %2445 = vmatpush2.bf16.msra.mxu0 0
    %2446 = vmatprep.subr.bf16.mxu0 0
    %2447 = vmatpush2.bf16.msra.mxu0 0
    %2448 = vmatprep.subr.bf16.mxu0 0
    %2449 = vmatpush2.bf16.msra.mxu0 0
    %2450 = vmatprep.subr.bf16.mxu0 0
    %2451 = vmatpush2.bf16.msra.mxu0 0
    %2452 = vmatprep.subr.bf16.mxu0 0
    %2453 = vmatpush2.bf16.msra.mxu0 0
    %2454 = vmatprep.subr.bf16.mxu0 0
    %2455 = vmatpush2.bf16.msra.mxu0 0
    %2456 = vmatprep.subr.bf16.mxu0 0
    %2457 = vmatpush2.bf16.msra.mxu0 0
    %2458 = vmatprep.mubr.bf16.mxu0 0
    %2459 = vmatmul.mubr.bf16.gmra.mxu0 %v2424
    %v2460 = vpop.f32.mrf.mxu0
    %v2461 = vadd.f32 0.0, %v2460
    %v2462 = vpop.f32.mrf.mxu0
    %v2463 = vpop.f32.mrf.mxu0
    %v2464 = vadd.f32 0.0, %v2463
    %v2465 = vpop.f32.mrf.mxu0
    %2466 = vdwg.mxu0
    %2467 = vrot.lane.b32.xlu0 %v1786, 64
    %v2468 = vpop.permute.xlu0 %2467
    %v2471 = vsel %vm605, %v2367, 0
    %2473 = vmatprep.subr.bf16.mxu0 0
    %2474 = vmatpush1.bf16.msra.mxu0 0
    %2475 = vmatprep.subr.bf16.mxu0 0
    %2476 = vmatpush1.bf16.msra.mxu0 0
    %2477 = vmatprep.subr.bf16.mxu0 0
    %2478 = vmatpush1.bf16.msra.mxu0 0
    %2479 = vmatprep.subr.bf16.mxu0 0
    %2480 = vmatpush1.bf16.msra.mxu0 0
    %2481 = vmatprep.subr.bf16.mxu0 0
    %2482 = vmatpush1.bf16.msra.mxu0 0
    %2483 = vmatprep.subr.bf16.mxu0 0
    %2484 = vmatpush1.bf16.msra.mxu0 0
    %2485 = vmatprep.subr.bf16.mxu0 0
    %2486 = vmatpush1.bf16.msra.mxu0 0
    %2487 = vmatprep.subr.bf16.mxu0 0
    %2488 = vmatpush1.bf16.msra.mxu0 %v2468
    %2489 = vmatprep.subr.bf16.mxu0 0
    %2490 = vmatpush2.bf16.msra.mxu0 0
    %2491 = vmatprep.subr.bf16.mxu0 0
    %2492 = vmatpush2.bf16.msra.mxu0 0
    %2493 = vmatprep.subr.bf16.mxu0 0
    %2494 = vmatpush2.bf16.msra.mxu0 0
    %2495 = vmatprep.subr.bf16.mxu0 0
    %2496 = vmatpush2.bf16.msra.mxu0 0
    %2497 = vmatprep.subr.bf16.mxu0 0
    %2498 = vmatpush2.bf16.msra.mxu0 0
    %2499 = vmatprep.subr.bf16.mxu0 0
    %2500 = vmatpush2.bf16.msra.mxu0 0
    %2501 = vmatprep.subr.bf16.mxu0 0
    %2502 = vmatpush2.bf16.msra.mxu0 0
    %2503 = vmatprep.subr.bf16.mxu0 0
    %2504 = vmatpush2.bf16.msra.mxu0 0
    %2505 = vmatprep.mubr.bf16.mxu0 0
    %2506 = vmatmul.mubr.bf16.gmra.mxu0 %v2471
    %v2507 = vpop.f32.mrf.mxu0
    %v2508 = vadd.f32 0.0, %v2507
    %v2509 = vpop.f32.mrf.mxu0
    %v2510 = vpop.f32.mrf.mxu0
    %v2511 = vadd.f32 0.0, %v2510
    %v2512 = vpop.f32.mrf.mxu0
    %2513 = vdwg.mxu0
    %2514 = vrot.lane.b32.xlu0 %v1788, 64
    %v2515 = vpop.permute.xlu0 %2514
    %v2518 = vsel %vm605, %v2368, 0
    %2520 = vmatprep.subr.bf16.mxu0 0
    %2521 = vmatpush1.bf16.msra.mxu0 0
    %2522 = vmatprep.subr.bf16.mxu0 0
    %2523 = vmatpush1.bf16.msra.mxu0 0
    %2524 = vmatprep.subr.bf16.mxu0 0
    %2525 = vmatpush1.bf16.msra.mxu0 0
    %2526 = vmatprep.subr.bf16.mxu0 0
    %2527 = vmatpush1.bf16.msra.mxu0 0
    %2528 = vmatprep.subr.bf16.mxu0 0
    %2529 = vmatpush1.bf16.msra.mxu0 0
    %2530 = vmatprep.subr.bf16.mxu0 0
    %2531 = vmatpush1.bf16.msra.mxu0 0
    %2532 = vmatprep.subr.bf16.mxu0 0
    %2533 = vmatpush1.bf16.msra.mxu0 0
    %2534 = vmatprep.subr.bf16.mxu0 0
    %2535 = vmatpush1.bf16.msra.mxu0 %v2515
    %2536 = vmatprep.subr.bf16.mxu0 0
    %2537 = vmatpush2.bf16.msra.mxu0 0
    %2538 = vmatprep.subr.bf16.mxu0 0
    %2539 = vmatpush2.bf16.msra.mxu0 0
    %2540 = vmatprep.subr.bf16.mxu0 0
    %2541 = vmatpush2.bf16.msra.mxu0 0
    %2542 = vmatprep.subr.bf16.mxu0 0
    %2543 = vmatpush2.bf16.msra.mxu0 0
    %2544 = vmatprep.subr.bf16.mxu0 0
    %2545 = vmatpush2.bf16.msra.mxu0 0
    %2546 = vmatprep.subr.bf16.mxu0 0
    %2547 = vmatpush2.bf16.msra.mxu0 0
    %2548 = vmatprep.subr.bf16.mxu0 0
    %2549 = vmatpush2.bf16.msra.mxu0 0
    %2550 = vmatprep.subr.bf16.mxu0 0
    %2551 = vmatpush2.bf16.msra.mxu0 0
    %2552 = vmatprep.mubr.bf16.mxu0 0
    %2553 = vmatmul.mubr.bf16.gmra.mxu0 %v2518
    %v2554 = vpop.f32.mrf.mxu0
    %v2555 = vadd.f32 0.0, %v2554
    %v2556 = vpop.f32.mrf.mxu0
    %v2557 = vpop.f32.mrf.mxu0
    %v2558 = vadd.f32 0.0, %v2557
    %v2559 = vpop.f32.mrf.mxu0
    %2560 = vdwg.mxu0
    %2561 = vrot.lane.b32.xlu0 %v1790, 64
    %v2562 = vpop.permute.xlu0 %2561
    %v2565 = vsel %vm605, %v2369, 0
    %2567 = vmatprep.subr.bf16.mxu0 0
    %2568 = vmatpush1.bf16.msra.mxu0 0
    %2569 = vmatprep.subr.bf16.mxu0 0
    %2570 = vmatpush1.bf16.msra.mxu0 0
    %2571 = vmatprep.subr.bf16.mxu0 0
    %2572 = vmatpush1.bf16.msra.mxu0 0
    %2573 = vmatprep.subr.bf16.mxu0 0
    %2574 = vmatpush1.bf16.msra.mxu0 0
    %2575 = vmatprep.subr.bf16.mxu0 0
    %2576 = vmatpush1.bf16.msra.mxu0 0
    %2577 = vmatprep.subr.bf16.mxu0 0
    %2578 = vmatpush1.bf16.msra.mxu0 0
    %2579 = vmatprep.subr.bf16.mxu0 0
    %2580 = vmatpush1.bf16.msra.mxu0 0
    %2581 = vmatprep.subr.bf16.mxu0 0
    %2582 = vmatpush1.bf16.msra.mxu0 %v2562
    %2583 = vmatprep.subr.bf16.mxu0 0
    %2584 = vmatpush2.bf16.msra.mxu0 0
    %2585 = vmatprep.subr.bf16.mxu0 0
    %2586 = vmatpush2.bf16.msra.mxu0 0
    %2587 = vmatprep.subr.bf16.mxu0 0
    %2588 = vmatpush2.bf16.msra.mxu0 0
    %2589 = vmatprep.subr.bf16.mxu0 0
    %2590 = vmatpush2.bf16.msra.mxu0 0
    %2591 = vmatprep.subr.bf16.mxu0 0
    %2592 = vmatpush2.bf16.msra.mxu0 0
    %2593 = vmatprep.subr.bf16.mxu0 0
    %2594 = vmatpush2.bf16.msra.mxu0 0
    %2595 = vmatprep.subr.bf16.mxu0 0
    %2596 = vmatpush2.bf16.msra.mxu0 0
    %2597 = vmatprep.subr.bf16.mxu0 0
    %2598 = vmatpush2.bf16.msra.mxu0 0
    %2599 = vmatprep.mubr.bf16.mxu0 0
    %2600 = vmatmul.mubr.bf16.gmra.mxu0 %v2565
    %v2601 = vpop.f32.mrf.mxu0
    %v2602 = vadd.f32 0.0, %v2601
    %v2603 = vpop.f32.mrf.mxu0
    %v2604 = vpop.f32.mrf.mxu0
    %v2605 = vadd.f32 0.0, %v2604
    %v2606 = vpop.f32.mrf.mxu0
    %2607 = vdwg.mxu0
    %2608 = vrot.lane.b32.xlu0 %v1792, 64
    %v2609 = vpop.permute.xlu0 %2608
    %v2612 = vsel %vm605, %v2370, 0
    %2614 = vmatprep.subr.bf16.mxu0 0
    %2615 = vmatpush1.bf16.msra.mxu0 0
    %2616 = vmatprep.subr.bf16.mxu0 0
    %2617 = vmatpush1.bf16.msra.mxu0 0
    %2618 = vmatprep.subr.bf16.mxu0 0
    %2619 = vmatpush1.bf16.msra.mxu0 0
    %2620 = vmatprep.subr.bf16.mxu0 0
    %2621 = vmatpush1.bf16.msra.mxu0 0
    %2622 = vmatprep.subr.bf16.mxu0 0
    %2623 = vmatpush1.bf16.msra.mxu0 0
    %2624 = vmatprep.subr.bf16.mxu0 0
    %2625 = vmatpush1.bf16.msra.mxu0 0
    %2626 = vmatprep.subr.bf16.mxu0 0
    %2627 = vmatpush1.bf16.msra.mxu0 0
    %2628 = vmatprep.subr.bf16.mxu0 0
    %2629 = vmatpush1.bf16.msra.mxu0 %v2609
    %2630 = vmatprep.subr.bf16.mxu0 0
    %2631 = vmatpush2.bf16.msra.mxu0 0
    %2632 = vmatprep.subr.bf16.mxu0 0
    %2633 = vmatpush2.bf16.msra.mxu0 0
    %2634 = vmatprep.subr.bf16.mxu0 0
    %2635 = vmatpush2.bf16.msra.mxu0 0
    %2636 = vmatprep.subr.bf16.mxu0 0
    %2637 = vmatpush2.bf16.msra.mxu0 0
    %2638 = vmatprep.subr.bf16.mxu0 0
    %2639 = vmatpush2.bf16.msra.mxu0 0
    %2640 = vmatprep.subr.bf16.mxu0 0
    %2641 = vmatpush2.bf16.msra.mxu0 0
    %2642 = vmatprep.subr.bf16.mxu0 0
    %2643 = vmatpush2.bf16.msra.mxu0 0
    %2644 = vmatprep.subr.bf16.mxu0 0
    %2645 = vmatpush2.bf16.msra.mxu0 0
    %2646 = vmatprep.mubr.bf16.mxu0 0
    %2647 = vmatmul.mubr.bf16.gmra.mxu0 %v2612
    %v2648 = vpop.f32.mrf.mxu0
    %v2649 = vadd.f32 0.0, %v2648
    %v2650 = vpop.f32.mrf.mxu0
    %v2651 = vpop.f32.mrf.mxu0
    %v2652 = vadd.f32 0.0, %v2651
    %v2653 = vpop.f32.mrf.mxu0
    %2654 = vdwg.mxu0
    %2655 = vrot.lane.b32.xlu0 %v1794, 64
    %v2656 = vpop.permute.xlu0 %2655
    %v2659 = vsel %vm605, %v2371, 0
    %2661 = vmatprep.subr.bf16.mxu0 0
    %2662 = vmatpush1.bf16.msra.mxu0 0
    %2663 = vmatprep.subr.bf16.mxu0 0
    %2664 = vmatpush1.bf16.msra.mxu0 0
    %2665 = vmatprep.subr.bf16.mxu0 0
    %2666 = vmatpush1.bf16.msra.mxu0 0
    %2667 = vmatprep.subr.bf16.mxu0 0
    %2668 = vmatpush1.bf16.msra.mxu0 0
    %2669 = vmatprep.subr.bf16.mxu0 0
    %2670 = vmatpush1.bf16.msra.mxu0 0
    %2671 = vmatprep.subr.bf16.mxu0 0
    %2672 = vmatpush1.bf16.msra.mxu0 0
    %2673 = vmatprep.subr.bf16.mxu0 0
    %2674 = vmatpush1.bf16.msra.mxu0 0
    %2675 = vmatprep.subr.bf16.mxu0 0
    %2676 = vmatpush1.bf16.msra.mxu0 %v2656
    %2677 = vmatprep.subr.bf16.mxu0 0
    %2678 = vmatpush2.bf16.msra.mxu0 0
    %2679 = vmatprep.subr.bf16.mxu0 0
    %2680 = vmatpush2.bf16.msra.mxu0 0
    %2681 = vmatprep.subr.bf16.mxu0 0
    %2682 = vmatpush2.bf16.msra.mxu0 0
    %2683 = vmatprep.subr.bf16.mxu0 0
    %2684 = vmatpush2.bf16.msra.mxu0 0
    %2685 = vmatprep.subr.bf16.mxu0 0
    %2686 = vmatpush2.bf16.msra.mxu0 0
    %2687 = vmatprep.subr.bf16.mxu0 0
    %2688 = vmatpush2.bf16.msra.mxu0 0
    %2689 = vmatprep.subr.bf16.mxu0 0
    %2690 = vmatpush2.bf16.msra.mxu0 0
    %2691 = vmatprep.subr.bf16.mxu0 0
    %2692 = vmatpush2.bf16.msra.mxu0 0
    %2693 = vmatprep.mubr.bf16.mxu0 0
    %2694 = vmatmul.mubr.bf16.gmra.mxu0 %v2659
    %v2695 = vpop.f32.mrf.mxu0
    %v2696 = vadd.f32 0.0, %v2695
    %v2697 = vpop.f32.mrf.mxu0
    %v2698 = vpop.f32.mrf.mxu0
    %v2699 = vadd.f32 0.0, %v2698
    %v2700 = vpop.f32.mrf.mxu0
    %2701 = vdwg.mxu0
    %2702 = vrot.lane.b32.xlu0 %v1796, 64
    %v2703 = vpop.permute.xlu0 %2702
    %v2706 = vsel %vm605, %v2372, 0
    %2708 = vmatprep.subr.bf16.mxu0 0
    %2709 = vmatpush1.bf16.msra.mxu0 0
    %2710 = vmatprep.subr.bf16.mxu0 0
    %2711 = vmatpush1.bf16.msra.mxu0 0
    %2712 = vmatprep.subr.bf16.mxu0 0
    %2713 = vmatpush1.bf16.msra.mxu0 0
    %2714 = vmatprep.subr.bf16.mxu0 0
    %2715 = vmatpush1.bf16.msra.mxu0 0
    %2716 = vmatprep.subr.bf16.mxu0 0
    %2717 = vmatpush1.bf16.msra.mxu0 0
    %2718 = vmatprep.subr.bf16.mxu0 0
    %2719 = vmatpush1.bf16.msra.mxu0 0
    %2720 = vmatprep.subr.bf16.mxu0 0
    %2721 = vmatpush1.bf16.msra.mxu0 0
    %2722 = vmatprep.subr.bf16.mxu0 0
    %2723 = vmatpush1.bf16.msra.mxu0 %v2703
    %2724 = vmatprep.subr.bf16.mxu0 0
    %2725 = vmatpush2.bf16.msra.mxu0 0
    %2726 = vmatprep.subr.bf16.mxu0 0
    %2727 = vmatpush2.bf16.msra.mxu0 0
    %2728 = vmatprep.subr.bf16.mxu0 0
    %2729 = vmatpush2.bf16.msra.mxu0 0
    %2730 = vmatprep.subr.bf16.mxu0 0
    %2731 = vmatpush2.bf16.msra.mxu0 0
    %2732 = vmatprep.subr.bf16.mxu0 0
    %2733 = vmatpush2.bf16.msra.mxu0 0
    %2734 = vmatprep.subr.bf16.mxu0 0
    %2735 = vmatpush2.bf16.msra.mxu0 0
    %2736 = vmatprep.subr.bf16.mxu0 0
    %2737 = vmatpush2.bf16.msra.mxu0 0
    %2738 = vmatprep.subr.bf16.mxu0 0
    %2739 = vmatpush2.bf16.msra.mxu0 0
    %2740 = vmatprep.mubr.bf16.mxu0 0
    %2741 = vmatmul.mubr.bf16.gmra.mxu0 %v2706
    %v2742 = vpop.f32.mrf.mxu0
    %v2743 = vadd.f32 0.0, %v2742
    %v2744 = vpop.f32.mrf.mxu0
    %v2745 = vpop.f32.mrf.mxu0
    %v2746 = vadd.f32 0.0, %v2745
    %v2747 = vpop.f32.mrf.mxu0
    %2748 = vdwg.mxu0
    %2753 = vrot.lane.b32.xlu0 %v2508, 8
    %v2754 = vpop.permute.xlu0 %2753
    %2755 = vrot.lane.b32.xlu0 %v2511, 8
    %v2756 = vpop.permute.xlu0 %2755
    %2757 = vrot.lane.b32.xlu0 %v2555, 8
    %v2758 = vpop.permute.xlu0 %2757
    %2759 = vrot.lane.b32.xlu0 %v2558, 8
    %v2760 = vpop.permute.xlu0 %2759
    %2769 = vrot.lane.b32.xlu0 %v2602, 16
    %v2770 = vpop.permute.xlu0 %2769
    %2771 = vrot.lane.b32.xlu0 %v2605, 16
    %v2772 = vpop.permute.xlu0 %2771
    %2773 = vrot.lane.b32.xlu0 %v2649, 16
    %v2774 = vpop.permute.xlu0 %2773
    %2775 = vrot.lane.b32.xlu0 %v2652, 16
    %v2776 = vpop.permute.xlu0 %2775
    %2785 = vrot.lane.b32.xlu0 %v2696, 24
    %v2786 = vpop.permute.xlu0 %2785
    %2787 = vrot.lane.b32.xlu0 %v2699, 24
    %v2788 = vpop.permute.xlu0 %2787
    %2789 = vrot.lane.b32.xlu0 %v2743, 24
    %v2790 = vpop.permute.xlu0 %2789
    %2791 = vrot.lane.b32.xlu0 %v2746, 24
    %v2792 = vpop.permute.xlu0 %2791
    %v2797 = vsel %vm214, %v2414, %v2754
    %v2798 = vsel %vm214, %v2417, %v2756
    %v2799 = vsel %vm214, %v2461, %v2758
    %v2800 = vsel %vm214, %v2464, %v2760
    %v2801 = vsel %vm605, %v2797, %v2770
    %v2802 = vsel %vm605, %v2798, %v2772
    %v2803 = vsel %vm605, %v2799, %v2774
    %v2804 = vsel %vm605, %v2800, %v2776
    %v2805 = vsel %vm1222, %v2801, %v2786
    %v2806 = vsel %vm1222, %v2802, %v2788
    %v2807 = vsel %vm1222, %v2803, %v2790
    %v2808 = vsel %vm1222, %v2804, %v2792
    %v2809 = vpack.c.bf16 %v2806, %v2805
    %v2810 = vpack.c.bf16 %v2808, %v2807
    %s2811 = scalar_lea.vmem %s4, 16
    %v2812 = vld [vmem:[%s2811] sm:$0xf]
    %v2813 = vld [vmem:[%s2811 + $0x4] sm:$0xf]
    %v2814 = vld [vmem:[%s2811 + $0x8] sm:$0xf]
    %v2815 = vld [vmem:[%s2811 + $0xc] sm:$0xf]
    %v2820 = vunpack.c.l.b16 %v2812
    %v2821 = vunpack.c.l.b16 %v2813
    %v2822 = vunpack.c.l.b16 %v2814
    %v2823 = vunpack.c.l.b16 %v2815
    %v2824 = vpack.c.b16 %v2821, %v2820
    %v2825 = vpack.c.b16 %v2823, %v2822
    %v2829 = vsel %vm49, %v2809, 0
    %v2832 = vsel %vm49, %v2810, 0
    %2834 = vmatprep.subr.bf16.mxu0 0
    %2835 = vmatpush1.bf16.msra.mxu0 0
    %2836 = vmatprep.subr.bf16.mxu0 0
    %2837 = vmatpush1.bf16.msra.mxu0 0
    %2838 = vmatprep.subr.bf16.mxu0 0
    %2839 = vmatpush1.bf16.msra.mxu0 0
    %2840 = vmatprep.subr.bf16.mxu0 0
    %2841 = vmatpush1.bf16.msra.mxu0 0
    %2842 = vmatprep.subr.bf16.mxu0 0
    %2843 = vmatpush1.bf16.msra.mxu0 0
    %2844 = vmatprep.subr.bf16.mxu0 0
    %2845 = vmatpush1.bf16.msra.mxu0 0
    %2846 = vmatprep.subr.bf16.mxu0 0
    %2847 = vmatpush1.bf16.msra.mxu0 %v2825
    %2848 = vmatprep.subr.bf16.mxu0 0
    %2849 = vmatpush1.bf16.msra.mxu0 %v2824
    %2850 = vmatprep.subr.bf16.mxu0 0
    %2851 = vmatpush2.bf16.msra.mxu0 0
    %2852 = vmatprep.subr.bf16.mxu0 0
    %2853 = vmatpush2.bf16.msra.mxu0 0
    %2854 = vmatprep.subr.bf16.mxu0 0
    %2855 = vmatpush2.bf16.msra.mxu0 0
    %2856 = vmatprep.subr.bf16.mxu0 0
    %2857 = vmatpush2.bf16.msra.mxu0 0
    %2858 = vmatprep.subr.bf16.mxu0 0
    %2859 = vmatpush2.bf16.msra.mxu0 0
    %2860 = vmatprep.subr.bf16.mxu0 0
    %2861 = vmatpush2.bf16.msra.mxu0 0
    %2862 = vmatprep.subr.bf16.mxu0 0
    %2863 = vmatpush2.bf16.msra.mxu0 0
    %2864 = vmatprep.subr.bf16.mxu0 0
    %2865 = vmatpush2.bf16.msra.mxu0 0
    %2866 = vmatprep.mubr.bf16.mxu0 0
    %2867 = vmatmul.mubr.bf16.gmra.mxu0 %v2829
    %v2868 = vpop.f32.mrf.mxu0
    %v2869 = vadd.f32 0.0, %v2868
    %v2870 = vpop.f32.mrf.mxu0
    %v2871 = vpop.f32.mrf.mxu0
    %v2872 = vadd.f32 0.0, %v2871
    %v2873 = vpop.f32.mrf.mxu0
    %2874 = vmatprep.mubr.bf16.mxu0 0
    %2875 = vmatmul.mubr.bf16.gmra.mxu0 %v2832
    %v2876 = vpop.f32.mrf.mxu0
    %v2877 = vadd.f32 0.0, %v2876
    %v2878 = vpop.f32.mrf.mxu0
    %v2879 = vpop.f32.mrf.mxu0
    %v2880 = vadd.f32 0.0, %v2879
    %v2881 = vpop.f32.mrf.mxu0
    %2882 = vdwg.mxu0
    %v2883 = vadd.f32 %v1627, %v2869
    %v2884 = vadd.f32 %v1628, %v2872
    %v2885 = vadd.f32 %v1629, %v2877
    %v2886 = vadd.f32 %v1630, %v2880
    %s2887 = scalar_lea.vmem %s5, 1
    %v2888 = vld [vmem:[%s2887] sm:$0x1]
    %v2890 = vlaneseq
    %v2891 = vshrl.u32 %v2890, 7
    %v2892 = vsub.s32 0, %v2891
    %v2893 = vrot.slane %v2888, %v2892
    %v2895 = vadd.f32 %v2883, %v2893
    %v2896 = vadd.f32 %v2884, %v2893
    %v2897 = vadd.f32 %v2885, %v2893
    %v2898 = vadd.f32 %v2886, %v2893
    %s2899 = scalar_lea.vmem %s6, 1
    %v2900 = vld [vmem:[%s2899] sm:$0x1]
    %s2901 = scalar_lea.vmem %s7, 1
    %v2902 = vld [vmem:[%s2901] sm:$0x1]
    %v2903 = vsel %vm49, %v2895, 0.0
    %2904 = vadd.xlane.f32.xlu0 %v2903
    %v2905 = vpop.xlane.xlu0 %2904
    %v2906 = vsel %vm49, %v2896, 0.0
    %2907 = vadd.xlane.f32.xlu0 %v2906
    %v2908 = vpop.xlane.xlu0 %2907
    %v2909 = vsel %vm49, %v2897, 0.0
    %2910 = vadd.xlane.f32.xlu0 %v2909
    %v2911 = vpop.xlane.xlu0 %2910
    %v2912 = vsel %vm49, %v2898, 0.0
    %2913 = vadd.xlane.f32.xlu0 %v2912
    %v2914 = vpop.xlane.xlu0 %2913
    %v2915 = vmul.f32 %v2905, %v62
    %v2916 = vmul.f32 %v2908, %v62
    %v2917 = vmul.f32 %v2911, %v62
    %v2918 = vmul.f32 %v2914, %v62
    %v2919 = vsub.f32 %v2895, %v2915
    %v2920 = vsub.f32 %v2896, %v2916
    %v2921 = vsub.f32 %v2897, %v2917
    %v2922 = vsub.f32 %v2898, %v2918
    %v2923 = vmul.f32 %v2919, %v2919
    %v2924 = vmul.f32 %v2920, %v2920
    %v2925 = vmul.f32 %v2921, %v2921
    %v2926 = vmul.f32 %v2922, %v2922
    %v2927 = vsel %vm49, %v2923, 0.0
    %2928 = vadd.xlane.f32.xlu0 %v2927
    %v2929 = vpop.xlane.xlu0 %2928
    %v2930 = vsel %vm49, %v2924, 0.0
    %2931 = vadd.xlane.f32.xlu0 %v2930
    %v2932 = vpop.xlane.xlu0 %2931
    %v2933 = vsel %vm49, %v2925, 0.0
    %2934 = vadd.xlane.f32.xlu0 %v2933
    %v2935 = vpop.xlane.xlu0 %2934
    %v2936 = vsel %vm49, %v2926, 0.0
    %2937 = vadd.xlane.f32.xlu0 %v2936
    %v2938 = vpop.xlane.xlu0 %2937
    %v2939 = vmul.f32 %v2929, %v62
    %v2940 = vmul.f32 %v2932, %v62
    %v2941 = vmul.f32 %v2935, %v62
    %v2942 = vmul.f32 %v2938, %v62
    %v2943 = vadd.f32 %v2939, 1e-05
    %v2944 = vadd.f32 %v2940, 1e-05
    %v2945 = vadd.f32 %v2941, 1e-05
    %v2946 = vadd.f32 %v2942, 1e-05
    %v2947 = vrsqrt.pop %v2943
    %v2948 = vrsqrt.pop %v2944
    %v2949 = vrsqrt.pop %v2945
    %v2950 = vrsqrt.pop %v2946
    %v2951 = vmul.f32 %v2919, %v2947
    %v2952 = vmul.f32 %v2920, %v2948
    %v2953 = vmul.f32 %v2921, %v2949
    %v2954 = vmul.f32 %v2922, %v2950
    %v2956 = vlaneseq
    %v2957 = vshrl.u32 %v2956, 7
    %v2958 = vsub.s32 0, %v2957
    %v2959 = vrot.slane %v2900, %v2958
    %v2961 = vmul.f32 %v2951, %v2959
    %v2962 = vmul.f32 %v2952, %v2959
    %v2963 = vmul.f32 %v2953, %v2959
    %v2964 = vmul.f32 %v2954, %v2959
    %v2966 = vlaneseq
    %v2967 = vshrl.u32 %v2966, 7
    %v2968 = vsub.s32 0, %v2967
    %v2969 = vrot.slane %v2902, %v2968
    %v2971 = vadd.f32 %v2961, %v2969
    %v2972 = vadd.f32 %v2962, %v2969
    %v2973 = vadd.f32 %v2963, %v2969
    %v2974 = vadd.f32 %v2964, %v2969
    %v2975 = vpack.c.bf16 %v2972, %v2971
    %v2976 = vpack.c.bf16 %v2974, %v2973
    %s2977 = scalar_lea.vmem %s8, 16
    %v2978 = vld [vmem:[%s2977] sm:$0xf]
    %v2979 = vld [vmem:[%s2977 + $0x4] sm:$0xf]
    %v2980 = vld [vmem:[%s2977 + $0x8] sm:$0xf]
    %v2981 = vld [vmem:[%s2977 + $0xc] sm:$0xf]
    %s2982 = scalar_lea.vmem %s9, 1
    %v2983 = vld [vmem:[%s2982] sm:$0x1]
    %v2985 = vlaneseq
    %v2986 = vshrl.u32 %v2985, 7
    %v2987 = vsub.s32 0, %v2986
    %v2988 = vrot.slane %v2983, %v2987
    %v2994 = vunpack.c.l.b16 %v2978
    %v2995 = vunpack.c.l.b16 %v2979
    %v2996 = vunpack.c.l.b16 %v2980
    %v2997 = vunpack.c.l.b16 %v2981
    %v2998 = vpack.c.b16 %v2995, %v2994
    %v2999 = vpack.c.b16 %v2997, %v2996
    %v3003 = vsel %vm49, %v2975, 0
    %v3006 = vsel %vm49, %v2976, 0
    %3008 = vmatprep.subr.bf16.mxu0 0
    %3009 = vmatpush1.bf16.msra.mxu0 0
    %3010 = vmatprep.subr.bf16.mxu0 0
    %3011 = vmatpush1.bf16.msra.mxu0 0
    %3012 = vmatprep.subr.bf16.mxu0 0
    %3013 = vmatpush1.bf16.msra.mxu0 0
    %3014 = vmatprep.subr.bf16.mxu0 0
    %3015 = vmatpush1.bf16.msra.mxu0 0
    %3016 = vmatprep.subr.bf16.mxu0 0
    %3017 = vmatpush1.bf16.msra.mxu0 0
    %3018 = vmatprep.subr.bf16.mxu0 0
    %3019 = vmatpush1.bf16.msra.mxu0 0
    %3020 = vmatprep.subr.bf16.mxu0 0
    %3021 = vmatpush1.bf16.msra.mxu0 %v2999
    %3022 = vmatprep.subr.bf16.mxu0 0
    %3023 = vmatpush1.bf16.msra.mxu0 %v2998
    %3024 = vmatprep.subr.bf16.mxu0 0
    %3025 = vmatpush2.bf16.msra.mxu0 0
    %3026 = vmatprep.subr.bf16.mxu0 0
    %3027 = vmatpush2.bf16.msra.mxu0 0
    %3028 = vmatprep.subr.bf16.mxu0 0
    %3029 = vmatpush2.bf16.msra.mxu0 0
    %3030 = vmatprep.subr.bf16.mxu0 0
    %3031 = vmatpush2.bf16.msra.mxu0 0
    %3032 = vmatprep.subr.bf16.mxu0 0
    %3033 = vmatpush2.bf16.msra.mxu0 0
    %3034 = vmatprep.subr.bf16.mxu0 0
    %3035 = vmatpush2.bf16.msra.mxu0 0
    %3036 = vmatprep.subr.bf16.mxu0 0
    %3037 = vmatpush2.bf16.msra.mxu0 0
    %3038 = vmatprep.subr.bf16.mxu0 0
    %3039 = vmatpush2.bf16.msra.mxu0 0
    %3040 = vmatprep.mubr.bf16.mxu0 0
    %3041 = vmatmul.mubr.bf16.gmra.mxu0 %v3003
    %v3042 = vpop.f32.mrf.mxu0
    %v3043 = vadd.f32 %v2988, %v3042
    %v3044 = vpop.f32.mrf.mxu0
    %v3045 = vpop.f32.mrf.mxu0
    %v3046 = vadd.f32 %v2988, %v3045
    %v3047 = vpop.f32.mrf.mxu0
    %3048 = vmatprep.mubr.bf16.mxu0 0
    %3049 = vmatmul.mubr.bf16.gmra.mxu0 %v3006
    %v3050 = vpop.f32.mrf.mxu0
    %v3051 = vadd.f32 %v2988, %v3050
    %v3052 = vpop.f32.mrf.mxu0
    %v3053 = vpop.f32.mrf.mxu0
    %v3054 = vadd.f32 %v2988, %v3053
    %v3055 = vpop.f32.mrf.mxu0
    %3056 = vdwg.mxu0
    %v3057 = vmul.f32 %v3043, 0.5
    %v3058 = vmul.f32 %v3046, 0.5
    %v3059 = vmul.f32 %v3051, 0.5
    %v3060 = vmul.f32 %v3054, 0.5
    %v3061 = vmul.f32 %v3043, 0.044715
    %v3062 = vmul.f32 %v3046, 0.044715
    %v3063 = vmul.f32 %v3051, 0.044715
    %v3064 = vmul.f32 %v3054, 0.044715
    %v3065 = vmul.f32 %v3061, %v3043
    %v3066 = vmul.f32 %v3062, %v3046
    %v3067 = vmul.f32 %v3063, %v3051
    %v3068 = vmul.f32 %v3064, %v3054
    %v3069 = vmul.f32 %v3065, %v3043
    %v3070 = vmul.f32 %v3066, %v3046
    %v3071 = vmul.f32 %v3067, %v3051
    %v3072 = vmul.f32 %v3068, %v3054
    %v3073 = vadd.f32 %v3043, %v3069
    %v3074 = vadd.f32 %v3046, %v3070
    %v3075 = vadd.f32 %v3051, %v3071
    %v3076 = vadd.f32 %v3054, %v3072
    %v3077 = vmul.f32 %v3073, 0.7978846
    %v3078 = vmul.f32 %v3074, 0.7978846
    %v3079 = vmul.f32 %v3075, 0.7978846
    %v3080 = vmul.f32 %v3076, 0.7978846
    %v3081 = vtanh.pop %v3077
    %v3082 = vtanh.pop %v3078
    %v3083 = vtanh.pop %v3079
    %v3084 = vtanh.pop %v3080
    %v3085 = vadd.f32 %v3081, 1.0
    %v3086 = vadd.f32 %v3082, 1.0
    %v3087 = vadd.f32 %v3083, 1.0
    %v3088 = vadd.f32 %v3084, 1.0
    %v3089 = vmul.f32 %v3057, %v3085
    %v3090 = vmul.f32 %v3058, %v3086
    %v3091 = vmul.f32 %v3059, %v3087
    %v3092 = vmul.f32 %v3060, %v3088
    %v3093 = vpack.c.bf16 %v3090, %v3089
    %v3094 = vpack.c.bf16 %v3092, %v3091
    %s3095 = scalar_lea.vmem %s10, 64
    %v3096 = vld [vmem:[%s3095] sm:$0xf]
    %v3097 = vld [vmem:[%s3095 + $0x4] sm:$0xf]
    %v3098 = vld [vmem:[%s3095 + $0x8] sm:$0xf]
    %v3099 = vld [vmem:[%s3095 + $0xc] sm:$0xf]
    %v3100 = vld [vmem:[%s3095 + $0x10] sm:$0xf]
    %v3101 = vld [vmem:[%s3095 + $0x14] sm:$0xf]
    %v3102 = vld [vmem:[%s3095 + $0x18] sm:$0xf]
    %v3103 = vld [vmem:[%s3095 + $0x1c] sm:$0xf]
    %v3104 = vld [vmem:[%s3095 + $0x20] sm:$0xf]
    %v3105 = vld [vmem:[%s3095 + $0x24] sm:$0xf]
    %v3106 = vld [vmem:[%s3095 + $0x28] sm:$0xf]
    %v3107 = vld [vmem:[%s3095 + $0x2c] sm:$0xf]
    %v3108 = vld [vmem:[%s3095 + $0x30] sm:$0xf]
    %v3109 = vld [vmem:[%s3095 + $0x34] sm:$0xf]
    %v3110 = vld [vmem:[%s3095 + $0x38] sm:$0xf]
    %v3111 = vld [vmem:[%s3095 + $0x3c] sm:$0xf]
    %s3112 = scalar_lea.vmem %s11, 1
    %v3113 = vld [vmem:[%s3112] sm:$0x1]
    %v3115 = vlaneseq
    %v3116 = vshrl.u32 %v3115, 7
    %v3117 = vsub.s32 0, %v3116
    %v3118 = vrot.slane %v3113, %v3117
    %v3136 = vunpack.c.l.b16 %v3096
    %v3137 = vunpack.c.l.b16 %v3097
    %v3138 = vunpack.c.l.b16 %v3098
    %v3139 = vunpack.c.l.b16 %v3099
    %v3140 = vunpack.c.l.b16 %v3100
    %v3141 = vunpack.c.l.b16 %v3101
    %v3142 = vunpack.c.l.b16 %v3102
    %v3143 = vunpack.c.l.b16 %v3103
    %v3144 = vunpack.c.l.b16 %v3104
    %v3145 = vunpack.c.l.b16 %v3105
    %v3146 = vunpack.c.l.b16 %v3106
    %v3147 = vunpack.c.l.b16 %v3107
    %v3148 = vunpack.c.l.b16 %v3108
    %v3149 = vunpack.c.l.b16 %v3109
    %v3150 = vunpack.c.l.b16 %v3110
    %v3151 = vunpack.c.l.b16 %v3111
    %v3152 = vpack.c.b16 %v3137, %v3136
    %v3153 = vpack.c.b16 %v3139, %v3138
    %v3154 = vpack.c.b16 %v3141, %v3140
    %v3155 = vpack.c.b16 %v3143, %v3142
    %v3156 = vpack.c.b16 %v3145, %v3144
    %v3157 = vpack.c.b16 %v3147, %v3146
    %v3158 = vpack.c.b16 %v3149, %v3148
    %v3159 = vpack.c.b16 %v3151, %v3150
    %3168 = vmatprep.subr.bf16.mxu0 0
    %3169 = vmatpush1.bf16.msra.mxu0 %v3159
    %3170 = vmatprep.subr.bf16.mxu0 0
    %3171 = vmatpush1.bf16.msra.mxu0 %v3158
    %3172 = vmatprep.subr.bf16.mxu0 0
    %3173 = vmatpush1.bf16.msra.mxu0 %v3157
    %3174 = vmatprep.subr.bf16.mxu0 0
    %3175 = vmatpush1.bf16.msra.mxu0 %v3156
    %3176 = vmatprep.subr.bf16.mxu0 0
    %3177 = vmatpush1.bf16.msra.mxu0 %v3155
    %3178 = vmatprep.subr.bf16.mxu0 0
    %3179 = vmatpush1.bf16.msra.mxu0 %v3154
    %3180 = vmatprep.subr.bf16.mxu0 0
    %3181 = vmatpush1.bf16.msra.mxu0 %v3153
    %3182 = vmatprep.subr.bf16.mxu0 0
    %3183 = vmatpush1.bf16.msra.mxu0 %v3152
    %3184 = vmatprep.subr.bf16.mxu0 0
    %3185 = vmatpush2.bf16.msra.mxu0 0
    %3186 = vmatprep.subr.bf16.mxu0 0
    %3187 = vmatpush2.bf16.msra.mxu0 0
    %3188 = vmatprep.subr.bf16.mxu0 0
    %3189 = vmatpush2.bf16.msra.mxu0 0
    %3190 = vmatprep.subr.bf16.mxu0 0
    %3191 = vmatpush2.bf16.msra.mxu0 0
    %3192 = vmatprep.subr.bf16.mxu0 0
    %3193 = vmatpush2.bf16.msra.mxu0 0
    %3194 = vmatprep.subr.bf16.mxu0 0
    %3195 = vmatpush2.bf16.msra.mxu0 0
    %3196 = vmatprep.subr.bf16.mxu0 0
    %3197 = vmatpush2.bf16.msra.mxu0 0
    %3198 = vmatprep.subr.bf16.mxu0 0
    %3199 = vmatpush2.bf16.msra.mxu0 0
    %3200 = vmatprep.mubr.bf16.mxu0 0
    %3201 = vmatmul.mubr.bf16.gmra.mxu0 %v3093
    %v3202 = vpop.f32.mrf.mxu0
    %v3203 = vadd.f32 %v3118, %v3202
    %v3204 = vpop.f32.mrf.mxu0
    %v3205 = vpop.f32.mrf.mxu0
    %v3206 = vadd.f32 %v3118, %v3205
    %v3207 = vpop.f32.mrf.mxu0
    %3208 = vmatprep.mubr.bf16.mxu0 0
    %3209 = vmatmul.mubr.bf16.gmra.mxu0 %v3094
    %v3210 = vpop.f32.mrf.mxu0
    %v3211 = vadd.f32 %v3118, %v3210
    %v3212 = vpop.f32.mrf.mxu0
    %v3213 = vpop.f32.mrf.mxu0
    %v3214 = vadd.f32 %v3118, %v3213
    %v3215 = vpop.f32.mrf.mxu0
    %3216 = vdwg.mxu0
    %v3217 = vadd.f32 %v2895, %v3203
    %v3218 = vadd.f32 %v2896, %v3206
    %v3219 = vadd.f32 %v2897, %v3211
    %v3220 = vadd.f32 %v2898, %v3214
    %3221 = vst.msk [vmem:[#allocation2] sm:$0xff] %vm49, %v3217
    %3222 = vst.msk [vmem:[#allocation2 + $0x8] sm:$0xff] %vm49, %v3218
    %3223 = vst.msk [vmem:[#allocation2 + $0x10] sm:$0xff] %vm49, %v3219
    %3224 = vst.msk [vmem:[#allocation2 + $0x18] sm:$0xff] %vm49, %v3220
    // Predicated region
    $region50: #{tpu_custom_call.1} parent=1 // pred_check
      _
    $region51: #{tpu_custom_call.1} parent=1 // pred_check_branch
      %3226 = sbr.rel (0) target = $region53
    $region52: #{tpu_custom_call.1} parent=1 // pred_region
      %s3228 = ssub.s32 512, 512
      %3229 = vsyncadd [#allocation3], %s3228
      %s3230 = sshll.u32 [#allocation2], 4
      %s3231 = int_to_ptr.vmem [resolvable:$true] %s3230
      %3236 = dma.vmem_to_hbm [thread:$0]  %s3231, 512, %s12, [#allocation3], 128, 128, 8
    $region53: #{tpu_custom_call.1} parent=1 // pred_fallthru
      _
    // Predicated region
    $region54: #{tpu_custom_call.1} parent=1 // pred_check
      _
    $region55: #{tpu_custom_call.1} parent=1 // pred_check_branch
      %3238 = sbr.rel (0) target = $region57
    $region56: #{tpu_custom_call.1} parent=1 // pred_region
      %3239 = dma.done [#allocation3], 512
    $region57: #{tpu_custom_call.1} parent=1 // pred_fallthru
      _
    %3240 = vsyncpa [#allocation3], 1

</llo_original>
